<compile_context>
chip_gen: v6e
topology: v6e:2x2x1
jax: 0.10.0
libtpu: 0.0.40
codegen_flags: <defaults>
</compile_context>

<pallas_src>
import functools
import numpy as np
import jax
import jax.numpy as jnp
from jax.experimental import pallas as pl
from jax.experimental.pallas import tpu as pltpu

# ----- problem sizes (small, consistent with the module) -----
B = 2          # batch
DIM = 32       # channels (dim)
H = W = 16     # spatial
HW = H * W
DEPTH = 4      # number of adaptive layers
NK = 2         # num_conv_kernels
EMB = 64       # dim_embed for mod / kernel_mod
EPS = 1e-8


# ============================ Pallas kernel ============================
def predictor_kernel(x_ref, mod_ref, km_ref,
                     tomodw_ref, tomodb_ref,
                     adaptw_ref, adaptb_ref,
                     convk_ref,
                     wlog_ref, rowres_ref, const_ref,
                     o_ref, *, batch, depth, nk, c):
    f32 = jnp.float32
    bf16 = jnp.bfloat16
    HP = jax.lax.Precision.HIGHEST

    # ---- weight-prep linears: all samples x all layers in two matmuls ----
    # Default (single-pass bf16 MXU) precision — results feed softmax / modulation.
    m_all = jnp.dot(mod_ref[...], tomodw_ref[...],
                    preferred_element_type=f32) + tomodb_ref[...]     # (B, DEPTH*C)
    lg_all = jnp.dot(km_ref[...], adaptw_ref[...],
                     preferred_element_type=f32) + adaptb_ref[...]    # (B, DEPTH*NK)

    # ---- per-layer modulated + demodulated conv matrices (f32), batch-vectorized ----
    wbs = []
    for l in range(depth):
        # softmax over the NK weight banks (per sample)
        lg = lg_all[:, l * nk:(l + 1) * nk]                           # (B, NK)
        lg = lg - jnp.max(lg, axis=-1, keepdims=True)
        e = jnp.exp(lg)
        sel = e / jnp.sum(e, axis=-1, keepdims=True)                  # (B, NK)

        # mix the NK weight banks -> (B, C, C)
        wb = sel[:, 0:1, None] * convk_ref[l, 0][None]
        for n in range(1, nk):
            wb = wb + sel[:, n:n + 1, None] * convk_ref[l, n][None]

        # modulation over input channels, then demodulation (kept in f32)
        m = m_all[:, l * c:(l + 1) * c]                               # (B, C)
        wb = wb * (m[:, None, :] + 1.0)
        sq = jnp.sum(wb * wb, axis=-1, keepdims=True)                 # (B, C, 1)
        wb = wb * jax.lax.rsqrt(jnp.maximum(sq, EPS))
        wbs.append(wb)

    wlog = wlog_ref[...]          # (1, C)
    row_res = rowres_ref[...]     # (1, C)  = wlog @ wres   (precomputed)
    const = const_ref[...]        # (1, 1)  = wlog @ bres + blog

    # ---- compose the full linear chain per sample, then ONE wide matmul ----
    for s in range(batch):
        v = wlog
        for l in range(depth - 1, -1, -1):
            v = jnp.dot(v, wbs[l][s], precision=HP,
                        preferred_element_type=f32)                   # (1, C) f32
        row = (v + row_res).astype(bf16)                              # (1, C)
        out = jnp.dot(row, x_ref[s], preferred_element_type=f32) + const  # (1, HW)
        o_ref[s] = out


# ============================ wrapper ============================
@jax.jit
def predictor_pallas(x_nchw, mod, kernel_mod, params):
    b, c, h, w = x_nchw.shape
    hw = h * w
    emb = mod.shape[-1]
    depth = params["tomod_w"].shape[0]
    nk = params["adapt_w"].shape[1]
    HP = jax.lax.Precision.HIGHEST

    # (B, C, HW) bf16: channels on sublanes, spatial on lanes — no transpose needed.
    x = x_nchw.reshape(b, c, hw).astype(jnp.bfloat16)

    # Stack the per-layer weight-prep linears -> two matmuls in the kernel.
    tomod_w_cat = params["tomod_w"].transpose(2, 0, 1).reshape(emb, depth * c)   # (EMB, D*C)
    tomod_b_cat = params["tomod_b"].reshape(1, depth * c)                        # (1, D*C)
    adapt_w_cat = params["adapt_w"].transpose(2, 0, 1).reshape(emb, depth * nk)  # (EMB, D*NK)
    adapt_b_cat = params["adapt_b"].reshape(1, depth * nk)                       # (1, D*NK)

    # Fold residual + logits biases into one row / scalar (tiny param-space ops).
    wlog = params["wlog"]                                                  # (1, C)
    row_res = jnp.dot(wlog, params["wres"], precision=HP)                  # (1, C)
    const = (jnp.dot(wlog, params["bres"][:, None], precision=HP)
             + params["blog"].reshape(1, 1))                               # (1, 1)

    args = (x, mod, kernel_mod,
            tomod_w_cat, tomod_b_cat,
            adapt_w_cat, adapt_b_cat,
            params["convk"],
            wlog, row_res, const)

    def full_spec(shape):
        nd = len(shape)
        return pl.BlockSpec(shape, lambda i, _nd=nd: (0,) * _nd)

    in_specs = [full_spec(a.shape) for a in args]
    out_specs = full_spec((b, 1, hw))

    kern = functools.partial(predictor_kernel, batch=b, depth=depth, nk=nk, c=c)

    # Advisory cost estimate (helps XLA overlap neighbours around this tiny call).
    flops = int(2 * b * emb * depth * (c + nk)          # weight-prep matmuls
                + b * depth * nk * 2 * c * c            # bank mixing
                + b * depth * 4 * c * c                 # modulation + demod
                + b * depth * 2 * c * c                 # chain composition
                + 2 * b * c * hw)                       # final wide matmul
    bytes_accessed = int(sum(int(np.prod(a.shape)) * a.dtype.itemsize for a in args)
                         + b * hw * 4)
    cost = pl.CostEstimate(flops=flops,
                           transcendentals=int(b * depth * (nk + c)),
                           bytes_accessed=bytes_accessed)

    out = pl.pallas_call(
        kern,
        out_shape=jax.ShapeDtypeStruct((b, 1, hw), jnp.float32),
        grid=(1,),                       # whole batch in one step: kernel is latency-bound
        in_specs=in_specs,
        out_specs=out_specs,
        compiler_params=pltpu.CompilerParams(dimension_semantics=("arbitrary",)),
        cost_estimate=cost,
    )(*args)

    return out.reshape(b, 1, h, w)       # already NCHW-ordered, no transpose


# ============================ pure-JAX reference ============================
def predictor_ref(x_nchw, mod, kernel_mod, params):
    with jax.default_matmul_precision("highest"):   # near-exact f32 reference
        b, c, h, w = x_nchw.shape
        x = x_nchw
        residual = (jnp.einsum("oi,bihw->bohw", params["wres"], x)
                    + params["bres"].reshape(1, c, 1, 1))
        for l in range(DEPTH):
            sel = jax.nn.softmax(kernel_mod @ params["adapt_w"][l].T + params["adapt_b"][l],
                                 axis=-1)
            wb = jnp.einsum("bn,noi->boi", sel, params["convk"][l])
            m = mod @ params["tomod_w"][l].T + params["tomod_b"][l]
            wb = wb * (m[:, None, :] + 1.0)
            inv = jax.lax.rsqrt(jnp.maximum(jnp.sum(wb ** 2, axis=-1, keepdims=True), EPS))
            wb = wb * inv
            x = jnp.einsum("boi,bihw->bohw", wb, x)
        x = x + residual
        return (jnp.einsum("oi,bihw->bohw", params["wlog"], x)
                + params["blog"].reshape(1, 1, 1, 1))


# ============================ deterministic params ============================
def make_params(key):
    ks = jax.random.split(key, 12)

    def uni(k, shape, fan_in):
        lim = 1.0 / np.sqrt(fan_in)
        return jax.random.uniform(k, shape, jnp.float32, -lim, lim)

    params = {
        # residual 1x1 conv (dim -> dim)
        "wres": uni(ks[0], (DIM, DIM), DIM),
        "bres": uni(ks[1], (DIM,), DIM),
        # to_mod linears (EMB -> dim), one per layer
        "tomod_w": uni(ks[2], (DEPTH, DIM, EMB), EMB),
        "tomod_b": uni(ks[3], (DEPTH, DIM), EMB),
        # to_adaptive_weight linears (EMB -> NK), one per layer
        "adapt_w": uni(ks[4], (DEPTH, NK, EMB), EMB),
        "adapt_b": uni(ks[5], (DEPTH, NK), EMB),
        # conv weight banks: kaiming_normal fan_in=dim*1*1
        "convk": jax.random.normal(ks[6], (DEPTH, NK, DIM, DIM), jnp.float32)
                 * np.sqrt(2.0 / DIM),
        # to_logits 1x1 conv (dim -> 1)
        "wlog": uni(ks[7], (1, DIM), DIM),
        "blog": uni(ks[8], (1,), DIM),
    }
    return params


if __name__ == "__main__":
    root = jax.random.PRNGKey(0)
    k_x, k_mod, k_km, k_p = jax.random.split(root, 4)

    x = jax.random.normal(k_x, (B, DIM, H, W), jnp.float32)          # NCHW like PyTorch
    mod = jax.random.normal(k_mod, (B, EMB), jnp.float32)
    kernel_mod = jax.random.normal(k_km, (B, EMB), jnp.float32)
    params = make_params(k_p)

    out = predictor_pallas(x, mod, kernel_mod, params)
    out = jax.block_until_ready(out)

    ref = jax.block_until_ready(predictor_ref(x, mod, kernel_mod, params))

    assert out.shape == (B, 1, H, W), out.shape
    # Chain composed in f32; only the weight-prep matmuls and the single wide matmul use
    # bf16 MXU operands, so bf16-class tolerance is comfortable.
    np.testing.assert_allclose(np.asarray(out), np.asarray(ref), rtol=2e-2, atol=2e-2)
    print("KERNEL_OK")
</pallas_src>

<mosaic_0001>
module attributes {stable_mosaic.version = 11 : i64} {
  func.func @predictor_kernel(%arg0: i32, %arg1: memref<2x32x256xbf16, #tpu.memory_space<vmem>>, %arg2: memref<2x64xf32, #tpu.memory_space<vmem>>, %arg3: memref<2x64xf32, #tpu.memory_space<vmem>>, %arg4: memref<64x128xf32, #tpu.memory_space<vmem>>, %arg5: memref<1x128xf32, #tpu.memory_space<vmem>>, %arg6: memref<64x8xf32, #tpu.memory_space<vmem>>, %arg7: memref<1x8xf32, #tpu.memory_space<vmem>>, %arg8: memref<4x2x32x32xf32, #tpu.memory_space<vmem>>, %arg9: memref<1x32xf32, #tpu.memory_space<vmem>>, %arg10: memref<1x32xf32, #tpu.memory_space<vmem>>, %arg11: memref<1x1xf32, #tpu.memory_space<vmem>>, %arg12: memref<2x1x256xf32, #tpu.memory_space<vmem>>) attributes {dimension_semantics = [#tpu.dimension_semantics<arbitrary>], iteration_bounds = array<i64: 1>, scalar_prefetch = 0 : i64, scratch_operands = 0 : i64, tpu.core_type = #tpu.core_type<tc>, window_params = [{pipeline_mode = #tpu.pipeline_mode<synchronous>, transform_indices = @transform_0, window_bounds = array<i64: 2, 32, 256>}, {pipeline_mode = #tpu.pipeline_mode<synchronous>, transform_indices = @transform_1, window_bounds = array<i64: 2, 64>}, {pipeline_mode = #tpu.pipeline_mode<synchronous>, transform_indices = @transform_2, window_bounds = array<i64: 2, 64>}, {pipeline_mode = #tpu.pipeline_mode<synchronous>, transform_indices = @transform_3, window_bounds = array<i64: 64, 128>}, {pipeline_mode = #tpu.pipeline_mode<synchronous>, transform_indices = @transform_4, window_bounds = array<i64: 1, 128>}, {pipeline_mode = #tpu.pipeline_mode<synchronous>, transform_indices = @transform_5, window_bounds = array<i64: 64, 8>}, {pipeline_mode = #tpu.pipeline_mode<synchronous>, transform_indices = @transform_6, window_bounds = array<i64: 1, 8>}, {pipeline_mode = #tpu.pipeline_mode<synchronous>, transform_indices = @transform_7, window_bounds = array<i64: 4, 2, 32, 32>}, {pipeline_mode = #tpu.pipeline_mode<synchronous>, transform_indices = @transform_8, window_bounds = array<i64: 1, 32>}, {pipeline_mode = #tpu.pipeline_mode<synchronous>, transform_indices = @transform_9, window_bounds = array<i64: 1, 32>}, {pipeline_mode = #tpu.pipeline_mode<synchronous>, transform_indices = @transform_10, window_bounds = array<i64: 1, 1>}, {pipeline_mode = #tpu.pipeline_mode<synchronous>, transform_indices = @transform_11, window_bounds = array<i64: 2, 1, 256>}]} {
    %c0 = arith.constant 0 : index
    %c0_0 = arith.constant 0 : index
    %0 = vector.load %arg2[%c0, %c0_0] : memref<2x64xf32, #tpu.memory_space<vmem>>, vector<2x64xf32>
    %c0_1 = arith.constant 0 : index
    %c0_2 = arith.constant 0 : index
    %1 = vector.load %arg4[%c0_1, %c0_2] : memref<64x128xf32, #tpu.memory_space<vmem>>, vector<64x128xf32>
    %cst = arith.constant dense<0.000000e+00> : vector<2x128xf32>
    %2 = tpu.matmul %0, %1, %cst {dimension_numbers = #tpu.dot_dimension_numbers<[1], [0], [0], [1], [0, 0, 1, 1], [], []>} : vector<2x64xf32>, vector<64x128xf32>, vector<2x128xf32> -> vector<2x128xf32>
    %c0_3 = arith.constant 0 : index
    %c0_4 = arith.constant 0 : index
    %3 = vector.load %arg5[%c0_3, %c0_4] : memref<1x128xf32, #tpu.memory_space<vmem>>, vector<1x128xf32>
    %4 = vector.broadcast %3 : vector<1x128xf32> to vector<2x128xf32>
    %5 = arith.addf %2, %4 : vector<2x128xf32>
    %c0_5 = arith.constant 0 : index
    %c0_6 = arith.constant 0 : index
    %6 = vector.load %arg3[%c0_5, %c0_6] : memref<2x64xf32, #tpu.memory_space<vmem>>, vector<2x64xf32>
    %c0_7 = arith.constant 0 : index
    %c0_8 = arith.constant 0 : index
    %7 = vector.load %arg6[%c0_7, %c0_8] : memref<64x8xf32, #tpu.memory_space<vmem>>, vector<64x8xf32>
    %cst_9 = arith.constant dense<0.000000e+00> : vector<2x8xf32>
    %8 = tpu.matmul %6, %7, %cst_9 {dimension_numbers = #tpu.dot_dimension_numbers<[1], [0], [0], [1], [0, 0, 1, 1], [], []>} : vector<2x64xf32>, vector<64x8xf32>, vector<2x8xf32> -> vector<2x8xf32>
    %c0_10 = arith.constant 0 : index
    %c0_11 = arith.constant 0 : index
    %9 = vector.load %arg7[%c0_10, %c0_11] : memref<1x8xf32, #tpu.memory_space<vmem>>, vector<1x8xf32>
    %10 = vector.broadcast %9 : vector<1x8xf32> to vector<2x8xf32>
    %11 = arith.addf %8, %10 : vector<2x8xf32>
    %12 = vector.extract_strided_slice %11 {offsets = [0, 0], sizes = [2, 2], strides = [1, 1]} : vector<2x8xf32> to vector<2x2xf32>
    %cst_12 = arith.constant dense<0xFF800000> : vector<2xf32>
    %13 = vector.multi_reduction <maximumf>, %12, %cst_12 [1] : vector<2x2xf32> to vector<2xf32>
    %14 = vector.shape_cast %13 : vector<2xf32> to vector<2x1xf32>
    %15 = vector.broadcast %14 : vector<2x1xf32> to vector<2x2xf32>
    %16 = arith.subf %12, %15 : vector<2x2xf32>
    %17 = math.exp %16 : vector<2x2xf32>
    %cst_13 = arith.constant dense<0.000000e+00> : vector<2xf32>
    %18 = vector.multi_reduction <add>, %17, %cst_13 [1] : vector<2x2xf32> to vector<2xf32>
    %19 = vector.shape_cast %18 : vector<2xf32> to vector<2x1xf32>
    %20 = vector.broadcast %19 : vector<2x1xf32> to vector<2x2xf32>
    %21 = arith.divf %17, %20 : vector<2x2xf32>
    %22 = vector.extract_strided_slice %21 {offsets = [0, 0], sizes = [2, 1], strides = [1, 1]} : vector<2x2xf32> to vector<2x1xf32>
    %23 = vector.shape_cast %22 : vector<2x1xf32> to vector<2x1x1xf32>
    %c0_14 = arith.constant 0 : index
    %c0_15 = arith.constant 0 : index
    %c0_16 = arith.constant 0 : index
    %c0_17 = arith.constant 0 : index
    %24 = vector.load %arg8[%c0_14, %c0_15, %c0_16, %c0_17] : memref<4x2x32x32xf32, #tpu.memory_space<vmem>>, vector<1x1x32x32xf32>
    %25 = vector.shape_cast %24 : vector<1x1x32x32xf32> to vector<32x32xf32>
    %26 = vector.shape_cast %25 : vector<32x32xf32> to vector<1x32x32xf32>
    %27 = vector.broadcast %23 : vector<2x1x1xf32> to vector<2x32x32xf32>
    %28 = vector.broadcast %26 : vector<1x32x32xf32> to vector<2x32x32xf32>
    %29 = arith.mulf %27, %28 : vector<2x32x32xf32>
    %30 = vector.extract_strided_slice %21 {offsets = [0, 1], sizes = [2, 1], strides = [1, 1]} : vector<2x2xf32> to vector<2x1xf32>
    %31 = vector.shape_cast %30 : vector<2x1xf32> to vector<2x1x1xf32>
    %c0_18 = arith.constant 0 : index
    %c1 = arith.constant 1 : index
    %c0_19 = arith.constant 0 : index
    %c0_20 = arith.constant 0 : index
    %32 = vector.load %arg8[%c0_18, %c1, %c0_19, %c0_20] : memref<4x2x32x32xf32, #tpu.memory_space<vmem>>, vector<1x1x32x32xf32>
    %33 = vector.shape_cast %32 : vector<1x1x32x32xf32> to vector<32x32xf32>
    %34 = vector.shape_cast %33 : vector<32x32xf32> to vector<1x32x32xf32>
    %35 = vector.broadcast %31 : vector<2x1x1xf32> to vector<2x32x32xf32>
    %36 = vector.broadcast %34 : vector<1x32x32xf32> to vector<2x32x32xf32>
    %37 = arith.mulf %35, %36 : vector<2x32x32xf32>
    %38 = arith.addf %29, %37 : vector<2x32x32xf32>
    %39 = vector.extract_strided_slice %5 {offsets = [0, 0], sizes = [2, 32], strides = [1, 1]} : vector<2x128xf32> to vector<2x32xf32>
    %40 = vector.shape_cast %39 : vector<2x32xf32> to vector<2x1x32xf32>
    %cst_21 = arith.constant 1.000000e+00 : f32
    %41 = vector.broadcast %cst_21 : f32 to vector<2x1x32xf32>
    %42 = arith.addf %40, %41 : vector<2x1x32xf32>
    %43 = vector.broadcast %42 : vector<2x1x32xf32> to vector<2x32x32xf32>
    %44 = arith.mulf %38, %43 : vector<2x32x32xf32>
    %45 = arith.mulf %44, %44 : vector<2x32x32xf32>
    %cst_22 = arith.constant dense<0.000000e+00> : vector<2x32xf32>
    %46 = vector.multi_reduction <add>, %45, %cst_22 [2] : vector<2x32x32xf32> to vector<2x32xf32>
    %47 = vector.shape_cast %46 : vector<2x32xf32> to vector<2x32x1xf32>
    %cst_23 = arith.constant 9.99999993E-9 : f32
    %48 = vector.broadcast %cst_23 : f32 to vector<2x32x1xf32>
    %49 = arith.maximumf %47, %48 : vector<2x32x1xf32>
    %50 = math.rsqrt %49 : vector<2x32x1xf32>
    %51 = vector.broadcast %50 : vector<2x32x1xf32> to vector<2x32x32xf32>
    %52 = arith.mulf %44, %51 : vector<2x32x32xf32>
    %53 = vector.extract_strided_slice %11 {offsets = [0, 2], sizes = [2, 2], strides = [1, 1]} : vector<2x8xf32> to vector<2x2xf32>
    %cst_24 = arith.constant dense<0xFF800000> : vector<2xf32>
    %54 = vector.multi_reduction <maximumf>, %53, %cst_24 [1] : vector<2x2xf32> to vector<2xf32>
    %55 = vector.shape_cast %54 : vector<2xf32> to vector<2x1xf32>
    %56 = vector.broadcast %55 : vector<2x1xf32> to vector<2x2xf32>
    %57 = arith.subf %53, %56 : vector<2x2xf32>
    %58 = math.exp %57 : vector<2x2xf32>
    %cst_25 = arith.constant dense<0.000000e+00> : vector<2xf32>
    %59 = vector.multi_reduction <add>, %58, %cst_25 [1] : vector<2x2xf32> to vector<2xf32>
    %60 = vector.shape_cast %59 : vector<2xf32> to vector<2x1xf32>
    %61 = vector.broadcast %60 : vector<2x1xf32> to vector<2x2xf32>
    %62 = arith.divf %58, %61 : vector<2x2xf32>
    %63 = vector.extract_strided_slice %62 {offsets = [0, 0], sizes = [2, 1], strides = [1, 1]} : vector<2x2xf32> to vector<2x1xf32>
    %64 = vector.shape_cast %63 : vector<2x1xf32> to vector<2x1x1xf32>
    %c1_26 = arith.constant 1 : index
    %c0_27 = arith.constant 0 : index
    %c0_28 = arith.constant 0 : index
    %c0_29 = arith.constant 0 : index
    %65 = vector.load %arg8[%c1_26, %c0_27, %c0_28, %c0_29] : memref<4x2x32x32xf32, #tpu.memory_space<vmem>>, vector<1x1x32x32xf32>
    %66 = vector.shape_cast %65 : vector<1x1x32x32xf32> to vector<32x32xf32>
    %67 = vector.shape_cast %66 : vector<32x32xf32> to vector<1x32x32xf32>
    %68 = vector.broadcast %64 : vector<2x1x1xf32> to vector<2x32x32xf32>
    %69 = vector.broadcast %67 : vector<1x32x32xf32> to vector<2x32x32xf32>
    %70 = arith.mulf %68, %69 : vector<2x32x32xf32>
    %71 = vector.extract_strided_slice %62 {offsets = [0, 1], sizes = [2, 1], strides = [1, 1]} : vector<2x2xf32> to vector<2x1xf32>
    %72 = vector.shape_cast %71 : vector<2x1xf32> to vector<2x1x1xf32>
    %c1_30 = arith.constant 1 : index
    %c1_31 = arith.constant 1 : index
    %c0_32 = arith.constant 0 : index
    %c0_33 = arith.constant 0 : index
    %73 = vector.load %arg8[%c1_30, %c1_31, %c0_32, %c0_33] : memref<4x2x32x32xf32, #tpu.memory_space<vmem>>, vector<1x1x32x32xf32>
    %74 = vector.shape_cast %73 : vector<1x1x32x32xf32> to vector<32x32xf32>
    %75 = vector.shape_cast %74 : vector<32x32xf32> to vector<1x32x32xf32>
    %76 = vector.broadcast %72 : vector<2x1x1xf32> to vector<2x32x32xf32>
    %77 = vector.broadcast %75 : vector<1x32x32xf32> to vector<2x32x32xf32>
    %78 = arith.mulf %76, %77 : vector<2x32x32xf32>
    %79 = arith.addf %70, %78 : vector<2x32x32xf32>
    %80 = vector.extract_strided_slice %5 {offsets = [0, 32], sizes = [2, 32], strides = [1, 1]} : vector<2x128xf32> to vector<2x32xf32>
    %81 = vector.shape_cast %80 : vector<2x32xf32> to vector<2x1x32xf32>
    %cst_34 = arith.constant 1.000000e+00 : f32
    %82 = vector.broadcast %cst_34 : f32 to vector<2x1x32xf32>
    %83 = arith.addf %81, %82 : vector<2x1x32xf32>
    %84 = vector.broadcast %83 : vector<2x1x32xf32> to vector<2x32x32xf32>
    %85 = arith.mulf %79, %84 : vector<2x32x32xf32>
    %86 = arith.mulf %85, %85 : vector<2x32x32xf32>
    %cst_35 = arith.constant dense<0.000000e+00> : vector<2x32xf32>
    %87 = vector.multi_reduction <add>, %86, %cst_35 [2] : vector<2x32x32xf32> to vector<2x32xf32>
    %88 = vector.shape_cast %87 : vector<2x32xf32> to vector<2x32x1xf32>
    %cst_36 = arith.constant 9.99999993E-9 : f32
    %89 = vector.broadcast %cst_36 : f32 to vector<2x32x1xf32>
    %90 = arith.maximumf %88, %89 : vector<2x32x1xf32>
    %91 = math.rsqrt %90 : vector<2x32x1xf32>
    %92 = vector.broadcast %91 : vector<2x32x1xf32> to vector<2x32x32xf32>
    %93 = arith.mulf %85, %92 : vector<2x32x32xf32>
    %94 = vector.extract_strided_slice %11 {offsets = [0, 4], sizes = [2, 2], strides = [1, 1]} : vector<2x8xf32> to vector<2x2xf32>
    %cst_37 = arith.constant dense<0xFF800000> : vector<2xf32>
    %95 = vector.multi_reduction <maximumf>, %94, %cst_37 [1] : vector<2x2xf32> to vector<2xf32>
    %96 = vector.shape_cast %95 : vector<2xf32> to vector<2x1xf32>
    %97 = vector.broadcast %96 : vector<2x1xf32> to vector<2x2xf32>
    %98 = arith.subf %94, %97 : vector<2x2xf32>
    %99 = math.exp %98 : vector<2x2xf32>
    %cst_38 = arith.constant dense<0.000000e+00> : vector<2xf32>
    %100 = vector.multi_reduction <add>, %99, %cst_38 [1] : vector<2x2xf32> to vector<2xf32>
    %101 = vector.shape_cast %100 : vector<2xf32> to vector<2x1xf32>
    %102 = vector.broadcast %101 : vector<2x1xf32> to vector<2x2xf32>
    %103 = arith.divf %99, %102 : vector<2x2xf32>
    %104 = vector.extract_strided_slice %103 {offsets = [0, 0], sizes = [2, 1], strides = [1, 1]} : vector<2x2xf32> to vector<2x1xf32>
    %105 = vector.shape_cast %104 : vector<2x1xf32> to vector<2x1x1xf32>
    %c2 = arith.constant 2 : index
    %c0_39 = arith.constant 0 : index
    %c0_40 = arith.constant 0 : index
    %c0_41 = arith.constant 0 : index
    %106 = vector.load %arg8[%c2, %c0_39, %c0_40, %c0_41] : memref<4x2x32x32xf32, #tpu.memory_space<vmem>>, vector<1x1x32x32xf32>
    %107 = vector.shape_cast %106 : vector<1x1x32x32xf32> to vector<32x32xf32>
    %108 = vector.shape_cast %107 : vector<32x32xf32> to vector<1x32x32xf32>
    %109 = vector.broadcast %105 : vector<2x1x1xf32> to vector<2x32x32xf32>
    %110 = vector.broadcast %108 : vector<1x32x32xf32> to vector<2x32x32xf32>
    %111 = arith.mulf %109, %110 : vector<2x32x32xf32>
    %112 = vector.extract_strided_slice %103 {offsets = [0, 1], sizes = [2, 1], strides = [1, 1]} : vector<2x2xf32> to vector<2x1xf32>
    %113 = vector.shape_cast %112 : vector<2x1xf32> to vector<2x1x1xf32>
    %c2_42 = arith.constant 2 : index
    %c1_43 = arith.constant 1 : index
    %c0_44 = arith.constant 0 : index
    %c0_45 = arith.constant 0 : index
    %114 = vector.load %arg8[%c2_42, %c1_43, %c0_44, %c0_45] : memref<4x2x32x32xf32, #tpu.memory_space<vmem>>, vector<1x1x32x32xf32>
    %115 = vector.shape_cast %114 : vector<1x1x32x32xf32> to vector<32x32xf32>
    %116 = vector.shape_cast %115 : vector<32x32xf32> to vector<1x32x32xf32>
    %117 = vector.broadcast %113 : vector<2x1x1xf32> to vector<2x32x32xf32>
    %118 = vector.broadcast %116 : vector<1x32x32xf32> to vector<2x32x32xf32>
    %119 = arith.mulf %117, %118 : vector<2x32x32xf32>
    %120 = arith.addf %111, %119 : vector<2x32x32xf32>
    %121 = vector.extract_strided_slice %5 {offsets = [0, 64], sizes = [2, 32], strides = [1, 1]} : vector<2x128xf32> to vector<2x32xf32>
    %122 = vector.shape_cast %121 : vector<2x32xf32> to vector<2x1x32xf32>
    %cst_46 = arith.constant 1.000000e+00 : f32
    %123 = vector.broadcast %cst_46 : f32 to vector<2x1x32xf32>
    %124 = arith.addf %122, %123 : vector<2x1x32xf32>
    %125 = vector.broadcast %124 : vector<2x1x32xf32> to vector<2x32x32xf32>
    %126 = arith.mulf %120, %125 : vector<2x32x32xf32>
    %127 = arith.mulf %126, %126 : vector<2x32x32xf32>
    %cst_47 = arith.constant dense<0.000000e+00> : vector<2x32xf32>
    %128 = vector.multi_reduction <add>, %127, %cst_47 [2] : vector<2x32x32xf32> to vector<2x32xf32>
    %129 = vector.shape_cast %128 : vector<2x32xf32> to vector<2x32x1xf32>
    %cst_48 = arith.constant 9.99999993E-9 : f32
    %130 = vector.broadcast %cst_48 : f32 to vector<2x32x1xf32>
    %131 = arith.maximumf %129, %130 : vector<2x32x1xf32>
    %132 = math.rsqrt %131 : vector<2x32x1xf32>
    %133 = vector.broadcast %132 : vector<2x32x1xf32> to vector<2x32x32xf32>
    %134 = arith.mulf %126, %133 : vector<2x32x32xf32>
    %135 = vector.extract_strided_slice %11 {offsets = [0, 6], sizes = [2, 2], strides = [1, 1]} : vector<2x8xf32> to vector<2x2xf32>
    %cst_49 = arith.constant dense<0xFF800000> : vector<2xf32>
    %136 = vector.multi_reduction <maximumf>, %135, %cst_49 [1] : vector<2x2xf32> to vector<2xf32>
    %137 = vector.shape_cast %136 : vector<2xf32> to vector<2x1xf32>
    %138 = vector.broadcast %137 : vector<2x1xf32> to vector<2x2xf32>
    %139 = arith.subf %135, %138 : vector<2x2xf32>
    %140 = math.exp %139 : vector<2x2xf32>
    %cst_50 = arith.constant dense<0.000000e+00> : vector<2xf32>
    %141 = vector.multi_reduction <add>, %140, %cst_50 [1] : vector<2x2xf32> to vector<2xf32>
    %142 = vector.shape_cast %141 : vector<2xf32> to vector<2x1xf32>
    %143 = vector.broadcast %142 : vector<2x1xf32> to vector<2x2xf32>
    %144 = arith.divf %140, %143 : vector<2x2xf32>
    %145 = vector.extract_strided_slice %144 {offsets = [0, 0], sizes = [2, 1], strides = [1, 1]} : vector<2x2xf32> to vector<2x1xf32>
    %146 = vector.shape_cast %145 : vector<2x1xf32> to vector<2x1x1xf32>
    %c3 = arith.constant 3 : index
    %c0_51 = arith.constant 0 : index
    %c0_52 = arith.constant 0 : index
    %c0_53 = arith.constant 0 : index
    %147 = vector.load %arg8[%c3, %c0_51, %c0_52, %c0_53] : memref<4x2x32x32xf32, #tpu.memory_space<vmem>>, vector<1x1x32x32xf32>
    %148 = vector.shape_cast %147 : vector<1x1x32x32xf32> to vector<32x32xf32>
    %149 = vector.shape_cast %148 : vector<32x32xf32> to vector<1x32x32xf32>
    %150 = vector.broadcast %146 : vector<2x1x1xf32> to vector<2x32x32xf32>
    %151 = vector.broadcast %149 : vector<1x32x32xf32> to vector<2x32x32xf32>
    %152 = arith.mulf %150, %151 : vector<2x32x32xf32>
    %153 = vector.extract_strided_slice %144 {offsets = [0, 1], sizes = [2, 1], strides = [1, 1]} : vector<2x2xf32> to vector<2x1xf32>
    %154 = vector.shape_cast %153 : vector<2x1xf32> to vector<2x1x1xf32>
    %c3_54 = arith.constant 3 : index
    %c1_55 = arith.constant 1 : index
    %c0_56 = arith.constant 0 : index
    %c0_57 = arith.constant 0 : index
    %155 = vector.load %arg8[%c3_54, %c1_55, %c0_56, %c0_57] : memref<4x2x32x32xf32, #tpu.memory_space<vmem>>, vector<1x1x32x32xf32>
    %156 = vector.shape_cast %155 : vector<1x1x32x32xf32> to vector<32x32xf32>
    %157 = vector.shape_cast %156 : vector<32x32xf32> to vector<1x32x32xf32>
    %158 = vector.broadcast %154 : vector<2x1x1xf32> to vector<2x32x32xf32>
    %159 = vector.broadcast %157 : vector<1x32x32xf32> to vector<2x32x32xf32>
    %160 = arith.mulf %158, %159 : vector<2x32x32xf32>
    %161 = arith.addf %152, %160 : vector<2x32x32xf32>
    %162 = vector.extract_strided_slice %5 {offsets = [0, 96], sizes = [2, 32], strides = [1, 1]} : vector<2x128xf32> to vector<2x32xf32>
    %163 = vector.shape_cast %162 : vector<2x32xf32> to vector<2x1x32xf32>
    %cst_58 = arith.constant 1.000000e+00 : f32
    %164 = vector.broadcast %cst_58 : f32 to vector<2x1x32xf32>
    %165 = arith.addf %163, %164 : vector<2x1x32xf32>
    %166 = vector.broadcast %165 : vector<2x1x32xf32> to vector<2x32x32xf32>
    %167 = arith.mulf %161, %166 : vector<2x32x32xf32>
    %168 = arith.mulf %167, %167 : vector<2x32x32xf32>
    %cst_59 = arith.constant dense<0.000000e+00> : vector<2x32xf32>
    %169 = vector.multi_reduction <add>, %168, %cst_59 [2] : vector<2x32x32xf32> to vector<2x32xf32>
    %170 = vector.shape_cast %169 : vector<2x32xf32> to vector<2x32x1xf32>
    %cst_60 = arith.constant 9.99999993E-9 : f32
    %171 = vector.broadcast %cst_60 : f32 to vector<2x32x1xf32>
    %172 = arith.maximumf %170, %171 : vector<2x32x1xf32>
    %173 = math.rsqrt %172 : vector<2x32x1xf32>
    %174 = vector.broadcast %173 : vector<2x32x1xf32> to vector<2x32x32xf32>
    %175 = arith.mulf %167, %174 : vector<2x32x32xf32>
    %c0_61 = arith.constant 0 : index
    %c0_62 = arith.constant 0 : index
    %176 = vector.load %arg9[%c0_61, %c0_62] : memref<1x32xf32, #tpu.memory_space<vmem>>, vector<1x32xf32>
    %c0_63 = arith.constant 0 : index
    %c0_64 = arith.constant 0 : index
    %177 = vector.load %arg10[%c0_63, %c0_64] : memref<1x32xf32, #tpu.memory_space<vmem>>, vector<1x32xf32>
    %c0_65 = arith.constant 0 : index
    %c0_66 = arith.constant 0 : index
    %178 = vector.load %arg11[%c0_65, %c0_66] : memref<1x1xf32, #tpu.memory_space<vmem>>, vector<1x1xf32>
    %179 = vector.extract_strided_slice %175 {offsets = [0, 0, 0], sizes = [1, 32, 32], strides = [1, 1, 1]} : vector<2x32x32xf32> to vector<1x32x32xf32>
    %180 = vector.shape_cast %179 : vector<1x32x32xf32> to vector<32x32xf32>
    %cst_67 = arith.constant dense<0.000000e+00> : vector<1x32xf32>
    %181 = tpu.matmul %176, %180, %cst_67 {dimension_numbers = #tpu.dot_dimension_numbers<[1], [0], [0], [1], [0, 0, 1, 1], [], []>, precision = #tpu.contract_precision<fp32>} : vector<1x32xf32>, vector<32x32xf32>, vector<1x32xf32> -> vector<1x32xf32>
    %182 = vector.extract_strided_slice %134 {offsets = [0, 0, 0], sizes = [1, 32, 32], strides = [1, 1, 1]} : vector<2x32x32xf32> to vector<1x32x32xf32>
    %183 = vector.shape_cast %182 : vector<1x32x32xf32> to vector<32x32xf32>
    %cst_68 = arith.constant dense<0.000000e+00> : vector<1x32xf32>
    %184 = tpu.matmul %181, %183, %cst_68 {dimension_numbers = #tpu.dot_dimension_numbers<[1], [0], [0], [1], [0, 0, 1, 1], [], []>, precision = #tpu.contract_precision<fp32>} : vector<1x32xf32>, vector<32x32xf32>, vector<1x32xf32> -> vector<1x32xf32>
    %185 = vector.extract_strided_slice %93 {offsets = [0, 0, 0], sizes = [1, 32, 32], strides = [1, 1, 1]} : vector<2x32x32xf32> to vector<1x32x32xf32>
    %186 = vector.shape_cast %185 : vector<1x32x32xf32> to vector<32x32xf32>
    %cst_69 = arith.constant dense<0.000000e+00> : vector<1x32xf32>
    %187 = tpu.matmul %184, %186, %cst_69 {dimension_numbers = #tpu.dot_dimension_numbers<[1], [0], [0], [1], [0, 0, 1, 1], [], []>, precision = #tpu.contract_precision<fp32>} : vector<1x32xf32>, vector<32x32xf32>, vector<1x32xf32> -> vector<1x32xf32>
    %188 = vector.extract_strided_slice %52 {offsets = [0, 0, 0], sizes = [1, 32, 32], strides = [1, 1, 1]} : vector<2x32x32xf32> to vector<1x32x32xf32>
    %189 = vector.shape_cast %188 : vector<1x32x32xf32> to vector<32x32xf32>
    %cst_70 = arith.constant dense<0.000000e+00> : vector<1x32xf32>
    %190 = tpu.matmul %187, %189, %cst_70 {dimension_numbers = #tpu.dot_dimension_numbers<[1], [0], [0], [1], [0, 0, 1, 1], [], []>, precision = #tpu.contract_precision<fp32>} : vector<1x32xf32>, vector<32x32xf32>, vector<1x32xf32> -> vector<1x32xf32>
    %191 = arith.addf %190, %177 : vector<1x32xf32>
    %192 = arith.truncf %191 : vector<1x32xf32> to vector<1x32xbf16>
    %c0_71 = arith.constant 0 : index
    %c0_72 = arith.constant 0 : index
    %c0_73 = arith.constant 0 : index
    %193 = vector.load %arg1[%c0_71, %c0_72, %c0_73] : memref<2x32x256xbf16, #tpu.memory_space<vmem>>, vector<1x32x256xbf16>
    %194 = vector.shape_cast %193 : vector<1x32x256xbf16> to vector<32x256xbf16>
    %cst_74 = arith.constant dense<0.000000e+00> : vector<1x256xf32>
    %195 = tpu.matmul %192, %194, %cst_74 {dimension_numbers = #tpu.dot_dimension_numbers<[1], [0], [0], [1], [0, 0, 1, 1], [], []>} : vector<1x32xbf16>, vector<32x256xbf16>, vector<1x256xf32> -> vector<1x256xf32>
    %196 = vector.broadcast %178 : vector<1x1xf32> to vector<1x256xf32>
    %197 = arith.addf %195, %196 : vector<1x256xf32>
    %c0_75 = arith.constant 0 : index
    %c0_76 = arith.constant 0 : index
    %c0_77 = arith.constant 0 : index
    %198 = vector.load %arg12[%c0_75, %c0_76, %c0_77] : memref<2x1x256xf32, #tpu.memory_space<vmem>>, vector<1x1x256xf32>
    %199 = vector.shape_cast %198 : vector<1x1x256xf32> to vector<1x256xf32>
    %200 = vector.shape_cast %197 : vector<1x256xf32> to vector<1x1x256xf32>
    tpu.vector_store %arg12[%c0_75, %c0_76, %c0_77], %200 {strides = array<i32>} : memref<2x1x256xf32, #tpu.memory_space<vmem>>, vector<1x1x256xf32>,
    %201 = vector.extract_strided_slice %175 {offsets = [1, 0, 0], sizes = [1, 32, 32], strides = [1, 1, 1]} : vector<2x32x32xf32> to vector<1x32x32xf32>
    %202 = vector.shape_cast %201 : vector<1x32x32xf32> to vector<32x32xf32>
    %cst_78 = arith.constant dense<0.000000e+00> : vector<1x32xf32>
    %203 = tpu.matmul %176, %202, %cst_78 {dimension_numbers = #tpu.dot_dimension_numbers<[1], [0], [0], [1], [0, 0, 1, 1], [], []>, precision = #tpu.contract_precision<fp32>} : vector<1x32xf32>, vector<32x32xf32>, vector<1x32xf32> -> vector<1x32xf32>
    %204 = vector.extract_strided_slice %134 {offsets = [1, 0, 0], sizes = [1, 32, 32], strides = [1, 1, 1]} : vector<2x32x32xf32> to vector<1x32x32xf32>
    %205 = vector.shape_cast %204 : vector<1x32x32xf32> to vector<32x32xf32>
    %cst_79 = arith.constant dense<0.000000e+00> : vector<1x32xf32>
    %206 = tpu.matmul %203, %205, %cst_79 {dimension_numbers = #tpu.dot_dimension_numbers<[1], [0], [0], [1], [0, 0, 1, 1], [], []>, precision = #tpu.contract_precision<fp32>} : vector<1x32xf32>, vector<32x32xf32>, vector<1x32xf32> -> vector<1x32xf32>
    %207 = vector.extract_strided_slice %93 {offsets = [1, 0, 0], sizes = [1, 32, 32], strides = [1, 1, 1]} : vector<2x32x32xf32> to vector<1x32x32xf32>
    %208 = vector.shape_cast %207 : vector<1x32x32xf32> to vector<32x32xf32>
    %cst_80 = arith.constant dense<0.000000e+00> : vector<1x32xf32>
    %209 = tpu.matmul %206, %208, %cst_80 {dimension_numbers = #tpu.dot_dimension_numbers<[1], [0], [0], [1], [0, 0, 1, 1], [], []>, precision = #tpu.contract_precision<fp32>} : vector<1x32xf32>, vector<32x32xf32>, vector<1x32xf32> -> vector<1x32xf32>
    %210 = vector.extract_strided_slice %52 {offsets = [1, 0, 0], sizes = [1, 32, 32], strides = [1, 1, 1]} : vector<2x32x32xf32> to vector<1x32x32xf32>
    %211 = vector.shape_cast %210 : vector<1x32x32xf32> to vector<32x32xf32>
    %cst_81 = arith.constant dense<0.000000e+00> : vector<1x32xf32>
    %212 = tpu.matmul %209, %211, %cst_81 {dimension_numbers = #tpu.dot_dimension_numbers<[1], [0], [0], [1], [0, 0, 1, 1], [], []>, precision = #tpu.contract_precision<fp32>} : vector<1x32xf32>, vector<32x32xf32>, vector<1x32xf32> -> vector<1x32xf32>
    %213 = arith.addf %212, %177 : vector<1x32xf32>
    %214 = arith.truncf %213 : vector<1x32xf32> to vector<1x32xbf16>
    %c1_82 = arith.constant 1 : index
    %c0_83 = arith.constant 0 : index
    %c0_84 = arith.constant 0 : index
    %215 = vector.load %arg1[%c1_82, %c0_83, %c0_84] : memref<2x32x256xbf16, #tpu.memory_space<vmem>>, vector<1x32x256xbf16>
    %216 = vector.shape_cast %215 : vector<1x32x256xbf16> to vector<32x256xbf16>
    %cst_85 = arith.constant dense<0.000000e+00> : vector<1x256xf32>
    %217 = tpu.matmul %214, %216, %cst_85 {dimension_numbers = #tpu.dot_dimension_numbers<[1], [0], [0], [1], [0, 0, 1, 1], [], []>} : vector<1x32xbf16>, vector<32x256xbf16>, vector<1x256xf32> -> vector<1x256xf32>
    %218 = vector.broadcast %178 : vector<1x1xf32> to vector<1x256xf32>
    %219 = arith.addf %217, %218 : vector<1x256xf32>
    %c1_86 = arith.constant 1 : index
    %c0_87 = arith.constant 0 : index
    %c0_88 = arith.constant 0 : index
    %220 = vector.load %arg12[%c1_86, %c0_87, %c0_88] : memref<2x1x256xf32, #tpu.memory_space<vmem>>, vector<1x1x256xf32>
    %221 = vector.shape_cast %220 : vector<1x1x256xf32> to vector<1x256xf32>
    %222 = vector.shape_cast %219 : vector<1x256xf32> to vector<1x1x256xf32>
    tpu.vector_store %arg12[%c1_86, %c0_87, %c0_88], %222 {strides = array<i32>} : memref<2x1x256xf32, #tpu.memory_space<vmem>>, vector<1x1x256xf32>,
    return
  }
  func.func @transform_0(%arg0: i32) -> (i32, i32, i32) {
    %c0_i32 = arith.constant 0 : i32
    %c0_i32_0 = arith.constant 0 : i32
    %c0_i32_1 = arith.constant 0 : i32
    %c0_i32_2 = arith.constant 0 : i32
    return %c0_i32, %c0_i32_0, %c0_i32_1 : i32, i32, i32
  }
  func.func @transform_1(%arg0: i32) -> (i32, i32) {
    %c0_i32 = arith.constant 0 : i32
    %c0_i32_0 = arith.constant 0 : i32
    %c0_i32_1 = arith.constant 0 : i32
    return %c0_i32, %c0_i32_0 : i32, i32
  }
  func.func @transform_2(%arg0: i32) -> (i32, i32) {
    %c0_i32 = arith.constant 0 : i32
    %c0_i32_0 = arith.constant 0 : i32
    %c0_i32_1 = arith.constant 0 : i32
    return %c0_i32, %c0_i32_0 : i32, i32
  }
  func.func @transform_3(%arg0: i32) -> (i32, i32) {
    %c0_i32 = arith.constant 0 : i32
    %c0_i32_0 = arith.constant 0 : i32
    %c0_i32_1 = arith.constant 0 : i32
    return %c0_i32, %c0_i32_0 : i32, i32
  }
  func.func @transform_4(%arg0: i32) -> (i32, i32) {
    %c0_i32 = arith.constant 0 : i32
    %c0_i32_0 = arith.constant 0 : i32
    %c0_i32_1 = arith.constant 0 : i32
    return %c0_i32, %c0_i32_0 : i32, i32
  }
  func.func @transform_5(%arg0: i32) -> (i32, i32) {
    %c0_i32 = arith.constant 0 : i32
    %c0_i32_0 = arith.constant 0 : i32
    %c0_i32_1 = arith.constant 0 : i32
    return %c0_i32, %c0_i32_0 : i32, i32
  }
  func.func @transform_6(%arg0: i32) -> (i32, i32) {
    %c0_i32 = arith.constant 0 : i32
    %c0_i32_0 = arith.constant 0 : i32
    %c0_i32_1 = arith.constant 0 : i32
    return %c0_i32, %c0_i32_0 : i32, i32
  }
  func.func @transform_7(%arg0: i32) -> (i32, i32, i32, i32) {
    %c0_i32 = arith.constant 0 : i32
    %c0_i32_0 = arith.constant 0 : i32
    %c0_i32_1 = arith.constant 0 : i32
    %c0_i32_2 = arith.constant 0 : i32
    %c0_i32_3 = arith.constant 0 : i32
    return %c0_i32, %c0_i32_0, %c0_i32_1, %c0_i32_2 : i32, i32, i32, i32
  }
  func.func @transform_8(%arg0: i32) -> (i32, i32) {
    %c0_i32 = arith.constant 0 : i32
    %c0_i32_0 = arith.constant 0 : i32
    %c0_i32_1 = arith.constant 0 : i32
    return %c0_i32, %c0_i32_0 : i32, i32
  }
  func.func @transform_9(%arg0: i32) -> (i32, i32) {
    %c0_i32 = arith.constant 0 : i32
    %c0_i32_0 = arith.constant 0 : i32
    %c0_i32_1 = arith.constant 0 : i32
    return %c0_i32, %c0_i32_0 : i32, i32
  }
  func.func @transform_10(%arg0: i32) -> (i32, i32) {
    %c0_i32 = arith.constant 0 : i32
    %c0_i32_0 = arith.constant 0 : i32
    %c0_i32_1 = arith.constant 0 : i32
    return %c0_i32, %c0_i32_0 : i32, i32
  }
  func.func @transform_11(%arg0: i32) -> (i32, i32, i32) {
    %c0_i32 = arith.constant 0 : i32
    %c0_i32_0 = arith.constant 0 : i32
    %c0_i32_1 = arith.constant 0 : i32
    %c0_i32_2 = arith.constant 0 : i32
    return %c0_i32, %c0_i32_0, %c0_i32_1 : i32, i32, i32
  }
}

</mosaic_0001>

<llo_original>
// kernel: predictor_pallas.1
$region0: #{predictor_pallas.1}
  #allocation0 [shape = 'u32[]', space=smem, size = 0x4, offset = 0x4, fixed_abs, tag = 'smem constant byte address 0x4 - core index']
  #allocation1 [shape = 'u32[144,128]{1,0:T(1,128)}', space=vmem, size = 0x12000, scoped, tag = 'internal scratch']
  #allocation2 [shape = 'f32[1,1]{1,0:T(1,128)S(1)}', space=vmem, size = 0x200, scoped, tag = 'scoped memory for predictor_pallas.1']
  %s0 = inlined_call_operand.vmem [shape: bf16[2,32,256], index: 0, kind: input, shape index: {}]
  %s1 = inlined_call_operand.vmem [shape: f32[2,64], index: 1, kind: input, shape index: {}]
  %s2 = inlined_call_operand.vmem [shape: f32[2,64], index: 2, kind: input, shape index: {}]
  %s3 = inlined_call_operand.vmem [shape: f32[64,128], index: 3, kind: input, shape index: {}]
  %s4 = inlined_call_operand.vmem [shape: f32[1,128], index: 4, kind: input, shape index: {}]
  %s5 = inlined_call_operand.vmem [shape: f32[64,8], index: 5, kind: input, shape index: {}]
  %s6 = inlined_call_operand.vmem [shape: f32[1,8], index: 6, kind: input, shape index: {}]
  %s7 = inlined_call_operand.vmem [shape: f32[4,2,32,32], index: 7, kind: input, shape index: {}]
  %s8 = inlined_call_operand.vmem [shape: f32[1,32], index: 8, kind: input, shape index: {}]
  %s9 = inlined_call_operand.vmem [shape: f32[1,32], index: 9, kind: input, shape index: {}]
  %s10 = inlined_call_operand.<no memory space> [shape: f32[1,1], index: 10, kind: input, shape index: {}]
  %s11 = inlined_call_operand.vmem [shape: f32[2,1,256], index: 11, kind: output, shape index: {}]
  %s12 = sld [smem:[#allocation0]]
  $region54: #{predictor_pallas.1} parent=0
    _
  %s14 = ssub.s32 1, %s12
  %s15 = scalar_select 0, %s14, %s12
  %v16 = vstv %s10
  %17 = vst [vmem:[#allocation2] sm:$0x1] %v16
  // Predicated region
  $region2: #{predictor_pallas.1} parent=0 // pred_check
    _
  $region3: #{predictor_pallas.1} parent=0 // pred_check_branch
    %19 = sbr.rel (0) target = $region5
  $region4: #{predictor_pallas.1} parent=0 // pred_region
    _
  $region5: #{predictor_pallas.1} parent=0 // pred_fallthru
    _
  // Predicated region
  $region6: #{predictor_pallas.1} parent=0 // pred_check
    _
  $region7: #{predictor_pallas.1} parent=0 // pred_check_branch
    %21 = sbr.rel (0) target = $region9
  $region8: #{predictor_pallas.1} parent=0 // pred_region
    _
  $region9: #{predictor_pallas.1} parent=0 // pred_fallthru
    _
  // Predicated region
  $region10: #{predictor_pallas.1} parent=0 // pred_check
    _
  $region11: #{predictor_pallas.1} parent=0 // pred_check_branch
    %23 = sbr.rel (0) target = $region13
  $region12: #{predictor_pallas.1} parent=0 // pred_region
    _
  $region13: #{predictor_pallas.1} parent=0 // pred_fallthru
    _
  // Predicated region
  $region14: #{predictor_pallas.1} parent=0 // pred_check
    _
  $region15: #{predictor_pallas.1} parent=0 // pred_check_branch
    %25 = sbr.rel (0) target = $region17
  $region16: #{predictor_pallas.1} parent=0 // pred_region
    _
  $region17: #{predictor_pallas.1} parent=0 // pred_fallthru
    _
  // Predicated region
  $region18: #{predictor_pallas.1} parent=0 // pred_check
    _
  $region19: #{predictor_pallas.1} parent=0 // pred_check_branch
    %27 = sbr.rel (0) target = $region21
  $region20: #{predictor_pallas.1} parent=0 // pred_region
    _
  $region21: #{predictor_pallas.1} parent=0 // pred_fallthru
    _
  // Predicated region
  $region22: #{predictor_pallas.1} parent=0 // pred_check
    _
  $region23: #{predictor_pallas.1} parent=0 // pred_check_branch
    %29 = sbr.rel (0) target = $region25
  $region24: #{predictor_pallas.1} parent=0 // pred_region
    _
  $region25: #{predictor_pallas.1} parent=0 // pred_fallthru
    _
  // Predicated region
  $region26: #{predictor_pallas.1} parent=0 // pred_check
    _
  $region27: #{predictor_pallas.1} parent=0 // pred_check_branch
    %31 = sbr.rel (0) target = $region29
  $region28: #{predictor_pallas.1} parent=0 // pred_region
    _
  $region29: #{predictor_pallas.1} parent=0 // pred_fallthru
    _
  // Predicated region
  $region30: #{predictor_pallas.1} parent=0 // pred_check
    _
  $region31: #{predictor_pallas.1} parent=0 // pred_check_branch
    %33 = sbr.rel (0) target = $region33
  $region32: #{predictor_pallas.1} parent=0 // pred_region
    _
  $region33: #{predictor_pallas.1} parent=0 // pred_fallthru
    _
  // Predicated region
  $region34: #{predictor_pallas.1} parent=0 // pred_check
    _
  $region35: #{predictor_pallas.1} parent=0 // pred_check_branch
    %35 = sbr.rel (0) target = $region37
  $region36: #{predictor_pallas.1} parent=0 // pred_region
    _
  $region37: #{predictor_pallas.1} parent=0 // pred_fallthru
    _
  // Predicated region
  $region38: #{predictor_pallas.1} parent=0 // pred_check
    _
  $region39: #{predictor_pallas.1} parent=0 // pred_check_branch
    %37 = sbr.rel (0) target = $region41
  $region40: #{predictor_pallas.1} parent=0 // pred_region
    _
  $region41: #{predictor_pallas.1} parent=0 // pred_fallthru
    _
  // Predicated region
  $region42: #{predictor_pallas.1} parent=0 // pred_check
    _
  $region43: #{predictor_pallas.1} parent=0 // pred_check_branch
    %39 = sbr.rel (0) target = $region45
  $region44: #{predictor_pallas.1} parent=0 // pred_region
    _
  $region45: #{predictor_pallas.1} parent=0 // pred_fallthru
    _
  %v41 = vld [vmem:[%s1] sm:$0x3]
  %v42 = vld [vmem:[%s3] sm:$0xff]
  %v43 = vld [vmem:[%s3 + $0x8] sm:$0xff]
  %v44 = vld [vmem:[%s3 + $0x10] sm:$0xff]
  %v45 = vld [vmem:[%s3 + $0x18] sm:$0xff]
  %v46 = vld [vmem:[%s3 + $0x20] sm:$0xff]
  %v47 = vld [vmem:[%s3 + $0x28] sm:$0xff]
  %v48 = vld [vmem:[%s3 + $0x30] sm:$0xff]
  %v49 = vld [vmem:[%s3 + $0x38] sm:$0xff]
  %v50 = vld [vmem:[%s4] sm:$0x1]
  %v52 = vlaneseq
  %v53 = vshrl.u32 %v52, 7
  %v54 = vsub.s32 0, %v53
  %v55 = vrot.slane %v50, %v54
  %vm57 = vcmask 523264
  %v59 = vsel %vm57, %v41, 0
  %61 = vmatprep.subr.mxu0 0.0
  %62 = vmatpush1.msra.mxu0 0.0
  %63 = vmatprep.subr.mxu0 0.0
  %64 = vmatpush1.msra.mxu0 0.0
  %65 = vmatprep.subr.mxu0 0.0
  %66 = vmatpush1.msra.mxu0 0.0
  %67 = vmatprep.subr.mxu0 0.0
  %68 = vmatpush1.msra.mxu0 0.0
  %69 = vmatprep.subr.mxu0 0.0
  %70 = vmatpush1.msra.mxu0 0.0
  %71 = vmatprep.subr.mxu0 0.0
  %72 = vmatpush1.msra.mxu0 0.0
  %73 = vmatprep.subr.mxu0 0.0
  %74 = vmatpush1.msra.mxu0 0.0
  %75 = vmatprep.subr.mxu0 0.0
  %76 = vmatpush1.msra.mxu0 0.0
  %77 = vmatprep.subr.mxu0 0.0
  %78 = vmatpush1.msra.mxu0 %v49
  %79 = vmatprep.subr.mxu0 0.0
  %80 = vmatpush1.msra.mxu0 %v48
  %81 = vmatprep.subr.mxu0 0.0
  %82 = vmatpush1.msra.mxu0 %v47
  %83 = vmatprep.subr.mxu0 0.0
  %84 = vmatpush1.msra.mxu0 %v46
  %85 = vmatprep.subr.mxu0 0.0
  %86 = vmatpush1.msra.mxu0 %v45
  %87 = vmatprep.subr.mxu0 0.0
  %88 = vmatpush1.msra.mxu0 %v44
  %89 = vmatprep.subr.mxu0 0.0
  %90 = vmatpush1.msra.mxu0 %v43
  %91 = vmatprep.subr.mxu0 0.0
  %92 = vmatpush1.msra.mxu0 %v42
  %93 = vmatprep.subr.mxu0 0.0
  %94 = vmatpush2.msra.mxu0 0.0
  %95 = vmatprep.subr.mxu0 0.0
  %96 = vmatpush2.msra.mxu0 0.0
  %97 = vmatprep.subr.mxu0 0.0
  %98 = vmatpush2.msra.mxu0 0.0
  %99 = vmatprep.subr.mxu0 0.0
  %100 = vmatpush2.msra.mxu0 0.0
  %101 = vmatprep.subr.mxu0 0.0
  %102 = vmatpush2.msra.mxu0 0.0
  %103 = vmatprep.subr.mxu0 0.0
  %104 = vmatpush2.msra.mxu0 0.0
  %105 = vmatprep.subr.mxu0 0.0
  %106 = vmatpush2.msra.mxu0 0.0
  %107 = vmatprep.subr.mxu0 0.0
  %108 = vmatpush2.msra.mxu0 0.0
  %109 = vmatprep.subr.mxu0 0.0
  %110 = vmatpush2.msra.mxu0 0.0
  %111 = vmatprep.subr.mxu0 0.0
  %112 = vmatpush2.msra.mxu0 0.0
  %113 = vmatprep.subr.mxu0 0.0
  %114 = vmatpush2.msra.mxu0 0.0
  %115 = vmatprep.subr.mxu0 0.0
  %116 = vmatpush2.msra.mxu0 0.0
  %117 = vmatprep.subr.mxu0 0.0
  %118 = vmatpush2.msra.mxu0 0.0
  %119 = vmatprep.subr.mxu0 0.0
  %120 = vmatpush2.msra.mxu0 0.0
  %121 = vmatprep.subr.mxu0 0.0
  %122 = vmatpush2.msra.mxu0 0.0
  %123 = vmatprep.subr.mxu0 0.0
  %124 = vmatpush2.msra.mxu0 0.0
  %125 = vmatprep.mubr.f32.mxu0 0.0
  %126 = vmatmul.mubr.f32.gmra.mxu0 %v59
  %v127 = vpop.f32.mrf.mxu0
  %v128 = vadd.f32 %v55, %v127
  %v129 = vpop.f32.mrf.mxu0
  %130 = vdwg.mxu0
  %v131 = vld [vmem:[%s2] sm:$0x3]
  %v132 = vld [vmem:[%s5] sm:$0xff]
  %v133 = vld [vmem:[%s5 + $0x8] sm:$0xff]
  %v134 = vld [vmem:[%s5 + $0x10] sm:$0xff]
  %v135 = vld [vmem:[%s5 + $0x18] sm:$0xff]
  %v136 = vld [vmem:[%s5 + $0x20] sm:$0xff]
  %v137 = vld [vmem:[%s5 + $0x28] sm:$0xff]
  %v138 = vld [vmem:[%s5 + $0x30] sm:$0xff]
  %v139 = vld [vmem:[%s5 + $0x38] sm:$0xff]
  %v140 = vld [vmem:[%s6] sm:$0x1]
  %v142 = vlaneseq
  %v143 = vshrl.u32 %v142, 7
  %v144 = vsub.s32 0, %v143
  %v145 = vrot.slane %v140, %v144
  %v148 = vsel %vm57, %v131, 0
  %150 = vmatprep.subr.mxu0 0.0
  %151 = vmatpush1.msra.mxu0 0.0
  %152 = vmatprep.subr.mxu0 0.0
  %153 = vmatpush1.msra.mxu0 0.0
  %154 = vmatprep.subr.mxu0 0.0
  %155 = vmatpush1.msra.mxu0 0.0
  %156 = vmatprep.subr.mxu0 0.0
  %157 = vmatpush1.msra.mxu0 0.0
  %158 = vmatprep.subr.mxu0 0.0
  %159 = vmatpush1.msra.mxu0 0.0
  %160 = vmatprep.subr.mxu0 0.0
  %161 = vmatpush1.msra.mxu0 0.0
  %162 = vmatprep.subr.mxu0 0.0
  %163 = vmatpush1.msra.mxu0 0.0
  %164 = vmatprep.subr.mxu0 0.0
  %165 = vmatpush1.msra.mxu0 0.0
  %166 = vmatprep.subr.mxu0 0.0
  %167 = vmatpush1.msra.mxu0 %v139
  %168 = vmatprep.subr.mxu0 0.0
  %169 = vmatpush1.msra.mxu0 %v138
  %170 = vmatprep.subr.mxu0 0.0
  %171 = vmatpush1.msra.mxu0 %v137
  %172 = vmatprep.subr.mxu0 0.0
  %173 = vmatpush1.msra.mxu0 %v136
  %174 = vmatprep.subr.mxu0 0.0
  %175 = vmatpush1.msra.mxu0 %v135
  %176 = vmatprep.subr.mxu0 0.0
  %177 = vmatpush1.msra.mxu0 %v134
  %178 = vmatprep.subr.mxu0 0.0
  %179 = vmatpush1.msra.mxu0 %v133
  %180 = vmatprep.subr.mxu0 0.0
  %181 = vmatpush1.msra.mxu0 %v132
  %182 = vmatprep.subr.mxu0 0.0
  %183 = vmatpush2.msra.mxu0 0.0
  %184 = vmatprep.subr.mxu0 0.0
  %185 = vmatpush2.msra.mxu0 0.0
  %186 = vmatprep.subr.mxu0 0.0
  %187 = vmatpush2.msra.mxu0 0.0
  %188 = vmatprep.subr.mxu0 0.0
  %189 = vmatpush2.msra.mxu0 0.0
  %190 = vmatprep.subr.mxu0 0.0
  %191 = vmatpush2.msra.mxu0 0.0
  %192 = vmatprep.subr.mxu0 0.0
  %193 = vmatpush2.msra.mxu0 0.0
  %194 = vmatprep.subr.mxu0 0.0
  %195 = vmatpush2.msra.mxu0 0.0
  %196 = vmatprep.subr.mxu0 0.0
  %197 = vmatpush2.msra.mxu0 0.0
  %198 = vmatprep.subr.mxu0 0.0
  %199 = vmatpush2.msra.mxu0 0.0
  %200 = vmatprep.subr.mxu0 0.0
  %201 = vmatpush2.msra.mxu0 0.0
  %202 = vmatprep.subr.mxu0 0.0
  %203 = vmatpush2.msra.mxu0 0.0
  %204 = vmatprep.subr.mxu0 0.0
  %205 = vmatpush2.msra.mxu0 0.0
  %206 = vmatprep.subr.mxu0 0.0
  %207 = vmatpush2.msra.mxu0 0.0
  %208 = vmatprep.subr.mxu0 0.0
  %209 = vmatpush2.msra.mxu0 0.0
  %210 = vmatprep.subr.mxu0 0.0
  %211 = vmatpush2.msra.mxu0 0.0
  %212 = vmatprep.subr.mxu0 0.0
  %213 = vmatpush2.msra.mxu0 0.0
  %214 = vmatprep.mubr.f32.mxu0 0.0
  %215 = vmatmul.mubr.f32.gmra.mxu0 %v148
  %v216 = vpop.f32.mrf.mxu0
  %v217 = vadd.f32 %v145, %v216
  %v218 = vpop.f32.mrf.mxu0
  %219 = vdwg.mxu0
  %vm220 = vcmask 9216
  %v221 = vsel %vm220, %v217, -inf
  %222 = vmax.xlane.f32.xlu0 %v221
  %v223 = vpop.xlane.xlu0 %222
  %v224 = vsub.f32 %v217, %v223
  %v225 = vmul.f32 %v224, 1.442695
  %v226 = vpow.pop %v225
  %v227 = vsel %vm220, %v226, 0.0
  %228 = vadd.xlane.f32.xlu0 %v227
  %v229 = vpop.xlane.xlu0 %228
  %v230 = vrcp.pop %v229
  %v231 = vmul.f32 %v226, %v230
  %v234 = vunpack.c.l.s4 1966171168
  %v235 = vunpack.c.0.s8 %v234
  %v236 = vlaneseq
  %v237 = vshrl.u32 %v236, 7
  %v238 = vsub.s32 %v235, %v237
  %v239 = vrot.slane %v231, %v238
  %v240 = vcombine.high %v239, %v239
  %v242 = vunpack.c.l.s4 1966171168
  %v243 = vunpack.c.0.s8 %v242
  %v244 = vlaneseq
  %v245 = vshrl.u32 %v244, 7
  %v246 = vsub.s32 %v243, %v245
  %v247 = vrot.slane %v239, %v246
  %v249 = vunpack.c.l.s4 1966171168
  %v250 = vunpack.c.0.s8 %v249
  %v251 = vlaneseq
  %v252 = vshrl.u32 %v251, 7
  %v253 = vsub.s32 %v250, %v252
  %v254 = vrot.slane %v240, %v253
  %v255 = vld [vmem:[%s7] sm:$0xff]
  %v256 = vld [vmem:[%s7 + $0x8] sm:$0xff]
  %v257 = vld [vmem:[%s7 + $0x10] sm:$0xff]
  %v258 = vld [vmem:[%s7 + $0x18] sm:$0xff]
  %v259 = vlaneseq
  %v260 = vshrl.u32 %v259, 7
  %v261 = vsub.s32 0, %v260
  %v262 = vrot.slane %v247, %v261
  %v263 = vlaneseq
  %v264 = vshrl.u32 %v263, 7
  %v265 = vsub.s32 0, %v264
  %v266 = vrot.slane %v254, %v265
  %267 = vset.pattern.permute.xlu0 0
  %268 = vperm.xlu0 %267, %v262
  %v269 = vpop.permute.xlu0 %268
  %271 = vset.pattern.permute.xlu0 0
  %272 = vperm.xlu0 %271, %v266
  %v273 = vpop.permute.xlu0 %272
  %v275 = vmul.f32 %v269, %v255
  %v276 = vmul.f32 %v269, %v256
  %v277 = vmul.f32 %v269, %v257
  %v278 = vmul.f32 %v269, %v258
  %v279 = vmul.f32 %v273, %v255
  %v280 = vmul.f32 %v273, %v256
  %v281 = vmul.f32 %v273, %v257
  %v282 = vmul.f32 %v273, %v258
  %s283 = scalar_lea.vmem %s7, 32
  %v284 = vld [vmem:[%s283] sm:$0xff]
  %v285 = vld [vmem:[%s283 + $0x8] sm:$0xff]
  %v286 = vld [vmem:[%s283 + $0x10] sm:$0xff]
  %v287 = vld [vmem:[%s283 + $0x18] sm:$0xff]
  %288 = vset.pattern.permute.xlu0 1
  %289 = vperm.xlu0 %288, %v262
  %v290 = vpop.permute.xlu0 %289
  %292 = vset.pattern.permute.xlu0 1
  %293 = vperm.xlu0 %292, %v266
  %v294 = vpop.permute.xlu0 %293
  %v296 = vmul.f32 %v290, %v284
  %v297 = vmul.f32 %v290, %v285
  %v298 = vmul.f32 %v290, %v286
  %v299 = vmul.f32 %v290, %v287
  %v300 = vmul.f32 %v294, %v284
  %v301 = vmul.f32 %v294, %v285
  %v302 = vmul.f32 %v294, %v286
  %v303 = vmul.f32 %v294, %v287
  %v304 = vadd.f32 %v275, %v296
  %v305 = vadd.f32 %v276, %v297
  %v306 = vadd.f32 %v277, %v298
  %v307 = vadd.f32 %v278, %v299
  %v308 = vadd.f32 %v279, %v300
  %v309 = vadd.f32 %v280, %v301
  %v310 = vadd.f32 %v281, %v302
  %v311 = vadd.f32 %v282, %v303
  %v314 = vunpack.c.l.s4 1966171168
  %v315 = vunpack.c.0.s8 %v314
  %v316 = vlaneseq
  %v317 = vshrl.u32 %v316, 7
  %v318 = vsub.s32 %v315, %v317
  %v319 = vrot.slane %v128, %v318
  %v320 = vcombine.high %v319, %v319
  %v322 = vunpack.c.l.s4 1966171168
  %v323 = vunpack.c.0.s8 %v322
  %v324 = vlaneseq
  %v325 = vshrl.u32 %v324, 7
  %v326 = vsub.s32 %v323, %v325
  %v327 = vrot.slane %v319, %v326
  %v329 = vunpack.c.l.s4 1966171168
  %v330 = vunpack.c.0.s8 %v329
  %v331 = vlaneseq
  %v332 = vshrl.u32 %v331, 7
  %v333 = vsub.s32 %v330, %v332
  %v334 = vrot.slane %v320, %v333
  %v337 = vadd.f32 %v327, 1.0
  %v338 = vadd.f32 %v334, 1.0
  %v341 = vlaneseq
  %v342 = vshrl.u32 %v341, 7
  %v343 = vsub.s32 0, %v342
  %v344 = vrot.slane %v337, %v343
  %v345 = vlaneseq
  %v346 = vshrl.u32 %v345, 7
  %v347 = vsub.s32 0, %v346
  %v348 = vrot.slane %v338, %v347
  %v351 = vmul.f32 %v304, %v344
  %v352 = vmul.f32 %v305, %v344
  %v353 = vmul.f32 %v306, %v344
  %v354 = vmul.f32 %v307, %v344
  %v355 = vmul.f32 %v308, %v348
  %v356 = vmul.f32 %v309, %v348
  %v357 = vmul.f32 %v310, %v348
  %v358 = vmul.f32 %v311, %v348
  %v359 = vmul.f32 %v351, %v351
  %v360 = vmul.f32 %v352, %v352
  %v361 = vmul.f32 %v353, %v353
  %v362 = vmul.f32 %v354, %v354
  %v363 = vmul.f32 %v355, %v355
  %v364 = vmul.f32 %v356, %v356
  %v365 = vmul.f32 %v357, %v357
  %v366 = vmul.f32 %v358, %v358
  %vm367 = vcmask 261120
  %v368 = vsel %vm367, %v359, 0.0
  %369 = vadd.xlane.f32.xlu0 %v368
  %v370 = vpop.xlane.xlu0 %369
  %v371 = vsel %vm367, %v360, 0.0
  %372 = vadd.xlane.f32.xlu0 %v371
  %v373 = vpop.xlane.xlu0 %372
  %v374 = vsel %vm367, %v361, 0.0
  %375 = vadd.xlane.f32.xlu0 %v374
  %v376 = vpop.xlane.xlu0 %375
  %v377 = vsel %vm367, %v362, 0.0
  %378 = vadd.xlane.f32.xlu0 %v377
  %v379 = vpop.xlane.xlu0 %378
  %v380 = vsel %vm367, %v363, 0.0
  %381 = vadd.xlane.f32.xlu0 %v380
  %v382 = vpop.xlane.xlu0 %381
  %v383 = vsel %vm367, %v364, 0.0
  %384 = vadd.xlane.f32.xlu0 %v383
  %v385 = vpop.xlane.xlu0 %384
  %v386 = vsel %vm367, %v365, 0.0
  %387 = vadd.xlane.f32.xlu0 %v386
  %v388 = vpop.xlane.xlu0 %387
  %v389 = vsel %vm367, %v366, 0.0
  %390 = vadd.xlane.f32.xlu0 %v389
  %v391 = vpop.xlane.xlu0 %390
  %v392 = vmax.f32 %v370, 1e-08
  %v393 = vmax.f32 %v373, 1e-08
  %v394 = vmax.f32 %v376, 1e-08
  %v395 = vmax.f32 %v379, 1e-08
  %v396 = vmax.f32 %v382, 1e-08
  %v397 = vmax.f32 %v385, 1e-08
  %v398 = vmax.f32 %v388, 1e-08
  %v399 = vmax.f32 %v391, 1e-08
  %v400 = vrsqrt.pop %v392
  %v401 = vrsqrt.pop %v393
  %v402 = vrsqrt.pop %v394
  %v403 = vrsqrt.pop %v395
  %v404 = vrsqrt.pop %v396
  %v405 = vrsqrt.pop %v397
  %v406 = vrsqrt.pop %v398
  %v407 = vrsqrt.pop %v399
  %v408 = vmul.f32 %v351, %v400
  %v409 = vmul.f32 %v352, %v401
  %v410 = vmul.f32 %v353, %v402
  %v411 = vmul.f32 %v354, %v403
  %v412 = vmul.f32 %v355, %v404
  %v413 = vmul.f32 %v356, %v405
  %v414 = vmul.f32 %v357, %v406
  %v415 = vmul.f32 %v358, %v407
  %vm416 = vcmask 25616
  %v417 = vsel %vm416, %v217, -inf
  %418 = vmax.xlane.f32.xlu0 %v417
  %v419 = vpop.xlane.xlu0 %418
  %v420 = vsub.f32 %v217, %v419
  %v421 = vmul.f32 %v420, 1.442695
  %v422 = vpow.pop %v421
  %424 = vrot.lane.b32.xlu0 %v422, 126
  %v425 = vpop.permute.xlu0 %424
  %v427 = vsel %vm220, %v425, 0.0
  %428 = vadd.xlane.f32.xlu0 %v427
  %v429 = vpop.xlane.xlu0 %428
  %v430 = vrcp.pop %v429
  %v431 = vmul.f32 %v422, %v430
  %v434 = vunpack.c.l.s4 1966171168
  %v435 = vunpack.c.0.s8 %v434
  %v436 = vlaneseq
  %v437 = vshrl.u32 %v436, 7
  %v438 = vsub.s32 %v435, %v437
  %v439 = vrot.slane %v431, %v438
  %v440 = vcombine.high %v439, %v439
  %v442 = vunpack.c.l.s4 1966171168
  %v443 = vunpack.c.0.s8 %v442
  %v444 = vlaneseq
  %v445 = vshrl.u32 %v444, 7
  %v446 = vsub.s32 %v443, %v445
  %v447 = vrot.slane %v439, %v446
  %v449 = vunpack.c.l.s4 1966171168
  %v450 = vunpack.c.0.s8 %v449
  %v451 = vlaneseq
  %v452 = vshrl.u32 %v451, 7
  %v453 = vsub.s32 %v450, %v452
  %v454 = vrot.slane %v440, %v453
  %s455 = scalar_lea.vmem %s7, 64
  %v456 = vld [vmem:[%s455] sm:$0xff]
  %v457 = vld [vmem:[%s455 + $0x8] sm:$0xff]
  %v458 = vld [vmem:[%s455 + $0x10] sm:$0xff]
  %v459 = vld [vmem:[%s455 + $0x18] sm:$0xff]
  %v460 = vlaneseq
  %v461 = vshrl.u32 %v460, 7
  %v462 = vsub.s32 0, %v461
  %v463 = vrot.slane %v447, %v462
  %v464 = vlaneseq
  %v465 = vshrl.u32 %v464, 7
  %v466 = vsub.s32 0, %v465
  %v467 = vrot.slane %v454, %v466
  %468 = vset.pattern.permute.xlu0 2
  %469 = vperm.xlu0 %468, %v463
  %v470 = vpop.permute.xlu0 %469
  %472 = vset.pattern.permute.xlu0 2
  %473 = vperm.xlu0 %472, %v467
  %v474 = vpop.permute.xlu0 %473
  %v476 = vmul.f32 %v470, %v456
  %v477 = vmul.f32 %v470, %v457
  %v478 = vmul.f32 %v470, %v458
  %v479 = vmul.f32 %v470, %v459
  %v480 = vmul.f32 %v474, %v456
  %v481 = vmul.f32 %v474, %v457
  %v482 = vmul.f32 %v474, %v458
  %v483 = vmul.f32 %v474, %v459
  %s484 = scalar_lea.vmem %s7, 96
  %v485 = vld [vmem:[%s484] sm:$0xff]
  %v486 = vld [vmem:[%s484 + $0x8] sm:$0xff]
  %v487 = vld [vmem:[%s484 + $0x10] sm:$0xff]
  %v488 = vld [vmem:[%s484 + $0x18] sm:$0xff]
  %489 = vset.pattern.permute.xlu0 3
  %490 = vperm.xlu0 %489, %v463
  %v491 = vpop.permute.xlu0 %490
  %493 = vset.pattern.permute.xlu0 3
  %494 = vperm.xlu0 %493, %v467
  %v495 = vpop.permute.xlu0 %494
  %v497 = vmul.f32 %v491, %v485
  %v498 = vmul.f32 %v491, %v486
  %v499 = vmul.f32 %v491, %v487
  %v500 = vmul.f32 %v491, %v488
  %v501 = vmul.f32 %v495, %v485
  %v502 = vmul.f32 %v495, %v486
  %v503 = vmul.f32 %v495, %v487
  %v504 = vmul.f32 %v495, %v488
  %v505 = vadd.f32 %v476, %v497
  %v506 = vadd.f32 %v477, %v498
  %v507 = vadd.f32 %v478, %v499
  %v508 = vadd.f32 %v479, %v500
  %v509 = vadd.f32 %v480, %v501
  %v510 = vadd.f32 %v481, %v502
  %v511 = vadd.f32 %v482, %v503
  %v512 = vadd.f32 %v483, %v504
  %513 = vrot.lane.b32.xlu0 %v344, 96
  %v514 = vpop.permute.xlu0 %513
  %515 = vrot.lane.b32.xlu0 %v348, 96
  %v516 = vpop.permute.xlu0 %515
  %v519 = vmul.f32 %v505, %v514
  %v520 = vmul.f32 %v506, %v514
  %v521 = vmul.f32 %v507, %v514
  %v522 = vmul.f32 %v508, %v514
  %v523 = vmul.f32 %v509, %v516
  %v524 = vmul.f32 %v510, %v516
  %v525 = vmul.f32 %v511, %v516
  %v526 = vmul.f32 %v512, %v516
  %v527 = vmul.f32 %v519, %v519
  %v528 = vmul.f32 %v520, %v520
  %v529 = vmul.f32 %v521, %v521
  %v530 = vmul.f32 %v522, %v522
  %v531 = vmul.f32 %v523, %v523
  %v532 = vmul.f32 %v524, %v524
  %v533 = vmul.f32 %v525, %v525
  %v534 = vmul.f32 %v526, %v526
  %v535 = vsel %vm367, %v527, 0.0
  %536 = vadd.xlane.f32.xlu0 %v535
  %v537 = vpop.xlane.xlu0 %536
  %v538 = vsel %vm367, %v528, 0.0
  %539 = vadd.xlane.f32.xlu0 %v538
  %v540 = vpop.xlane.xlu0 %539
  %v541 = vsel %vm367, %v529, 0.0
  %542 = vadd.xlane.f32.xlu0 %v541
  %v543 = vpop.xlane.xlu0 %542
  %v544 = vsel %vm367, %v530, 0.0
  %545 = vadd.xlane.f32.xlu0 %v544
  %v546 = vpop.xlane.xlu0 %545
  %v547 = vsel %vm367, %v531, 0.0
  %548 = vadd.xlane.f32.xlu0 %v547
  %v549 = vpop.xlane.xlu0 %548
  %v550 = vsel %vm367, %v532, 0.0
  %551 = vadd.xlane.f32.xlu0 %v550
  %v552 = vpop.xlane.xlu0 %551
  %v553 = vsel %vm367, %v533, 0.0
  %554 = vadd.xlane.f32.xlu0 %v553
  %v555 = vpop.xlane.xlu0 %554
  %v556 = vsel %vm367, %v534, 0.0
  %557 = vadd.xlane.f32.xlu0 %v556
  %v558 = vpop.xlane.xlu0 %557
  %v559 = vmax.f32 %v537, 1e-08
  %v560 = vmax.f32 %v540, 1e-08
  %v561 = vmax.f32 %v543, 1e-08
  %v562 = vmax.f32 %v546, 1e-08
  %v563 = vmax.f32 %v549, 1e-08
  %v564 = vmax.f32 %v552, 1e-08
  %v565 = vmax.f32 %v555, 1e-08
  %v566 = vmax.f32 %v558, 1e-08
  %v567 = vrsqrt.pop %v559
  %v568 = vrsqrt.pop %v560
  %v569 = vrsqrt.pop %v561
  %v570 = vrsqrt.pop %v562
  %v571 = vrsqrt.pop %v563
  %v572 = vrsqrt.pop %v564
  %v573 = vrsqrt.pop %v565
  %v574 = vrsqrt.pop %v566
  %v575 = vmul.f32 %v519, %v567
  %v576 = vmul.f32 %v520, %v568
  %v577 = vmul.f32 %v521, %v569
  %v578 = vmul.f32 %v522, %v570
  %v579 = vmul.f32 %v523, %v571
  %v580 = vmul.f32 %v524, %v572
  %v581 = vmul.f32 %v525, %v573
  %v582 = vmul.f32 %v526, %v574
  %vm583 = vcmask 42016
  %v584 = vsel %vm583, %v217, -inf
  %585 = vmax.xlane.f32.xlu0 %v584
  %v586 = vpop.xlane.xlu0 %585
  %v587 = vsub.f32 %v217, %v586
  %v588 = vmul.f32 %v587, 1.442695
  %v589 = vpow.pop %v588
  %591 = vrot.lane.b32.xlu0 %v589, 124
  %v592 = vpop.permute.xlu0 %591
  %v594 = vsel %vm220, %v592, 0.0
  %595 = vadd.xlane.f32.xlu0 %v594
  %v596 = vpop.xlane.xlu0 %595
  %v597 = vrcp.pop %v596
  %v598 = vmul.f32 %v589, %v597
  %v601 = vunpack.c.l.s4 1966171168
  %v602 = vunpack.c.0.s8 %v601
  %v603 = vlaneseq
  %v604 = vshrl.u32 %v603, 7
  %v605 = vsub.s32 %v602, %v604
  %v606 = vrot.slane %v598, %v605
  %v607 = vcombine.high %v606, %v606
  %v609 = vunpack.c.l.s4 1966171168
  %v610 = vunpack.c.0.s8 %v609
  %v611 = vlaneseq
  %v612 = vshrl.u32 %v611, 7
  %v613 = vsub.s32 %v610, %v612
  %v614 = vrot.slane %v606, %v613
  %v616 = vunpack.c.l.s4 1966171168
  %v617 = vunpack.c.0.s8 %v616
  %v618 = vlaneseq
  %v619 = vshrl.u32 %v618, 7
  %v620 = vsub.s32 %v617, %v619
  %v621 = vrot.slane %v607, %v620
  %s622 = scalar_lea.vmem %s7, 128
  %v623 = vld [vmem:[%s622] sm:$0xff]
  %v624 = vld [vmem:[%s622 + $0x8] sm:$0xff]
  %v625 = vld [vmem:[%s622 + $0x10] sm:$0xff]
  %v626 = vld [vmem:[%s622 + $0x18] sm:$0xff]
  %v627 = vlaneseq
  %v628 = vshrl.u32 %v627, 7
  %v629 = vsub.s32 0, %v628
  %v630 = vrot.slane %v614, %v629
  %v631 = vlaneseq
  %v632 = vshrl.u32 %v631, 7
  %v633 = vsub.s32 0, %v632
  %v634 = vrot.slane %v621, %v633
  %635 = vset.pattern.permute.xlu0 4
  %636 = vperm.xlu0 %635, %v630
  %v637 = vpop.permute.xlu0 %636
  %639 = vset.pattern.permute.xlu0 4
  %640 = vperm.xlu0 %639, %v634
  %v641 = vpop.permute.xlu0 %640
  %v643 = vmul.f32 %v637, %v623
  %v644 = vmul.f32 %v637, %v624
  %v645 = vmul.f32 %v637, %v625
  %v646 = vmul.f32 %v637, %v626
  %v647 = vmul.f32 %v641, %v623
  %v648 = vmul.f32 %v641, %v624
  %v649 = vmul.f32 %v641, %v625
  %v650 = vmul.f32 %v641, %v626
  %s651 = scalar_lea.vmem %s7, 160
  %v652 = vld [vmem:[%s651] sm:$0xff]
  %v653 = vld [vmem:[%s651 + $0x8] sm:$0xff]
  %v654 = vld [vmem:[%s651 + $0x10] sm:$0xff]
  %v655 = vld [vmem:[%s651 + $0x18] sm:$0xff]
  %656 = vset.pattern.permute.xlu0 5
  %657 = vperm.xlu0 %656, %v630
  %v658 = vpop.permute.xlu0 %657
  %660 = vset.pattern.permute.xlu0 5
  %661 = vperm.xlu0 %660, %v634
  %v662 = vpop.permute.xlu0 %661
  %v664 = vmul.f32 %v658, %v652
  %v665 = vmul.f32 %v658, %v653
  %v666 = vmul.f32 %v658, %v654
  %v667 = vmul.f32 %v658, %v655
  %v668 = vmul.f32 %v662, %v652
  %v669 = vmul.f32 %v662, %v653
  %v670 = vmul.f32 %v662, %v654
  %v671 = vmul.f32 %v662, %v655
  %v672 = vadd.f32 %v643, %v664
  %v673 = vadd.f32 %v644, %v665
  %v674 = vadd.f32 %v645, %v666
  %v675 = vadd.f32 %v646, %v667
  %v676 = vadd.f32 %v647, %v668
  %v677 = vadd.f32 %v648, %v669
  %v678 = vadd.f32 %v649, %v670
  %v679 = vadd.f32 %v650, %v671
  %680 = vrot.lane.b32.xlu0 %v344, 64
  %v681 = vpop.permute.xlu0 %680
  %682 = vrot.lane.b32.xlu0 %v348, 64
  %v683 = vpop.permute.xlu0 %682
  %v686 = vmul.f32 %v672, %v681
  %v687 = vmul.f32 %v673, %v681
  %v688 = vmul.f32 %v674, %v681
  %v689 = vmul.f32 %v675, %v681
  %v690 = vmul.f32 %v676, %v683
  %v691 = vmul.f32 %v677, %v683
  %v692 = vmul.f32 %v678, %v683
  %v693 = vmul.f32 %v679, %v683
  %v694 = vmul.f32 %v686, %v686
  %v695 = vmul.f32 %v687, %v687
  %v696 = vmul.f32 %v688, %v688
  %v697 = vmul.f32 %v689, %v689
  %v698 = vmul.f32 %v690, %v690
  %v699 = vmul.f32 %v691, %v691
  %v700 = vmul.f32 %v692, %v692
  %v701 = vmul.f32 %v693, %v693
  %v702 = vsel %vm367, %v694, 0.0
  %703 = vadd.xlane.f32.xlu0 %v702
  %v704 = vpop.xlane.xlu0 %703
  %v705 = vsel %vm367, %v695, 0.0
  %706 = vadd.xlane.f32.xlu0 %v705
  %v707 = vpop.xlane.xlu0 %706
  %v708 = vsel %vm367, %v696, 0.0
  %709 = vadd.xlane.f32.xlu0 %v708
  %v710 = vpop.xlane.xlu0 %709
  %v711 = vsel %vm367, %v697, 0.0
  %712 = vadd.xlane.f32.xlu0 %v711
  %v713 = vpop.xlane.xlu0 %712
  %v714 = vsel %vm367, %v698, 0.0
  %715 = vadd.xlane.f32.xlu0 %v714
  %v716 = vpop.xlane.xlu0 %715
  %v717 = vsel %vm367, %v699, 0.0
  %718 = vadd.xlane.f32.xlu0 %v717
  %v719 = vpop.xlane.xlu0 %718
  %v720 = vsel %vm367, %v700, 0.0
  %721 = vadd.xlane.f32.xlu0 %v720
  %v722 = vpop.xlane.xlu0 %721
  %v723 = vsel %vm367, %v701, 0.0
  %724 = vadd.xlane.f32.xlu0 %v723
  %v725 = vpop.xlane.xlu0 %724
  %v726 = vmax.f32 %v704, 1e-08
  %v727 = vmax.f32 %v707, 1e-08
  %v728 = vmax.f32 %v710, 1e-08
  %v729 = vmax.f32 %v713, 1e-08
  %v730 = vmax.f32 %v716, 1e-08
  %v731 = vmax.f32 %v719, 1e-08
  %v732 = vmax.f32 %v722, 1e-08
  %v733 = vmax.f32 %v725, 1e-08
  %v734 = vrsqrt.pop %v726
  %v735 = vrsqrt.pop %v727
  %v736 = vrsqrt.pop %v728
  %v737 = vrsqrt.pop %v729
  %v738 = vrsqrt.pop %v730
  %v739 = vrsqrt.pop %v731
  %v740 = vrsqrt.pop %v732
  %v741 = vrsqrt.pop %v733
  %v742 = vmul.f32 %v686, %v734
  %v743 = vmul.f32 %v687, %v735
  %v744 = vmul.f32 %v688, %v736
  %v745 = vmul.f32 %v689, %v737
  %v746 = vmul.f32 %v690, %v738
  %v747 = vmul.f32 %v691, %v739
  %v748 = vmul.f32 %v692, %v740
  %v749 = vmul.f32 %v693, %v741
  %vm750 = vcmask 58416
  %v751 = vsel %vm750, %v217, -inf
  %752 = vmax.xlane.f32.xlu0 %v751
  %v753 = vpop.xlane.xlu0 %752
  %v754 = vsub.f32 %v217, %v753
  %v755 = vmul.f32 %v754, 1.442695
  %v756 = vpow.pop %v755
  %758 = vrot.lane.b32.xlu0 %v756, 122
  %v759 = vpop.permute.xlu0 %758
  %v761 = vsel %vm220, %v759, 0.0
  %762 = vadd.xlane.f32.xlu0 %v761
  %v763 = vpop.xlane.xlu0 %762
  %v764 = vrcp.pop %v763
  %v765 = vmul.f32 %v756, %v764
  %v768 = vunpack.c.l.s4 1966171168
  %v769 = vunpack.c.0.s8 %v768
  %v770 = vlaneseq
  %v771 = vshrl.u32 %v770, 7
  %v772 = vsub.s32 %v769, %v771
  %v773 = vrot.slane %v765, %v772
  %v774 = vcombine.high %v773, %v773
  %v776 = vunpack.c.l.s4 1966171168
  %v777 = vunpack.c.0.s8 %v776
  %v778 = vlaneseq
  %v779 = vshrl.u32 %v778, 7
  %v780 = vsub.s32 %v777, %v779
  %v781 = vrot.slane %v773, %v780
  %v783 = vunpack.c.l.s4 1966171168
  %v784 = vunpack.c.0.s8 %v783
  %v785 = vlaneseq
  %v786 = vshrl.u32 %v785, 7
  %v787 = vsub.s32 %v784, %v786
  %v788 = vrot.slane %v774, %v787
  %s789 = scalar_lea.vmem %s7, 192
  %v790 = vld [vmem:[%s789] sm:$0xff]
  %v791 = vld [vmem:[%s789 + $0x8] sm:$0xff]
  %v792 = vld [vmem:[%s789 + $0x10] sm:$0xff]
  %v793 = vld [vmem:[%s789 + $0x18] sm:$0xff]
  %v794 = vlaneseq
  %v795 = vshrl.u32 %v794, 7
  %v796 = vsub.s32 0, %v795
  %v797 = vrot.slane %v781, %v796
  %v798 = vlaneseq
  %v799 = vshrl.u32 %v798, 7
  %v800 = vsub.s32 0, %v799
  %v801 = vrot.slane %v788, %v800
  %802 = vset.pattern.permute.xlu0 6
  %803 = vperm.xlu0 %802, %v797
  %v804 = vpop.permute.xlu0 %803
  %806 = vset.pattern.permute.xlu0 6
  %807 = vperm.xlu0 %806, %v801
  %v808 = vpop.permute.xlu0 %807
  %v810 = vmul.f32 %v804, %v790
  %v811 = vmul.f32 %v804, %v791
  %v812 = vmul.f32 %v804, %v792
  %v813 = vmul.f32 %v804, %v793
  %v814 = vmul.f32 %v808, %v790
  %v815 = vmul.f32 %v808, %v791
  %v816 = vmul.f32 %v808, %v792
  %v817 = vmul.f32 %v808, %v793
  %s818 = scalar_lea.vmem %s7, 224
  %v819 = vld [vmem:[%s818] sm:$0xff]
  %v820 = vld [vmem:[%s818 + $0x8] sm:$0xff]
  %v821 = vld [vmem:[%s818 + $0x10] sm:$0xff]
  %v822 = vld [vmem:[%s818 + $0x18] sm:$0xff]
  %823 = vset.pattern.permute.xlu0 7
  %824 = vperm.xlu0 %823, %v797
  %v825 = vpop.permute.xlu0 %824
  %827 = vset.pattern.permute.xlu0 7
  %828 = vperm.xlu0 %827, %v801
  %v829 = vpop.permute.xlu0 %828
  %v831 = vmul.f32 %v825, %v819
  %v832 = vmul.f32 %v825, %v820
  %v833 = vmul.f32 %v825, %v821
  %v834 = vmul.f32 %v825, %v822
  %v835 = vmul.f32 %v829, %v819
  %v836 = vmul.f32 %v829, %v820
  %v837 = vmul.f32 %v829, %v821
  %v838 = vmul.f32 %v829, %v822
  %v839 = vadd.f32 %v810, %v831
  %v840 = vadd.f32 %v811, %v832
  %v841 = vadd.f32 %v812, %v833
  %v842 = vadd.f32 %v813, %v834
  %v843 = vadd.f32 %v814, %v835
  %v844 = vadd.f32 %v815, %v836
  %v845 = vadd.f32 %v816, %v837
  %v846 = vadd.f32 %v817, %v838
  %847 = vrot.lane.b32.xlu0 %v344, 32
  %v848 = vpop.permute.xlu0 %847
  %849 = vrot.lane.b32.xlu0 %v348, 32
  %v850 = vpop.permute.xlu0 %849
  %v853 = vmul.f32 %v839, %v848
  %v854 = vmul.f32 %v840, %v848
  %v855 = vmul.f32 %v841, %v848
  %v856 = vmul.f32 %v842, %v848
  %v857 = vmul.f32 %v843, %v850
  %v858 = vmul.f32 %v844, %v850
  %v859 = vmul.f32 %v845, %v850
  %v860 = vmul.f32 %v846, %v850
  %v861 = vmul.f32 %v853, %v853
  %v862 = vmul.f32 %v854, %v854
  %v863 = vmul.f32 %v855, %v855
  %v864 = vmul.f32 %v856, %v856
  %v865 = vmul.f32 %v857, %v857
  %v866 = vmul.f32 %v858, %v858
  %v867 = vmul.f32 %v859, %v859
  %v868 = vmul.f32 %v860, %v860
  %v869 = vsel %vm367, %v861, 0.0
  %870 = vadd.xlane.f32.xlu0 %v869
  %v871 = vpop.xlane.xlu0 %870
  %v872 = vsel %vm367, %v862, 0.0
  %873 = vadd.xlane.f32.xlu0 %v872
  %v874 = vpop.xlane.xlu0 %873
  %v875 = vsel %vm367, %v863, 0.0
  %876 = vadd.xlane.f32.xlu0 %v875
  %v877 = vpop.xlane.xlu0 %876
  %v878 = vsel %vm367, %v864, 0.0
  %879 = vadd.xlane.f32.xlu0 %v878
  %v880 = vpop.xlane.xlu0 %879
  %v881 = vsel %vm367, %v865, 0.0
  %882 = vadd.xlane.f32.xlu0 %v881
  %v883 = vpop.xlane.xlu0 %882
  %v884 = vsel %vm367, %v866, 0.0
  %885 = vadd.xlane.f32.xlu0 %v884
  %v886 = vpop.xlane.xlu0 %885
  %v887 = vsel %vm367, %v867, 0.0
  %888 = vadd.xlane.f32.xlu0 %v887
  %v889 = vpop.xlane.xlu0 %888
  %v890 = vsel %vm367, %v868, 0.0
  %891 = vadd.xlane.f32.xlu0 %v890
  %v892 = vpop.xlane.xlu0 %891
  %v893 = vmax.f32 %v871, 1e-08
  %v894 = vmax.f32 %v874, 1e-08
  %v895 = vmax.f32 %v877, 1e-08
  %v896 = vmax.f32 %v880, 1e-08
  %v897 = vmax.f32 %v883, 1e-08
  %v898 = vmax.f32 %v886, 1e-08
  %v899 = vmax.f32 %v889, 1e-08
  %v900 = vmax.f32 %v892, 1e-08
  %v901 = vrsqrt.pop %v893
  %v902 = vrsqrt.pop %v894
  %v903 = vrsqrt.pop %v895
  %v904 = vrsqrt.pop %v896
  %v905 = vrsqrt.pop %v897
  %v906 = vrsqrt.pop %v898
  %v907 = vrsqrt.pop %v899
  %v908 = vrsqrt.pop %v900
  %v909 = vmul.f32 %v853, %v901
  %v910 = vmul.f32 %v854, %v902
  %v911 = vmul.f32 %v855, %v903
  %v912 = vmul.f32 %v856, %v904
  %v913 = vmul.f32 %v857, %v905
  %v914 = vmul.f32 %v858, %v906
  %v915 = vmul.f32 %v859, %v907
  %v916 = vmul.f32 %v860, %v908
  %v917 = vld [vmem:[%s8] sm:$0x1]
  %v918 = vld [vmem:[%s9] sm:$0x1]
  %v919 = vld [vmem:[#allocation2] sm:$0x1]
  %v921 = vsel %vm367, %v917, 0
  %923 = vmatprep.subr.mxu0 0.0
  %924 = vmatpush1.msra.mxu0 0.0
  %925 = vmatprep.subr.mxu0 0.0
  %926 = vmatpush1.msra.mxu0 0.0
  %927 = vmatprep.subr.mxu0 0.0
  %928 = vmatpush1.msra.mxu0 0.0
  %929 = vmatprep.subr.mxu0 0.0
  %930 = vmatpush1.msra.mxu0 0.0
  %931 = vmatprep.subr.mxu0 0.0
  %932 = vmatpush1.msra.mxu0 0.0
  %933 = vmatprep.subr.mxu0 0.0
  %934 = vmatpush1.msra.mxu0 0.0
  %935 = vmatprep.subr.mxu0 0.0
  %936 = vmatpush1.msra.mxu0 0.0
  %937 = vmatprep.subr.mxu0 0.0
  %938 = vmatpush1.msra.mxu0 0.0
  %939 = vmatprep.subr.mxu0 0.0
  %940 = vmatpush1.msra.mxu0 0.0
  %941 = vmatprep.subr.mxu0 0.0
  %942 = vmatpush1.msra.mxu0 0.0
  %943 = vmatprep.subr.mxu0 0.0
  %944 = vmatpush1.msra.mxu0 0.0
  %945 = vmatprep.subr.mxu0 0.0
  %946 = vmatpush1.msra.mxu0 0.0
  %947 = vmatprep.subr.mxu0 0.0
  %v948 = vand.u32 %v912, 4294901760
  %949 = vmatpush1.msra.mxu0 %v948
  %950 = vmatprep.subr.mxu0 0.0
  %v951 = vand.u32 %v911, 4294901760
  %952 = vmatpush1.msra.mxu0 %v951
  %953 = vmatprep.subr.mxu0 0.0
  %v954 = vand.u32 %v910, 4294901760
  %955 = vmatpush1.msra.mxu0 %v954
  %956 = vmatprep.subr.mxu0 0.0
  %v957 = vand.u32 %v909, 4294901760
  %958 = vmatpush1.msra.mxu0 %v957
  %959 = vmatprep.subr.mxu0 0.0
  %960 = vmatpush2.msra.mxu0 0.0
  %961 = vmatprep.subr.mxu0 0.0
  %962 = vmatpush2.msra.mxu0 0.0
  %963 = vmatprep.subr.mxu0 0.0
  %964 = vmatpush2.msra.mxu0 0.0
  %965 = vmatprep.subr.mxu0 0.0
  %966 = vmatpush2.msra.mxu0 0.0
  %967 = vmatprep.subr.mxu0 0.0
  %968 = vmatpush2.msra.mxu0 0.0
  %969 = vmatprep.subr.mxu0 0.0
  %970 = vmatpush2.msra.mxu0 0.0
  %971 = vmatprep.subr.mxu0 0.0
  %972 = vmatpush2.msra.mxu0 0.0
  %973 = vmatprep.subr.mxu0 0.0
  %974 = vmatpush2.msra.mxu0 0.0
  %975 = vmatprep.subr.mxu0 0.0
  %976 = vmatpush2.msra.mxu0 0.0
  %977 = vmatprep.subr.mxu0 0.0
  %978 = vmatpush2.msra.mxu0 0.0
  %979 = vmatprep.subr.mxu0 0.0
  %980 = vmatpush2.msra.mxu0 0.0
  %981 = vmatprep.subr.mxu0 0.0
  %982 = vmatpush2.msra.mxu0 0.0
  %983 = vmatprep.subr.mxu0 0.0
  %984 = vmatpush2.msra.mxu0 0.0
  %985 = vmatprep.subr.mxu0 0.0
  %986 = vmatpush2.msra.mxu0 0.0
  %987 = vmatprep.subr.mxu0 0.0
  %988 = vmatpush2.msra.mxu0 0.0
  %989 = vmatprep.subr.mxu0 0.0
  %990 = vmatpush2.msra.mxu0 0.0
  %991 = vmatprep.mubr.f32.mxu0 0.0
  %v992 = vand.u32 %v921, 4294901760
  %v993 = vsub.f32 %v921, %v992
  %v994 = vand.u32 %v993, 4294901760
  %v995 = vsub.f32 %v993, %v994
  %v996 = vand.u32 %v995, 4294901760
  %997 = vmatmul.mubr.f32.gmra.mxu0 %v996
  %v998 = vpop.f32.mrf.mxu0
  %v999 = vadd.f32 0.0, %v998
  %v1000 = vpop.f32.mrf.mxu0
  %1001 = vdwg.mxu0
  %1002 = vmatprep.subr.mxu0 0.0
  %1003 = vmatpush1.msra.mxu0 0.0
  %1004 = vmatprep.subr.mxu0 0.0
  %1005 = vmatpush1.msra.mxu0 0.0
  %1006 = vmatprep.subr.mxu0 0.0
  %1007 = vmatpush1.msra.mxu0 0.0
  %1008 = vmatprep.subr.mxu0 0.0
  %1009 = vmatpush1.msra.mxu0 0.0
  %1010 = vmatprep.subr.mxu0 0.0
  %1011 = vmatpush1.msra.mxu0 0.0
  %1012 = vmatprep.subr.mxu0 0.0
  %1013 = vmatpush1.msra.mxu0 0.0
  %1014 = vmatprep.subr.mxu0 0.0
  %1015 = vmatpush1.msra.mxu0 0.0
  %1016 = vmatprep.subr.mxu0 0.0
  %1017 = vmatpush1.msra.mxu0 0.0
  %1018 = vmatprep.subr.mxu0 0.0
  %1019 = vmatpush1.msra.mxu0 0.0
  %1020 = vmatprep.subr.mxu0 0.0
  %1021 = vmatpush1.msra.mxu0 0.0
  %1022 = vmatprep.subr.mxu0 0.0
  %1023 = vmatpush1.msra.mxu0 0.0
  %1024 = vmatprep.subr.mxu0 0.0
  %1025 = vmatpush1.msra.mxu0 0.0
  %1026 = vmatprep.subr.mxu0 0.0
  %v1027 = vand.u32 %v912, 4294901760
  %v1028 = vsub.f32 %v912, %v1027
  %v1029 = vand.u32 %v1028, 4294901760
  %v1030 = vsub.f32 %v1028, %v1029
  %v1031 = vand.u32 %v1030, 4294901760
  %1032 = vmatpush1.msra.mxu0 %v1031
  %1033 = vmatprep.subr.mxu0 0.0
  %v1034 = vand.u32 %v911, 4294901760
  %v1035 = vsub.f32 %v911, %v1034
  %v1036 = vand.u32 %v1035, 4294901760
  %v1037 = vsub.f32 %v1035, %v1036
  %v1038 = vand.u32 %v1037, 4294901760
  %1039 = vmatpush1.msra.mxu0 %v1038
  %1040 = vmatprep.subr.mxu0 0.0
  %v1041 = vand.u32 %v910, 4294901760
  %v1042 = vsub.f32 %v910, %v1041
  %v1043 = vand.u32 %v1042, 4294901760
  %v1044 = vsub.f32 %v1042, %v1043
  %v1045 = vand.u32 %v1044, 4294901760
  %1046 = vmatpush1.msra.mxu0 %v1045
  %1047 = vmatprep.subr.mxu0 0.0
  %v1048 = vand.u32 %v909, 4294901760
  %v1049 = vsub.f32 %v909, %v1048
  %v1050 = vand.u32 %v1049, 4294901760
  %v1051 = vsub.f32 %v1049, %v1050
  %v1052 = vand.u32 %v1051, 4294901760
  %1053 = vmatpush1.msra.mxu0 %v1052
  %1054 = vmatprep.subr.mxu0 0.0
  %1055 = vmatpush2.msra.mxu0 0.0
  %1056 = vmatprep.subr.mxu0 0.0
  %1057 = vmatpush2.msra.mxu0 0.0
  %1058 = vmatprep.subr.mxu0 0.0
  %1059 = vmatpush2.msra.mxu0 0.0
  %1060 = vmatprep.subr.mxu0 0.0
  %1061 = vmatpush2.msra.mxu0 0.0
  %1062 = vmatprep.subr.mxu0 0.0
  %1063 = vmatpush2.msra.mxu0 0.0
  %1064 = vmatprep.subr.mxu0 0.0
  %1065 = vmatpush2.msra.mxu0 0.0
  %1066 = vmatprep.subr.mxu0 0.0
  %1067 = vmatpush2.msra.mxu0 0.0
  %1068 = vmatprep.subr.mxu0 0.0
  %1069 = vmatpush2.msra.mxu0 0.0
  %1070 = vmatprep.subr.mxu0 0.0
  %1071 = vmatpush2.msra.mxu0 0.0
  %1072 = vmatprep.subr.mxu0 0.0
  %1073 = vmatpush2.msra.mxu0 0.0
  %1074 = vmatprep.subr.mxu0 0.0
  %1075 = vmatpush2.msra.mxu0 0.0
  %1076 = vmatprep.subr.mxu0 0.0
  %1077 = vmatpush2.msra.mxu0 0.0
  %1078 = vmatprep.subr.mxu0 0.0
  %1079 = vmatpush2.msra.mxu0 0.0
  %1080 = vmatprep.subr.mxu0 0.0
  %1081 = vmatpush2.msra.mxu0 0.0
  %1082 = vmatprep.subr.mxu0 0.0
  %1083 = vmatpush2.msra.mxu0 0.0
  %1084 = vmatprep.subr.mxu0 0.0
  %1085 = vmatpush2.msra.mxu0 0.0
  %1086 = vmatprep.mubr.f32.mxu0 0.0
  %v1087 = vand.u32 %v921, 4294901760
  %1088 = vmatmul.mubr.f32.gmra.mxu0 %v1087
  %v1089 = vpop.f32.mrf.mxu0
  %v1090 = vadd.f32 %v999, %v1089
  %v1091 = vpop.f32.mrf.mxu0
  %1092 = vdwg.mxu0
  %1093 = vmatprep.subr.mxu0 0.0
  %1094 = vmatpush1.msra.mxu0 0.0
  %1095 = vmatprep.subr.mxu0 0.0
  %1096 = vmatpush1.msra.mxu0 0.0
  %1097 = vmatprep.subr.mxu0 0.0
  %1098 = vmatpush1.msra.mxu0 0.0
  %1099 = vmatprep.subr.mxu0 0.0
  %1100 = vmatpush1.msra.mxu0 0.0
  %1101 = vmatprep.subr.mxu0 0.0
  %1102 = vmatpush1.msra.mxu0 0.0
  %1103 = vmatprep.subr.mxu0 0.0
  %1104 = vmatpush1.msra.mxu0 0.0
  %1105 = vmatprep.subr.mxu0 0.0
  %1106 = vmatpush1.msra.mxu0 0.0
  %1107 = vmatprep.subr.mxu0 0.0
  %1108 = vmatpush1.msra.mxu0 0.0
  %1109 = vmatprep.subr.mxu0 0.0
  %1110 = vmatpush1.msra.mxu0 0.0
  %1111 = vmatprep.subr.mxu0 0.0
  %1112 = vmatpush1.msra.mxu0 0.0
  %1113 = vmatprep.subr.mxu0 0.0
  %1114 = vmatpush1.msra.mxu0 0.0
  %1115 = vmatprep.subr.mxu0 0.0
  %1116 = vmatpush1.msra.mxu0 0.0
  %1117 = vmatprep.subr.mxu0 0.0
  %v1118 = vand.u32 %v912, 4294901760
  %v1119 = vsub.f32 %v912, %v1118
  %1120 = vmatpush1.msra.mxu0 %v1119
  %1121 = vmatprep.subr.mxu0 0.0
  %v1122 = vand.u32 %v911, 4294901760
  %v1123 = vsub.f32 %v911, %v1122
  %1124 = vmatpush1.msra.mxu0 %v1123
  %1125 = vmatprep.subr.mxu0 0.0
  %v1126 = vand.u32 %v910, 4294901760
  %v1127 = vsub.f32 %v910, %v1126
  %1128 = vmatpush1.msra.mxu0 %v1127
  %1129 = vmatprep.subr.mxu0 0.0
  %v1130 = vand.u32 %v909, 4294901760
  %v1131 = vsub.f32 %v909, %v1130
  %1132 = vmatpush1.msra.mxu0 %v1131
  %1133 = vmatprep.subr.mxu0 0.0
  %1134 = vmatpush2.msra.mxu0 0.0
  %1135 = vmatprep.subr.mxu0 0.0
  %1136 = vmatpush2.msra.mxu0 0.0
  %1137 = vmatprep.subr.mxu0 0.0
  %1138 = vmatpush2.msra.mxu0 0.0
  %1139 = vmatprep.subr.mxu0 0.0
  %1140 = vmatpush2.msra.mxu0 0.0
  %1141 = vmatprep.subr.mxu0 0.0
  %1142 = vmatpush2.msra.mxu0 0.0
  %1143 = vmatprep.subr.mxu0 0.0
  %1144 = vmatpush2.msra.mxu0 0.0
  %1145 = vmatprep.subr.mxu0 0.0
  %1146 = vmatpush2.msra.mxu0 0.0
  %1147 = vmatprep.subr.mxu0 0.0
  %1148 = vmatpush2.msra.mxu0 0.0
  %1149 = vmatprep.subr.mxu0 0.0
  %1150 = vmatpush2.msra.mxu0 0.0
  %1151 = vmatprep.subr.mxu0 0.0
  %1152 = vmatpush2.msra.mxu0 0.0
  %1153 = vmatprep.subr.mxu0 0.0
  %1154 = vmatpush2.msra.mxu0 0.0
  %1155 = vmatprep.subr.mxu0 0.0
  %1156 = vmatpush2.msra.mxu0 0.0
  %1157 = vmatprep.subr.mxu0 0.0
  %1158 = vmatpush2.msra.mxu0 0.0
  %1159 = vmatprep.subr.mxu0 0.0
  %1160 = vmatpush2.msra.mxu0 0.0
  %1161 = vmatprep.subr.mxu0 0.0
  %1162 = vmatpush2.msra.mxu0 0.0
  %1163 = vmatprep.subr.mxu0 0.0
  %1164 = vmatpush2.msra.mxu0 0.0
  %1165 = vmatprep.mubr.f32.mxu0 0.0
  %v1166 = vand.u32 %v921, 4294901760
  %v1167 = vsub.f32 %v921, %v1166
  %1168 = vmatmul.mubr.f32.gmra.mxu0 %v1167
  %v1169 = vpop.f32.mrf.mxu0
  %v1170 = vadd.f32 %v1090, %v1169
  %v1171 = vpop.f32.mrf.mxu0
  %1172 = vdwg.mxu0
  %1173 = vmatprep.subr.mxu0 0.0
  %1174 = vmatpush1.msra.mxu0 0.0
  %1175 = vmatprep.subr.mxu0 0.0
  %1176 = vmatpush1.msra.mxu0 0.0
  %1177 = vmatprep.subr.mxu0 0.0
  %1178 = vmatpush1.msra.mxu0 0.0
  %1179 = vmatprep.subr.mxu0 0.0
  %1180 = vmatpush1.msra.mxu0 0.0
  %1181 = vmatprep.subr.mxu0 0.0
  %1182 = vmatpush1.msra.mxu0 0.0
  %1183 = vmatprep.subr.mxu0 0.0
  %1184 = vmatpush1.msra.mxu0 0.0
  %1185 = vmatprep.subr.mxu0 0.0
  %1186 = vmatpush1.msra.mxu0 0.0
  %1187 = vmatprep.subr.mxu0 0.0
  %1188 = vmatpush1.msra.mxu0 0.0
  %1189 = vmatprep.subr.mxu0 0.0
  %1190 = vmatpush1.msra.mxu0 0.0
  %1191 = vmatprep.subr.mxu0 0.0
  %1192 = vmatpush1.msra.mxu0 0.0
  %1193 = vmatprep.subr.mxu0 0.0
  %1194 = vmatpush1.msra.mxu0 0.0
  %1195 = vmatprep.subr.mxu0 0.0
  %1196 = vmatpush1.msra.mxu0 0.0
  %1197 = vmatprep.subr.mxu0 0.0
  %v1198 = vand.u32 %v912, 4294901760
  %1199 = vmatpush1.msra.mxu0 %v1198
  %1200 = vmatprep.subr.mxu0 0.0
  %v1201 = vand.u32 %v911, 4294901760
  %1202 = vmatpush1.msra.mxu0 %v1201
  %1203 = vmatprep.subr.mxu0 0.0
  %v1204 = vand.u32 %v910, 4294901760
  %1205 = vmatpush1.msra.mxu0 %v1204
  %1206 = vmatprep.subr.mxu0 0.0
  %v1207 = vand.u32 %v909, 4294901760
  %1208 = vmatpush1.msra.mxu0 %v1207
  %1209 = vmatprep.subr.mxu0 0.0
  %1210 = vmatpush2.msra.mxu0 0.0
  %1211 = vmatprep.subr.mxu0 0.0
  %1212 = vmatpush2.msra.mxu0 0.0
  %1213 = vmatprep.subr.mxu0 0.0
  %1214 = vmatpush2.msra.mxu0 0.0
  %1215 = vmatprep.subr.mxu0 0.0
  %1216 = vmatpush2.msra.mxu0 0.0
  %1217 = vmatprep.subr.mxu0 0.0
  %1218 = vmatpush2.msra.mxu0 0.0
  %1219 = vmatprep.subr.mxu0 0.0
  %1220 = vmatpush2.msra.mxu0 0.0
  %1221 = vmatprep.subr.mxu0 0.0
  %1222 = vmatpush2.msra.mxu0 0.0
  %1223 = vmatprep.subr.mxu0 0.0
  %1224 = vmatpush2.msra.mxu0 0.0
  %1225 = vmatprep.subr.mxu0 0.0
  %1226 = vmatpush2.msra.mxu0 0.0
  %1227 = vmatprep.subr.mxu0 0.0
  %1228 = vmatpush2.msra.mxu0 0.0
  %1229 = vmatprep.subr.mxu0 0.0
  %1230 = vmatpush2.msra.mxu0 0.0
  %1231 = vmatprep.subr.mxu0 0.0
  %1232 = vmatpush2.msra.mxu0 0.0
  %1233 = vmatprep.subr.mxu0 0.0
  %1234 = vmatpush2.msra.mxu0 0.0
  %1235 = vmatprep.subr.mxu0 0.0
  %1236 = vmatpush2.msra.mxu0 0.0
  %1237 = vmatprep.subr.mxu0 0.0
  %1238 = vmatpush2.msra.mxu0 0.0
  %1239 = vmatprep.subr.mxu0 0.0
  %1240 = vmatpush2.msra.mxu0 0.0
  %1241 = vmatprep.mubr.f32.mxu0 0.0
  %v1242 = vand.u32 %v921, 4294901760
  %v1243 = vsub.f32 %v921, %v1242
  %v1244 = vand.u32 %v1243, 4294901760
  %1245 = vmatmul.mubr.f32.gmra.mxu0 %v1244
  %v1246 = vpop.f32.mrf.mxu0
  %v1247 = vadd.f32 %v1170, %v1246
  %v1248 = vpop.f32.mrf.mxu0
  %1249 = vdwg.mxu0
  %1250 = vmatprep.subr.mxu0 0.0
  %1251 = vmatpush1.msra.mxu0 0.0
  %1252 = vmatprep.subr.mxu0 0.0
  %1253 = vmatpush1.msra.mxu0 0.0
  %1254 = vmatprep.subr.mxu0 0.0
  %1255 = vmatpush1.msra.mxu0 0.0
  %1256 = vmatprep.subr.mxu0 0.0
  %1257 = vmatpush1.msra.mxu0 0.0
  %1258 = vmatprep.subr.mxu0 0.0
  %1259 = vmatpush1.msra.mxu0 0.0
  %1260 = vmatprep.subr.mxu0 0.0
  %1261 = vmatpush1.msra.mxu0 0.0
  %1262 = vmatprep.subr.mxu0 0.0
  %1263 = vmatpush1.msra.mxu0 0.0
  %1264 = vmatprep.subr.mxu0 0.0
  %1265 = vmatpush1.msra.mxu0 0.0
  %1266 = vmatprep.subr.mxu0 0.0
  %1267 = vmatpush1.msra.mxu0 0.0
  %1268 = vmatprep.subr.mxu0 0.0
  %1269 = vmatpush1.msra.mxu0 0.0
  %1270 = vmatprep.subr.mxu0 0.0
  %1271 = vmatpush1.msra.mxu0 0.0
  %1272 = vmatprep.subr.mxu0 0.0
  %1273 = vmatpush1.msra.mxu0 0.0
  %1274 = vmatprep.subr.mxu0 0.0
  %v1275 = vand.u32 %v912, 4294901760
  %v1276 = vsub.f32 %v912, %v1275
  %v1277 = vand.u32 %v1276, 4294901760
  %1278 = vmatpush1.msra.mxu0 %v1277
  %1279 = vmatprep.subr.mxu0 0.0
  %v1280 = vand.u32 %v911, 4294901760
  %v1281 = vsub.f32 %v911, %v1280
  %v1282 = vand.u32 %v1281, 4294901760
  %1283 = vmatpush1.msra.mxu0 %v1282
  %1284 = vmatprep.subr.mxu0 0.0
  %v1285 = vand.u32 %v910, 4294901760
  %v1286 = vsub.f32 %v910, %v1285
  %v1287 = vand.u32 %v1286, 4294901760
  %1288 = vmatpush1.msra.mxu0 %v1287
  %1289 = vmatprep.subr.mxu0 0.0
  %v1290 = vand.u32 %v909, 4294901760
  %v1291 = vsub.f32 %v909, %v1290
  %v1292 = vand.u32 %v1291, 4294901760
  %1293 = vmatpush1.msra.mxu0 %v1292
  %1294 = vmatprep.subr.mxu0 0.0
  %1295 = vmatpush2.msra.mxu0 0.0
  %1296 = vmatprep.subr.mxu0 0.0
  %1297 = vmatpush2.msra.mxu0 0.0
  %1298 = vmatprep.subr.mxu0 0.0
  %1299 = vmatpush2.msra.mxu0 0.0
  %1300 = vmatprep.subr.mxu0 0.0
  %1301 = vmatpush2.msra.mxu0 0.0
  %1302 = vmatprep.subr.mxu0 0.0
  %1303 = vmatpush2.msra.mxu0 0.0
  %1304 = vmatprep.subr.mxu0 0.0
  %1305 = vmatpush2.msra.mxu0 0.0
  %1306 = vmatprep.subr.mxu0 0.0
  %1307 = vmatpush2.msra.mxu0 0.0
  %1308 = vmatprep.subr.mxu0 0.0
  %1309 = vmatpush2.msra.mxu0 0.0
  %1310 = vmatprep.subr.mxu0 0.0
  %1311 = vmatpush2.msra.mxu0 0.0
  %1312 = vmatprep.subr.mxu0 0.0
  %1313 = vmatpush2.msra.mxu0 0.0
  %1314 = vmatprep.subr.mxu0 0.0
  %1315 = vmatpush2.msra.mxu0 0.0
  %1316 = vmatprep.subr.mxu0 0.0
  %1317 = vmatpush2.msra.mxu0 0.0
  %1318 = vmatprep.subr.mxu0 0.0
  %1319 = vmatpush2.msra.mxu0 0.0
  %1320 = vmatprep.subr.mxu0 0.0
  %1321 = vmatpush2.msra.mxu0 0.0
  %1322 = vmatprep.subr.mxu0 0.0
  %1323 = vmatpush2.msra.mxu0 0.0
  %1324 = vmatprep.subr.mxu0 0.0
  %1325 = vmatpush2.msra.mxu0 0.0
  %1326 = vmatprep.mubr.f32.mxu0 0.0
  %v1327 = vand.u32 %v921, 4294901760
  %1328 = vmatmul.mubr.f32.gmra.mxu0 %v1327
  %v1329 = vpop.f32.mrf.mxu0
  %v1330 = vadd.f32 %v1247, %v1329
  %v1331 = vpop.f32.mrf.mxu0
  %1332 = vdwg.mxu0
  %1333 = vmatprep.subr.mxu0 0.0
  %1334 = vmatpush1.msra.mxu0 0.0
  %1335 = vmatprep.subr.mxu0 0.0
  %1336 = vmatpush1.msra.mxu0 0.0
  %1337 = vmatprep.subr.mxu0 0.0
  %1338 = vmatpush1.msra.mxu0 0.0
  %1339 = vmatprep.subr.mxu0 0.0
  %1340 = vmatpush1.msra.mxu0 0.0
  %1341 = vmatprep.subr.mxu0 0.0
  %1342 = vmatpush1.msra.mxu0 0.0
  %1343 = vmatprep.subr.mxu0 0.0
  %1344 = vmatpush1.msra.mxu0 0.0
  %1345 = vmatprep.subr.mxu0 0.0
  %1346 = vmatpush1.msra.mxu0 0.0
  %1347 = vmatprep.subr.mxu0 0.0
  %1348 = vmatpush1.msra.mxu0 0.0
  %1349 = vmatprep.subr.mxu0 0.0
  %1350 = vmatpush1.msra.mxu0 0.0
  %1351 = vmatprep.subr.mxu0 0.0
  %1352 = vmatpush1.msra.mxu0 0.0
  %1353 = vmatprep.subr.mxu0 0.0
  %1354 = vmatpush1.msra.mxu0 0.0
  %1355 = vmatprep.subr.mxu0 0.0
  %1356 = vmatpush1.msra.mxu0 0.0
  %1357 = vmatprep.subr.mxu0 0.0
  %v1358 = vand.u32 %v912, 4294901760
  %1359 = vmatpush1.msra.mxu0 %v1358
  %1360 = vmatprep.subr.mxu0 0.0
  %v1361 = vand.u32 %v911, 4294901760
  %1362 = vmatpush1.msra.mxu0 %v1361
  %1363 = vmatprep.subr.mxu0 0.0
  %v1364 = vand.u32 %v910, 4294901760
  %1365 = vmatpush1.msra.mxu0 %v1364
  %1366 = vmatprep.subr.mxu0 0.0
  %v1367 = vand.u32 %v909, 4294901760
  %1368 = vmatpush1.msra.mxu0 %v1367
  %1369 = vmatprep.subr.mxu0 0.0
  %1370 = vmatpush2.msra.mxu0 0.0
  %1371 = vmatprep.subr.mxu0 0.0
  %1372 = vmatpush2.msra.mxu0 0.0
  %1373 = vmatprep.subr.mxu0 0.0
  %1374 = vmatpush2.msra.mxu0 0.0
  %1375 = vmatprep.subr.mxu0 0.0
  %1376 = vmatpush2.msra.mxu0 0.0
  %1377 = vmatprep.subr.mxu0 0.0
  %1378 = vmatpush2.msra.mxu0 0.0
  %1379 = vmatprep.subr.mxu0 0.0
  %1380 = vmatpush2.msra.mxu0 0.0
  %1381 = vmatprep.subr.mxu0 0.0
  %1382 = vmatpush2.msra.mxu0 0.0
  %1383 = vmatprep.subr.mxu0 0.0
  %1384 = vmatpush2.msra.mxu0 0.0
  %1385 = vmatprep.subr.mxu0 0.0
  %1386 = vmatpush2.msra.mxu0 0.0
  %1387 = vmatprep.subr.mxu0 0.0
  %1388 = vmatpush2.msra.mxu0 0.0
  %1389 = vmatprep.subr.mxu0 0.0
  %1390 = vmatpush2.msra.mxu0 0.0
  %1391 = vmatprep.subr.mxu0 0.0
  %1392 = vmatpush2.msra.mxu0 0.0
  %1393 = vmatprep.subr.mxu0 0.0
  %1394 = vmatpush2.msra.mxu0 0.0
  %1395 = vmatprep.subr.mxu0 0.0
  %1396 = vmatpush2.msra.mxu0 0.0
  %1397 = vmatprep.subr.mxu0 0.0
  %1398 = vmatpush2.msra.mxu0 0.0
  %1399 = vmatprep.subr.mxu0 0.0
  %1400 = vmatpush2.msra.mxu0 0.0
  %1401 = vmatprep.mubr.f32.mxu0 0.0
  %v1402 = vand.u32 %v921, 4294901760
  %1403 = vmatmul.mubr.f32.gmra.mxu0 %v1402
  %v1404 = vpop.f32.mrf.mxu0
  %v1405 = vadd.f32 %v1330, %v1404
  %v1406 = vpop.f32.mrf.mxu0
  %1407 = vdwg.mxu0
  %v1409 = vsel %vm367, %v1405, 0
  %1411 = vmatprep.subr.mxu0 0.0
  %1412 = vmatpush1.msra.mxu0 0.0
  %1413 = vmatprep.subr.mxu0 0.0
  %1414 = vmatpush1.msra.mxu0 0.0
  %1415 = vmatprep.subr.mxu0 0.0
  %1416 = vmatpush1.msra.mxu0 0.0
  %1417 = vmatprep.subr.mxu0 0.0
  %1418 = vmatpush1.msra.mxu0 0.0
  %1419 = vmatprep.subr.mxu0 0.0
  %1420 = vmatpush1.msra.mxu0 0.0
  %1421 = vmatprep.subr.mxu0 0.0
  %1422 = vmatpush1.msra.mxu0 0.0
  %1423 = vmatprep.subr.mxu0 0.0
  %1424 = vmatpush1.msra.mxu0 0.0
  %1425 = vmatprep.subr.mxu0 0.0
  %1426 = vmatpush1.msra.mxu0 0.0
  %1427 = vmatprep.subr.mxu0 0.0
  %1428 = vmatpush1.msra.mxu0 0.0
  %1429 = vmatprep.subr.mxu0 0.0
  %1430 = vmatpush1.msra.mxu0 0.0
  %1431 = vmatprep.subr.mxu0 0.0
  %1432 = vmatpush1.msra.mxu0 0.0
  %1433 = vmatprep.subr.mxu0 0.0
  %1434 = vmatpush1.msra.mxu0 0.0
  %1435 = vmatprep.subr.mxu0 0.0
  %v1436 = vand.u32 %v745, 4294901760
  %1437 = vmatpush1.msra.mxu0 %v1436
  %1438 = vmatprep.subr.mxu0 0.0
  %v1439 = vand.u32 %v744, 4294901760
  %1440 = vmatpush1.msra.mxu0 %v1439
  %1441 = vmatprep.subr.mxu0 0.0
  %v1442 = vand.u32 %v743, 4294901760
  %1443 = vmatpush1.msra.mxu0 %v1442
  %1444 = vmatprep.subr.mxu0 0.0
  %v1445 = vand.u32 %v742, 4294901760
  %1446 = vmatpush1.msra.mxu0 %v1445
  %1447 = vmatprep.subr.mxu0 0.0
  %1448 = vmatpush2.msra.mxu0 0.0
  %1449 = vmatprep.subr.mxu0 0.0
  %1450 = vmatpush2.msra.mxu0 0.0
  %1451 = vmatprep.subr.mxu0 0.0
  %1452 = vmatpush2.msra.mxu0 0.0
  %1453 = vmatprep.subr.mxu0 0.0
  %1454 = vmatpush2.msra.mxu0 0.0
  %1455 = vmatprep.subr.mxu0 0.0
  %1456 = vmatpush2.msra.mxu0 0.0
  %1457 = vmatprep.subr.mxu0 0.0
  %1458 = vmatpush2.msra.mxu0 0.0
  %1459 = vmatprep.subr.mxu0 0.0
  %1460 = vmatpush2.msra.mxu0 0.0
  %1461 = vmatprep.subr.mxu0 0.0
  %1462 = vmatpush2.msra.mxu0 0.0
  %1463 = vmatprep.subr.mxu0 0.0
  %1464 = vmatpush2.msra.mxu0 0.0
  %1465 = vmatprep.subr.mxu0 0.0
  %1466 = vmatpush2.msra.mxu0 0.0
  %1467 = vmatprep.subr.mxu0 0.0
  %1468 = vmatpush2.msra.mxu0 0.0
  %1469 = vmatprep.subr.mxu0 0.0
  %1470 = vmatpush2.msra.mxu0 0.0
  %1471 = vmatprep.subr.mxu0 0.0
  %1472 = vmatpush2.msra.mxu0 0.0
  %1473 = vmatprep.subr.mxu0 0.0
  %1474 = vmatpush2.msra.mxu0 0.0
  %1475 = vmatprep.subr.mxu0 0.0
  %1476 = vmatpush2.msra.mxu0 0.0
  %1477 = vmatprep.subr.mxu0 0.0
  %1478 = vmatpush2.msra.mxu0 0.0
  %1479 = vmatprep.mubr.f32.mxu0 0.0
  %v1480 = vand.u32 %v1409, 4294901760
  %v1481 = vsub.f32 %v1409, %v1480
  %v1482 = vand.u32 %v1481, 4294901760
  %v1483 = vsub.f32 %v1481, %v1482
  %v1484 = vand.u32 %v1483, 4294901760
  %1485 = vmatmul.mubr.f32.gmra.mxu0 %v1484
  %v1486 = vpop.f32.mrf.mxu0
  %v1487 = vadd.f32 0.0, %v1486
  %v1488 = vpop.f32.mrf.mxu0
  %1489 = vdwg.mxu0
  %1490 = vmatprep.subr.mxu0 0.0
  %1491 = vmatpush1.msra.mxu0 0.0
  %1492 = vmatprep.subr.mxu0 0.0
  %1493 = vmatpush1.msra.mxu0 0.0
  %1494 = vmatprep.subr.mxu0 0.0
  %1495 = vmatpush1.msra.mxu0 0.0
  %1496 = vmatprep.subr.mxu0 0.0
  %1497 = vmatpush1.msra.mxu0 0.0
  %1498 = vmatprep.subr.mxu0 0.0
  %1499 = vmatpush1.msra.mxu0 0.0
  %1500 = vmatprep.subr.mxu0 0.0
  %1501 = vmatpush1.msra.mxu0 0.0
  %1502 = vmatprep.subr.mxu0 0.0
  %1503 = vmatpush1.msra.mxu0 0.0
  %1504 = vmatprep.subr.mxu0 0.0
  %1505 = vmatpush1.msra.mxu0 0.0
  %1506 = vmatprep.subr.mxu0 0.0
  %1507 = vmatpush1.msra.mxu0 0.0
  %1508 = vmatprep.subr.mxu0 0.0
  %1509 = vmatpush1.msra.mxu0 0.0
  %1510 = vmatprep.subr.mxu0 0.0
  %1511 = vmatpush1.msra.mxu0 0.0
  %1512 = vmatprep.subr.mxu0 0.0
  %1513 = vmatpush1.msra.mxu0 0.0
  %1514 = vmatprep.subr.mxu0 0.0
  %v1515 = vand.u32 %v745, 4294901760
  %v1516 = vsub.f32 %v745, %v1515
  %v1517 = vand.u32 %v1516, 4294901760
  %v1518 = vsub.f32 %v1516, %v1517
  %v1519 = vand.u32 %v1518, 4294901760
  %1520 = vmatpush1.msra.mxu0 %v1519
  %1521 = vmatprep.subr.mxu0 0.0
  %v1522 = vand.u32 %v744, 4294901760
  %v1523 = vsub.f32 %v744, %v1522
  %v1524 = vand.u32 %v1523, 4294901760
  %v1525 = vsub.f32 %v1523, %v1524
  %v1526 = vand.u32 %v1525, 4294901760
  %1527 = vmatpush1.msra.mxu0 %v1526
  %1528 = vmatprep.subr.mxu0 0.0
  %v1529 = vand.u32 %v743, 4294901760
  %v1530 = vsub.f32 %v743, %v1529
  %v1531 = vand.u32 %v1530, 4294901760
  %v1532 = vsub.f32 %v1530, %v1531
  %v1533 = vand.u32 %v1532, 4294901760
  %1534 = vmatpush1.msra.mxu0 %v1533
  %1535 = vmatprep.subr.mxu0 0.0
  %v1536 = vand.u32 %v742, 4294901760
  %v1537 = vsub.f32 %v742, %v1536
  %v1538 = vand.u32 %v1537, 4294901760
  %v1539 = vsub.f32 %v1537, %v1538
  %v1540 = vand.u32 %v1539, 4294901760
  %1541 = vmatpush1.msra.mxu0 %v1540
  %1542 = vmatprep.subr.mxu0 0.0
  %1543 = vmatpush2.msra.mxu0 0.0
  %1544 = vmatprep.subr.mxu0 0.0
  %1545 = vmatpush2.msra.mxu0 0.0
  %1546 = vmatprep.subr.mxu0 0.0
  %1547 = vmatpush2.msra.mxu0 0.0
  %1548 = vmatprep.subr.mxu0 0.0
  %1549 = vmatpush2.msra.mxu0 0.0
  %1550 = vmatprep.subr.mxu0 0.0
  %1551 = vmatpush2.msra.mxu0 0.0
  %1552 = vmatprep.subr.mxu0 0.0
  %1553 = vmatpush2.msra.mxu0 0.0
  %1554 = vmatprep.subr.mxu0 0.0
  %1555 = vmatpush2.msra.mxu0 0.0
  %1556 = vmatprep.subr.mxu0 0.0
  %1557 = vmatpush2.msra.mxu0 0.0
  %1558 = vmatprep.subr.mxu0 0.0
  %1559 = vmatpush2.msra.mxu0 0.0
  %1560 = vmatprep.subr.mxu0 0.0
  %1561 = vmatpush2.msra.mxu0 0.0
  %1562 = vmatprep.subr.mxu0 0.0
  %1563 = vmatpush2.msra.mxu0 0.0
  %1564 = vmatprep.subr.mxu0 0.0
  %1565 = vmatpush2.msra.mxu0 0.0
  %1566 = vmatprep.subr.mxu0 0.0
  %1567 = vmatpush2.msra.mxu0 0.0
  %1568 = vmatprep.subr.mxu0 0.0
  %1569 = vmatpush2.msra.mxu0 0.0
  %1570 = vmatprep.subr.mxu0 0.0
  %1571 = vmatpush2.msra.mxu0 0.0
  %1572 = vmatprep.subr.mxu0 0.0
  %1573 = vmatpush2.msra.mxu0 0.0
  %1574 = vmatprep.mubr.f32.mxu0 0.0
  %v1575 = vand.u32 %v1409, 4294901760
  %1576 = vmatmul.mubr.f32.gmra.mxu0 %v1575
  %v1577 = vpop.f32.mrf.mxu0
  %v1578 = vadd.f32 %v1487, %v1577
  %v1579 = vpop.f32.mrf.mxu0
  %1580 = vdwg.mxu0
  %1581 = vmatprep.subr.mxu0 0.0
  %1582 = vmatpush1.msra.mxu0 0.0
  %1583 = vmatprep.subr.mxu0 0.0
  %1584 = vmatpush1.msra.mxu0 0.0
  %1585 = vmatprep.subr.mxu0 0.0
  %1586 = vmatpush1.msra.mxu0 0.0
  %1587 = vmatprep.subr.mxu0 0.0
  %1588 = vmatpush1.msra.mxu0 0.0
  %1589 = vmatprep.subr.mxu0 0.0
  %1590 = vmatpush1.msra.mxu0 0.0
  %1591 = vmatprep.subr.mxu0 0.0
  %1592 = vmatpush1.msra.mxu0 0.0
  %1593 = vmatprep.subr.mxu0 0.0
  %1594 = vmatpush1.msra.mxu0 0.0
  %1595 = vmatprep.subr.mxu0 0.0
  %1596 = vmatpush1.msra.mxu0 0.0
  %1597 = vmatprep.subr.mxu0 0.0
  %1598 = vmatpush1.msra.mxu0 0.0
  %1599 = vmatprep.subr.mxu0 0.0
  %1600 = vmatpush1.msra.mxu0 0.0
  %1601 = vmatprep.subr.mxu0 0.0
  %1602 = vmatpush1.msra.mxu0 0.0
  %1603 = vmatprep.subr.mxu0 0.0
  %1604 = vmatpush1.msra.mxu0 0.0
  %1605 = vmatprep.subr.mxu0 0.0
  %v1606 = vand.u32 %v745, 4294901760
  %v1607 = vsub.f32 %v745, %v1606
  %1608 = vmatpush1.msra.mxu0 %v1607
  %1609 = vmatprep.subr.mxu0 0.0
  %v1610 = vand.u32 %v744, 4294901760
  %v1611 = vsub.f32 %v744, %v1610
  %1612 = vmatpush1.msra.mxu0 %v1611
  %1613 = vmatprep.subr.mxu0 0.0
  %v1614 = vand.u32 %v743, 4294901760
  %v1615 = vsub.f32 %v743, %v1614
  %1616 = vmatpush1.msra.mxu0 %v1615
  %1617 = vmatprep.subr.mxu0 0.0
  %v1618 = vand.u32 %v742, 4294901760
  %v1619 = vsub.f32 %v742, %v1618
  %1620 = vmatpush1.msra.mxu0 %v1619
  %1621 = vmatprep.subr.mxu0 0.0
  %1622 = vmatpush2.msra.mxu0 0.0
  %1623 = vmatprep.subr.mxu0 0.0
  %1624 = vmatpush2.msra.mxu0 0.0
  %1625 = vmatprep.subr.mxu0 0.0
  %1626 = vmatpush2.msra.mxu0 0.0
  %1627 = vmatprep.subr.mxu0 0.0
  %1628 = vmatpush2.msra.mxu0 0.0
  %1629 = vmatprep.subr.mxu0 0.0
  %1630 = vmatpush2.msra.mxu0 0.0
  %1631 = vmatprep.subr.mxu0 0.0
  %1632 = vmatpush2.msra.mxu0 0.0
  %1633 = vmatprep.subr.mxu0 0.0
  %1634 = vmatpush2.msra.mxu0 0.0
  %1635 = vmatprep.subr.mxu0 0.0
  %1636 = vmatpush2.msra.mxu0 0.0
  %1637 = vmatprep.subr.mxu0 0.0
  %1638 = vmatpush2.msra.mxu0 0.0
  %1639 = vmatprep.subr.mxu0 0.0
  %1640 = vmatpush2.msra.mxu0 0.0
  %1641 = vmatprep.subr.mxu0 0.0
  %1642 = vmatpush2.msra.mxu0 0.0
  %1643 = vmatprep.subr.mxu0 0.0
  %1644 = vmatpush2.msra.mxu0 0.0
  %1645 = vmatprep.subr.mxu0 0.0
  %1646 = vmatpush2.msra.mxu0 0.0
  %1647 = vmatprep.subr.mxu0 0.0
  %1648 = vmatpush2.msra.mxu0 0.0
  %1649 = vmatprep.subr.mxu0 0.0
  %1650 = vmatpush2.msra.mxu0 0.0
  %1651 = vmatprep.subr.mxu0 0.0
  %1652 = vmatpush2.msra.mxu0 0.0
  %1653 = vmatprep.mubr.f32.mxu0 0.0
  %v1654 = vand.u32 %v1409, 4294901760
  %v1655 = vsub.f32 %v1409, %v1654
  %1656 = vmatmul.mubr.f32.gmra.mxu0 %v1655
  %v1657 = vpop.f32.mrf.mxu0
  %v1658 = vadd.f32 %v1578, %v1657
  %v1659 = vpop.f32.mrf.mxu0
  %1660 = vdwg.mxu0
  %1661 = vmatprep.subr.mxu0 0.0
  %1662 = vmatpush1.msra.mxu0 0.0
  %1663 = vmatprep.subr.mxu0 0.0
  %1664 = vmatpush1.msra.mxu0 0.0
  %1665 = vmatprep.subr.mxu0 0.0
  %1666 = vmatpush1.msra.mxu0 0.0
  %1667 = vmatprep.subr.mxu0 0.0
  %1668 = vmatpush1.msra.mxu0 0.0
  %1669 = vmatprep.subr.mxu0 0.0
  %1670 = vmatpush1.msra.mxu0 0.0
  %1671 = vmatprep.subr.mxu0 0.0
  %1672 = vmatpush1.msra.mxu0 0.0
  %1673 = vmatprep.subr.mxu0 0.0
  %1674 = vmatpush1.msra.mxu0 0.0
  %1675 = vmatprep.subr.mxu0 0.0
  %1676 = vmatpush1.msra.mxu0 0.0
  %1677 = vmatprep.subr.mxu0 0.0
  %1678 = vmatpush1.msra.mxu0 0.0
  %1679 = vmatprep.subr.mxu0 0.0
  %1680 = vmatpush1.msra.mxu0 0.0
  %1681 = vmatprep.subr.mxu0 0.0
  %1682 = vmatpush1.msra.mxu0 0.0
  %1683 = vmatprep.subr.mxu0 0.0
  %1684 = vmatpush1.msra.mxu0 0.0
  %1685 = vmatprep.subr.mxu0 0.0
  %v1686 = vand.u32 %v745, 4294901760
  %1687 = vmatpush1.msra.mxu0 %v1686
  %1688 = vmatprep.subr.mxu0 0.0
  %v1689 = vand.u32 %v744, 4294901760
  %1690 = vmatpush1.msra.mxu0 %v1689
  %1691 = vmatprep.subr.mxu0 0.0
  %v1692 = vand.u32 %v743, 4294901760
  %1693 = vmatpush1.msra.mxu0 %v1692
  %1694 = vmatprep.subr.mxu0 0.0
  %v1695 = vand.u32 %v742, 4294901760
  %1696 = vmatpush1.msra.mxu0 %v1695
  %1697 = vmatprep.subr.mxu0 0.0
  %1698 = vmatpush2.msra.mxu0 0.0
  %1699 = vmatprep.subr.mxu0 0.0
  %1700 = vmatpush2.msra.mxu0 0.0
  %1701 = vmatprep.subr.mxu0 0.0
  %1702 = vmatpush2.msra.mxu0 0.0
  %1703 = vmatprep.subr.mxu0 0.0
  %1704 = vmatpush2.msra.mxu0 0.0
  %1705 = vmatprep.subr.mxu0 0.0
  %1706 = vmatpush2.msra.mxu0 0.0
  %1707 = vmatprep.subr.mxu0 0.0
  %1708 = vmatpush2.msra.mxu0 0.0
  %1709 = vmatprep.subr.mxu0 0.0
  %1710 = vmatpush2.msra.mxu0 0.0
  %1711 = vmatprep.subr.mxu0 0.0
  %1712 = vmatpush2.msra.mxu0 0.0
  %1713 = vmatprep.subr.mxu0 0.0
  %1714 = vmatpush2.msra.mxu0 0.0
  %1715 = vmatprep.subr.mxu0 0.0
  %1716 = vmatpush2.msra.mxu0 0.0
  %1717 = vmatprep.subr.mxu0 0.0
  %1718 = vmatpush2.msra.mxu0 0.0
  %1719 = vmatprep.subr.mxu0 0.0
  %1720 = vmatpush2.msra.mxu0 0.0
  %1721 = vmatprep.subr.mxu0 0.0
  %1722 = vmatpush2.msra.mxu0 0.0
  %1723 = vmatprep.subr.mxu0 0.0
  %1724 = vmatpush2.msra.mxu0 0.0
  %1725 = vmatprep.subr.mxu0 0.0
  %1726 = vmatpush2.msra.mxu0 0.0
  %1727 = vmatprep.subr.mxu0 0.0
  %1728 = vmatpush2.msra.mxu0 0.0
  %1729 = vmatprep.mubr.f32.mxu0 0.0
  %v1730 = vand.u32 %v1409, 4294901760
  %v1731 = vsub.f32 %v1409, %v1730
  %v1732 = vand.u32 %v1731, 4294901760
  %1733 = vmatmul.mubr.f32.gmra.mxu0 %v1732
  %v1734 = vpop.f32.mrf.mxu0
  %v1735 = vadd.f32 %v1658, %v1734
  %v1736 = vpop.f32.mrf.mxu0
  %1737 = vdwg.mxu0
  %1738 = vmatprep.subr.mxu0 0.0
  %1739 = vmatpush1.msra.mxu0 0.0
  %1740 = vmatprep.subr.mxu0 0.0
  %1741 = vmatpush1.msra.mxu0 0.0
  %1742 = vmatprep.subr.mxu0 0.0
  %1743 = vmatpush1.msra.mxu0 0.0
  %1744 = vmatprep.subr.mxu0 0.0
  %1745 = vmatpush1.msra.mxu0 0.0
  %1746 = vmatprep.subr.mxu0 0.0
  %1747 = vmatpush1.msra.mxu0 0.0
  %1748 = vmatprep.subr.mxu0 0.0
  %1749 = vmatpush1.msra.mxu0 0.0
  %1750 = vmatprep.subr.mxu0 0.0
  %1751 = vmatpush1.msra.mxu0 0.0
  %1752 = vmatprep.subr.mxu0 0.0
  %1753 = vmatpush1.msra.mxu0 0.0
  %1754 = vmatprep.subr.mxu0 0.0
  %1755 = vmatpush1.msra.mxu0 0.0
  %1756 = vmatprep.subr.mxu0 0.0
  %1757 = vmatpush1.msra.mxu0 0.0
  %1758 = vmatprep.subr.mxu0 0.0
  %1759 = vmatpush1.msra.mxu0 0.0
  %1760 = vmatprep.subr.mxu0 0.0
  %1761 = vmatpush1.msra.mxu0 0.0
  %1762 = vmatprep.subr.mxu0 0.0
  %v1763 = vand.u32 %v745, 4294901760
  %v1764 = vsub.f32 %v745, %v1763
  %v1765 = vand.u32 %v1764, 4294901760
  %1766 = vmatpush1.msra.mxu0 %v1765
  %1767 = vmatprep.subr.mxu0 0.0
  %v1768 = vand.u32 %v744, 4294901760
  %v1769 = vsub.f32 %v744, %v1768
  %v1770 = vand.u32 %v1769, 4294901760
  %1771 = vmatpush1.msra.mxu0 %v1770
  %1772 = vmatprep.subr.mxu0 0.0
  %v1773 = vand.u32 %v743, 4294901760
  %v1774 = vsub.f32 %v743, %v1773
  %v1775 = vand.u32 %v1774, 4294901760
  %1776 = vmatpush1.msra.mxu0 %v1775
  %1777 = vmatprep.subr.mxu0 0.0
  %v1778 = vand.u32 %v742, 4294901760
  %v1779 = vsub.f32 %v742, %v1778
  %v1780 = vand.u32 %v1779, 4294901760
  %1781 = vmatpush1.msra.mxu0 %v1780
  %1782 = vmatprep.subr.mxu0 0.0
  %1783 = vmatpush2.msra.mxu0 0.0
  %1784 = vmatprep.subr.mxu0 0.0
  %1785 = vmatpush2.msra.mxu0 0.0
  %1786 = vmatprep.subr.mxu0 0.0
  %1787 = vmatpush2.msra.mxu0 0.0
  %1788 = vmatprep.subr.mxu0 0.0
  %1789 = vmatpush2.msra.mxu0 0.0
  %1790 = vmatprep.subr.mxu0 0.0
  %1791 = vmatpush2.msra.mxu0 0.0
  %1792 = vmatprep.subr.mxu0 0.0
  %1793 = vmatpush2.msra.mxu0 0.0
  %1794 = vmatprep.subr.mxu0 0.0
  %1795 = vmatpush2.msra.mxu0 0.0
  %1796 = vmatprep.subr.mxu0 0.0
  %1797 = vmatpush2.msra.mxu0 0.0
  %1798 = vmatprep.subr.mxu0 0.0
  %1799 = vmatpush2.msra.mxu0 0.0
  %1800 = vmatprep.subr.mxu0 0.0
  %1801 = vmatpush2.msra.mxu0 0.0
  %1802 = vmatprep.subr.mxu0 0.0
  %1803 = vmatpush2.msra.mxu0 0.0
  %1804 = vmatprep.subr.mxu0 0.0
  %1805 = vmatpush2.msra.mxu0 0.0
  %1806 = vmatprep.subr.mxu0 0.0
  %1807 = vmatpush2.msra.mxu0 0.0
  %1808 = vmatprep.subr.mxu0 0.0
  %1809 = vmatpush2.msra.mxu0 0.0
  %1810 = vmatprep.subr.mxu0 0.0
  %1811 = vmatpush2.msra.mxu0 0.0
  %1812 = vmatprep.subr.mxu0 0.0
  %1813 = vmatpush2.msra.mxu0 0.0
  %1814 = vmatprep.mubr.f32.mxu0 0.0
  %v1815 = vand.u32 %v1409, 4294901760
  %1816 = vmatmul.mubr.f32.gmra.mxu0 %v1815
  %v1817 = vpop.f32.mrf.mxu0
  %v1818 = vadd.f32 %v1735, %v1817
  %v1819 = vpop.f32.mrf.mxu0
  %1820 = vdwg.mxu0
  %1821 = vmatprep.subr.mxu0 0.0
  %1822 = vmatpush1.msra.mxu0 0.0
  %1823 = vmatprep.subr.mxu0 0.0
  %1824 = vmatpush1.msra.mxu0 0.0
  %1825 = vmatprep.subr.mxu0 0.0
  %1826 = vmatpush1.msra.mxu0 0.0
  %1827 = vmatprep.subr.mxu0 0.0
  %1828 = vmatpush1.msra.mxu0 0.0
  %1829 = vmatprep.subr.mxu0 0.0
  %1830 = vmatpush1.msra.mxu0 0.0
  %1831 = vmatprep.subr.mxu0 0.0
  %1832 = vmatpush1.msra.mxu0 0.0
  %1833 = vmatprep.subr.mxu0 0.0
  %1834 = vmatpush1.msra.mxu0 0.0
  %1835 = vmatprep.subr.mxu0 0.0
  %1836 = vmatpush1.msra.mxu0 0.0
  %1837 = vmatprep.subr.mxu0 0.0
  %1838 = vmatpush1.msra.mxu0 0.0
  %1839 = vmatprep.subr.mxu0 0.0
  %1840 = vmatpush1.msra.mxu0 0.0
  %1841 = vmatprep.subr.mxu0 0.0
  %1842 = vmatpush1.msra.mxu0 0.0
  %1843 = vmatprep.subr.mxu0 0.0
  %1844 = vmatpush1.msra.mxu0 0.0
  %1845 = vmatprep.subr.mxu0 0.0
  %v1846 = vand.u32 %v745, 4294901760
  %1847 = vmatpush1.msra.mxu0 %v1846
  %1848 = vmatprep.subr.mxu0 0.0
  %v1849 = vand.u32 %v744, 4294901760
  %1850 = vmatpush1.msra.mxu0 %v1849
  %1851 = vmatprep.subr.mxu0 0.0
  %v1852 = vand.u32 %v743, 4294901760
  %1853 = vmatpush1.msra.mxu0 %v1852
  %1854 = vmatprep.subr.mxu0 0.0
  %v1855 = vand.u32 %v742, 4294901760
  %1856 = vmatpush1.msra.mxu0 %v1855
  %1857 = vmatprep.subr.mxu0 0.0
  %1858 = vmatpush2.msra.mxu0 0.0
  %1859 = vmatprep.subr.mxu0 0.0
  %1860 = vmatpush2.msra.mxu0 0.0
  %1861 = vmatprep.subr.mxu0 0.0
  %1862 = vmatpush2.msra.mxu0 0.0
  %1863 = vmatprep.subr.mxu0 0.0
  %1864 = vmatpush2.msra.mxu0 0.0
  %1865 = vmatprep.subr.mxu0 0.0
  %1866 = vmatpush2.msra.mxu0 0.0
  %1867 = vmatprep.subr.mxu0 0.0
  %1868 = vmatpush2.msra.mxu0 0.0
  %1869 = vmatprep.subr.mxu0 0.0
  %1870 = vmatpush2.msra.mxu0 0.0
  %1871 = vmatprep.subr.mxu0 0.0
  %1872 = vmatpush2.msra.mxu0 0.0
  %1873 = vmatprep.subr.mxu0 0.0
  %1874 = vmatpush2.msra.mxu0 0.0
  %1875 = vmatprep.subr.mxu0 0.0
  %1876 = vmatpush2.msra.mxu0 0.0
  %1877 = vmatprep.subr.mxu0 0.0
  %1878 = vmatpush2.msra.mxu0 0.0
  %1879 = vmatprep.subr.mxu0 0.0
  %1880 = vmatpush2.msra.mxu0 0.0
  %1881 = vmatprep.subr.mxu0 0.0
  %1882 = vmatpush2.msra.mxu0 0.0
  %1883 = vmatprep.subr.mxu0 0.0
  %1884 = vmatpush2.msra.mxu0 0.0
  %1885 = vmatprep.subr.mxu0 0.0
  %1886 = vmatpush2.msra.mxu0 0.0
  %1887 = vmatprep.subr.mxu0 0.0
  %1888 = vmatpush2.msra.mxu0 0.0
  %1889 = vmatprep.mubr.f32.mxu0 0.0
  %v1890 = vand.u32 %v1409, 4294901760
  %1891 = vmatmul.mubr.f32.gmra.mxu0 %v1890
  %v1892 = vpop.f32.mrf.mxu0
  %v1893 = vadd.f32 %v1818, %v1892
  %v1894 = vpop.f32.mrf.mxu0
  %1895 = vdwg.mxu0
  %v1897 = vsel %vm367, %v1893, 0
  %1899 = vmatprep.subr.mxu0 0.0
  %1900 = vmatpush1.msra.mxu0 0.0
  %1901 = vmatprep.subr.mxu0 0.0
  %1902 = vmatpush1.msra.mxu0 0.0
  %1903 = vmatprep.subr.mxu0 0.0
  %1904 = vmatpush1.msra.mxu0 0.0
  %1905 = vmatprep.subr.mxu0 0.0
  %1906 = vmatpush1.msra.mxu0 0.0
  %1907 = vmatprep.subr.mxu0 0.0
  %1908 = vmatpush1.msra.mxu0 0.0
  %1909 = vmatprep.subr.mxu0 0.0
  %1910 = vmatpush1.msra.mxu0 0.0
  %1911 = vmatprep.subr.mxu0 0.0
  %1912 = vmatpush1.msra.mxu0 0.0
  %1913 = vmatprep.subr.mxu0 0.0
  %1914 = vmatpush1.msra.mxu0 0.0
  %1915 = vmatprep.subr.mxu0 0.0
  %1916 = vmatpush1.msra.mxu0 0.0
  %1917 = vmatprep.subr.mxu0 0.0
  %1918 = vmatpush1.msra.mxu0 0.0
  %1919 = vmatprep.subr.mxu0 0.0
  %1920 = vmatpush1.msra.mxu0 0.0
  %1921 = vmatprep.subr.mxu0 0.0
  %1922 = vmatpush1.msra.mxu0 0.0
  %1923 = vmatprep.subr.mxu0 0.0
  %v1924 = vand.u32 %v578, 4294901760
  %1925 = vmatpush1.msra.mxu0 %v1924
  %1926 = vmatprep.subr.mxu0 0.0
  %v1927 = vand.u32 %v577, 4294901760
  %1928 = vmatpush1.msra.mxu0 %v1927
  %1929 = vmatprep.subr.mxu0 0.0
  %v1930 = vand.u32 %v576, 4294901760
  %1931 = vmatpush1.msra.mxu0 %v1930
  %1932 = vmatprep.subr.mxu0 0.0
  %v1933 = vand.u32 %v575, 4294901760
  %1934 = vmatpush1.msra.mxu0 %v1933
  %1935 = vmatprep.subr.mxu0 0.0
  %1936 = vmatpush2.msra.mxu0 0.0
  %1937 = vmatprep.subr.mxu0 0.0
  %1938 = vmatpush2.msra.mxu0 0.0
  %1939 = vmatprep.subr.mxu0 0.0
  %1940 = vmatpush2.msra.mxu0 0.0
  %1941 = vmatprep.subr.mxu0 0.0
  %1942 = vmatpush2.msra.mxu0 0.0
  %1943 = vmatprep.subr.mxu0 0.0
  %1944 = vmatpush2.msra.mxu0 0.0
  %1945 = vmatprep.subr.mxu0 0.0
  %1946 = vmatpush2.msra.mxu0 0.0
  %1947 = vmatprep.subr.mxu0 0.0
  %1948 = vmatpush2.msra.mxu0 0.0
  %1949 = vmatprep.subr.mxu0 0.0
  %1950 = vmatpush2.msra.mxu0 0.0
  %1951 = vmatprep.subr.mxu0 0.0
  %1952 = vmatpush2.msra.mxu0 0.0
  %1953 = vmatprep.subr.mxu0 0.0
  %1954 = vmatpush2.msra.mxu0 0.0
  %1955 = vmatprep.subr.mxu0 0.0
  %1956 = vmatpush2.msra.mxu0 0.0
  %1957 = vmatprep.subr.mxu0 0.0
  %1958 = vmatpush2.msra.mxu0 0.0
  %1959 = vmatprep.subr.mxu0 0.0
  %1960 = vmatpush2.msra.mxu0 0.0
  %1961 = vmatprep.subr.mxu0 0.0
  %1962 = vmatpush2.msra.mxu0 0.0
  %1963 = vmatprep.subr.mxu0 0.0
  %1964 = vmatpush2.msra.mxu0 0.0
  %1965 = vmatprep.subr.mxu0 0.0
  %1966 = vmatpush2.msra.mxu0 0.0
  %1967 = vmatprep.mubr.f32.mxu0 0.0
  %v1968 = vand.u32 %v1897, 4294901760
  %v1969 = vsub.f32 %v1897, %v1968
  %v1970 = vand.u32 %v1969, 4294901760
  %v1971 = vsub.f32 %v1969, %v1970
  %v1972 = vand.u32 %v1971, 4294901760
  %1973 = vmatmul.mubr.f32.gmra.mxu0 %v1972
  %v1974 = vpop.f32.mrf.mxu0
  %v1975 = vadd.f32 0.0, %v1974
  %v1976 = vpop.f32.mrf.mxu0
  %1977 = vdwg.mxu0
  %1978 = vmatprep.subr.mxu0 0.0
  %1979 = vmatpush1.msra.mxu0 0.0
  %1980 = vmatprep.subr.mxu0 0.0
  %1981 = vmatpush1.msra.mxu0 0.0
  %1982 = vmatprep.subr.mxu0 0.0
  %1983 = vmatpush1.msra.mxu0 0.0
  %1984 = vmatprep.subr.mxu0 0.0
  %1985 = vmatpush1.msra.mxu0 0.0
  %1986 = vmatprep.subr.mxu0 0.0
  %1987 = vmatpush1.msra.mxu0 0.0
  %1988 = vmatprep.subr.mxu0 0.0
  %1989 = vmatpush1.msra.mxu0 0.0
  %1990 = vmatprep.subr.mxu0 0.0
  %1991 = vmatpush1.msra.mxu0 0.0
  %1992 = vmatprep.subr.mxu0 0.0
  %1993 = vmatpush1.msra.mxu0 0.0
  %1994 = vmatprep.subr.mxu0 0.0
  %1995 = vmatpush1.msra.mxu0 0.0
  %1996 = vmatprep.subr.mxu0 0.0
  %1997 = vmatpush1.msra.mxu0 0.0
  %1998 = vmatprep.subr.mxu0 0.0
  %1999 = vmatpush1.msra.mxu0 0.0
  %2000 = vmatprep.subr.mxu0 0.0
  %2001 = vmatpush1.msra.mxu0 0.0
  %2002 = vmatprep.subr.mxu0 0.0
  %v2003 = vand.u32 %v578, 4294901760
  %v2004 = vsub.f32 %v578, %v2003
  %v2005 = vand.u32 %v2004, 4294901760
  %v2006 = vsub.f32 %v2004, %v2005
  %v2007 = vand.u32 %v2006, 4294901760
  %2008 = vmatpush1.msra.mxu0 %v2007
  %2009 = vmatprep.subr.mxu0 0.0
  %v2010 = vand.u32 %v577, 4294901760
  %v2011 = vsub.f32 %v577, %v2010
  %v2012 = vand.u32 %v2011, 4294901760
  %v2013 = vsub.f32 %v2011, %v2012
  %v2014 = vand.u32 %v2013, 4294901760
  %2015 = vmatpush1.msra.mxu0 %v2014
  %2016 = vmatprep.subr.mxu0 0.0
  %v2017 = vand.u32 %v576, 4294901760
  %v2018 = vsub.f32 %v576, %v2017
  %v2019 = vand.u32 %v2018, 4294901760
  %v2020 = vsub.f32 %v2018, %v2019
  %v2021 = vand.u32 %v2020, 4294901760
  %2022 = vmatpush1.msra.mxu0 %v2021
  %2023 = vmatprep.subr.mxu0 0.0
  %v2024 = vand.u32 %v575, 4294901760
  %v2025 = vsub.f32 %v575, %v2024
  %v2026 = vand.u32 %v2025, 4294901760
  %v2027 = vsub.f32 %v2025, %v2026
  %v2028 = vand.u32 %v2027, 4294901760
  %2029 = vmatpush1.msra.mxu0 %v2028
  %2030 = vmatprep.subr.mxu0 0.0
  %2031 = vmatpush2.msra.mxu0 0.0
  %2032 = vmatprep.subr.mxu0 0.0
  %2033 = vmatpush2.msra.mxu0 0.0
  %2034 = vmatprep.subr.mxu0 0.0
  %2035 = vmatpush2.msra.mxu0 0.0
  %2036 = vmatprep.subr.mxu0 0.0
  %2037 = vmatpush2.msra.mxu0 0.0
  %2038 = vmatprep.subr.mxu0 0.0
  %2039 = vmatpush2.msra.mxu0 0.0
  %2040 = vmatprep.subr.mxu0 0.0
  %2041 = vmatpush2.msra.mxu0 0.0
  %2042 = vmatprep.subr.mxu0 0.0
  %2043 = vmatpush2.msra.mxu0 0.0
  %2044 = vmatprep.subr.mxu0 0.0
  %2045 = vmatpush2.msra.mxu0 0.0
  %2046 = vmatprep.subr.mxu0 0.0
  %2047 = vmatpush2.msra.mxu0 0.0
  %2048 = vmatprep.subr.mxu0 0.0
  %2049 = vmatpush2.msra.mxu0 0.0
  %2050 = vmatprep.subr.mxu0 0.0
  %2051 = vmatpush2.msra.mxu0 0.0
  %2052 = vmatprep.subr.mxu0 0.0
  %2053 = vmatpush2.msra.mxu0 0.0
  %2054 = vmatprep.subr.mxu0 0.0
  %2055 = vmatpush2.msra.mxu0 0.0
  %2056 = vmatprep.subr.mxu0 0.0
  %2057 = vmatpush2.msra.mxu0 0.0
  %2058 = vmatprep.subr.mxu0 0.0
  %2059 = vmatpush2.msra.mxu0 0.0
  %2060 = vmatprep.subr.mxu0 0.0
  %2061 = vmatpush2.msra.mxu0 0.0
  %2062 = vmatprep.mubr.f32.mxu0 0.0
  %v2063 = vand.u32 %v1897, 4294901760
  %2064 = vmatmul.mubr.f32.gmra.mxu0 %v2063
  %v2065 = vpop.f32.mrf.mxu0
  %v2066 = vadd.f32 %v1975, %v2065
  %v2067 = vpop.f32.mrf.mxu0
  %2068 = vdwg.mxu0
  %2069 = vmatprep.subr.mxu0 0.0
  %2070 = vmatpush1.msra.mxu0 0.0
  %2071 = vmatprep.subr.mxu0 0.0
  %2072 = vmatpush1.msra.mxu0 0.0
  %2073 = vmatprep.subr.mxu0 0.0
  %2074 = vmatpush1.msra.mxu0 0.0
  %2075 = vmatprep.subr.mxu0 0.0
  %2076 = vmatpush1.msra.mxu0 0.0
  %2077 = vmatprep.subr.mxu0 0.0
  %2078 = vmatpush1.msra.mxu0 0.0
  %2079 = vmatprep.subr.mxu0 0.0
  %2080 = vmatpush1.msra.mxu0 0.0
  %2081 = vmatprep.subr.mxu0 0.0
  %2082 = vmatpush1.msra.mxu0 0.0
  %2083 = vmatprep.subr.mxu0 0.0
  %2084 = vmatpush1.msra.mxu0 0.0
  %2085 = vmatprep.subr.mxu0 0.0
  %2086 = vmatpush1.msra.mxu0 0.0
  %2087 = vmatprep.subr.mxu0 0.0
  %2088 = vmatpush1.msra.mxu0 0.0
  %2089 = vmatprep.subr.mxu0 0.0
  %2090 = vmatpush1.msra.mxu0 0.0
  %2091 = vmatprep.subr.mxu0 0.0
  %2092 = vmatpush1.msra.mxu0 0.0
  %2093 = vmatprep.subr.mxu0 0.0
  %v2094 = vand.u32 %v578, 4294901760
  %v2095 = vsub.f32 %v578, %v2094
  %2096 = vmatpush1.msra.mxu0 %v2095
  %2097 = vmatprep.subr.mxu0 0.0
  %v2098 = vand.u32 %v577, 4294901760
  %v2099 = vsub.f32 %v577, %v2098
  %2100 = vmatpush1.msra.mxu0 %v2099
  %2101 = vmatprep.subr.mxu0 0.0
  %v2102 = vand.u32 %v576, 4294901760
  %v2103 = vsub.f32 %v576, %v2102
  %2104 = vmatpush1.msra.mxu0 %v2103
  %2105 = vmatprep.subr.mxu0 0.0
  %v2106 = vand.u32 %v575, 4294901760
  %v2107 = vsub.f32 %v575, %v2106
  %2108 = vmatpush1.msra.mxu0 %v2107
  %2109 = vmatprep.subr.mxu0 0.0
  %2110 = vmatpush2.msra.mxu0 0.0
  %2111 = vmatprep.subr.mxu0 0.0
  %2112 = vmatpush2.msra.mxu0 0.0
  %2113 = vmatprep.subr.mxu0 0.0
  %2114 = vmatpush2.msra.mxu0 0.0
  %2115 = vmatprep.subr.mxu0 0.0
  %2116 = vmatpush2.msra.mxu0 0.0
  %2117 = vmatprep.subr.mxu0 0.0
  %2118 = vmatpush2.msra.mxu0 0.0
  %2119 = vmatprep.subr.mxu0 0.0
  %2120 = vmatpush2.msra.mxu0 0.0
  %2121 = vmatprep.subr.mxu0 0.0
  %2122 = vmatpush2.msra.mxu0 0.0
  %2123 = vmatprep.subr.mxu0 0.0
  %2124 = vmatpush2.msra.mxu0 0.0
  %2125 = vmatprep.subr.mxu0 0.0
  %2126 = vmatpush2.msra.mxu0 0.0
  %2127 = vmatprep.subr.mxu0 0.0
  %2128 = vmatpush2.msra.mxu0 0.0
  %2129 = vmatprep.subr.mxu0 0.0
  %2130 = vmatpush2.msra.mxu0 0.0
  %2131 = vmatprep.subr.mxu0 0.0
  %2132 = vmatpush2.msra.mxu0 0.0
  %2133 = vmatprep.subr.mxu0 0.0
  %2134 = vmatpush2.msra.mxu0 0.0
  %2135 = vmatprep.subr.mxu0 0.0
  %2136 = vmatpush2.msra.mxu0 0.0
  %2137 = vmatprep.subr.mxu0 0.0
  %2138 = vmatpush2.msra.mxu0 0.0
  %2139 = vmatprep.subr.mxu0 0.0
  %2140 = vmatpush2.msra.mxu0 0.0
  %2141 = vmatprep.mubr.f32.mxu0 0.0
  %v2142 = vand.u32 %v1897, 4294901760
  %v2143 = vsub.f32 %v1897, %v2142
  %2144 = vmatmul.mubr.f32.gmra.mxu0 %v2143
  %v2145 = vpop.f32.mrf.mxu0
  %v2146 = vadd.f32 %v2066, %v2145
  %v2147 = vpop.f32.mrf.mxu0
  %2148 = vdwg.mxu0
  %2149 = vmatprep.subr.mxu0 0.0
  %2150 = vmatpush1.msra.mxu0 0.0
  %2151 = vmatprep.subr.mxu0 0.0
  %2152 = vmatpush1.msra.mxu0 0.0
  %2153 = vmatprep.subr.mxu0 0.0
  %2154 = vmatpush1.msra.mxu0 0.0
  %2155 = vmatprep.subr.mxu0 0.0
  %2156 = vmatpush1.msra.mxu0 0.0
  %2157 = vmatprep.subr.mxu0 0.0
  %2158 = vmatpush1.msra.mxu0 0.0
  %2159 = vmatprep.subr.mxu0 0.0
  %2160 = vmatpush1.msra.mxu0 0.0
  %2161 = vmatprep.subr.mxu0 0.0
  %2162 = vmatpush1.msra.mxu0 0.0
  %2163 = vmatprep.subr.mxu0 0.0
  %2164 = vmatpush1.msra.mxu0 0.0
  %2165 = vmatprep.subr.mxu0 0.0
  %2166 = vmatpush1.msra.mxu0 0.0
  %2167 = vmatprep.subr.mxu0 0.0
  %2168 = vmatpush1.msra.mxu0 0.0
  %2169 = vmatprep.subr.mxu0 0.0
  %2170 = vmatpush1.msra.mxu0 0.0
  %2171 = vmatprep.subr.mxu0 0.0
  %2172 = vmatpush1.msra.mxu0 0.0
  %2173 = vmatprep.subr.mxu0 0.0
  %v2174 = vand.u32 %v578, 4294901760
  %2175 = vmatpush1.msra.mxu0 %v2174
  %2176 = vmatprep.subr.mxu0 0.0
  %v2177 = vand.u32 %v577, 4294901760
  %2178 = vmatpush1.msra.mxu0 %v2177
  %2179 = vmatprep.subr.mxu0 0.0
  %v2180 = vand.u32 %v576, 4294901760
  %2181 = vmatpush1.msra.mxu0 %v2180
  %2182 = vmatprep.subr.mxu0 0.0
  %v2183 = vand.u32 %v575, 4294901760
  %2184 = vmatpush1.msra.mxu0 %v2183
  %2185 = vmatprep.subr.mxu0 0.0
  %2186 = vmatpush2.msra.mxu0 0.0
  %2187 = vmatprep.subr.mxu0 0.0
  %2188 = vmatpush2.msra.mxu0 0.0
  %2189 = vmatprep.subr.mxu0 0.0
  %2190 = vmatpush2.msra.mxu0 0.0
  %2191 = vmatprep.subr.mxu0 0.0
  %2192 = vmatpush2.msra.mxu0 0.0
  %2193 = vmatprep.subr.mxu0 0.0
  %2194 = vmatpush2.msra.mxu0 0.0
  %2195 = vmatprep.subr.mxu0 0.0
  %2196 = vmatpush2.msra.mxu0 0.0
  %2197 = vmatprep.subr.mxu0 0.0
  %2198 = vmatpush2.msra.mxu0 0.0
  %2199 = vmatprep.subr.mxu0 0.0
  %2200 = vmatpush2.msra.mxu0 0.0
  %2201 = vmatprep.subr.mxu0 0.0
  %2202 = vmatpush2.msra.mxu0 0.0
  %2203 = vmatprep.subr.mxu0 0.0
  %2204 = vmatpush2.msra.mxu0 0.0
  %2205 = vmatprep.subr.mxu0 0.0
  %2206 = vmatpush2.msra.mxu0 0.0
  %2207 = vmatprep.subr.mxu0 0.0
  %2208 = vmatpush2.msra.mxu0 0.0
  %2209 = vmatprep.subr.mxu0 0.0
  %2210 = vmatpush2.msra.mxu0 0.0
  %2211 = vmatprep.subr.mxu0 0.0
  %2212 = vmatpush2.msra.mxu0 0.0
  %2213 = vmatprep.subr.mxu0 0.0
  %2214 = vmatpush2.msra.mxu0 0.0
  %2215 = vmatprep.subr.mxu0 0.0
  %2216 = vmatpush2.msra.mxu0 0.0
  %2217 = vmatprep.mubr.f32.mxu0 0.0
  %v2218 = vand.u32 %v1897, 4294901760
  %v2219 = vsub.f32 %v1897, %v2218
  %v2220 = vand.u32 %v2219, 4294901760
  %2221 = vmatmul.mubr.f32.gmra.mxu0 %v2220
  %v2222 = vpop.f32.mrf.mxu0
  %v2223 = vadd.f32 %v2146, %v2222
  %v2224 = vpop.f32.mrf.mxu0
  %2225 = vdwg.mxu0
  %2226 = vmatprep.subr.mxu0 0.0
  %2227 = vmatpush1.msra.mxu0 0.0
  %2228 = vmatprep.subr.mxu0 0.0
  %2229 = vmatpush1.msra.mxu0 0.0
  %2230 = vmatprep.subr.mxu0 0.0
  %2231 = vmatpush1.msra.mxu0 0.0
  %2232 = vmatprep.subr.mxu0 0.0
  %2233 = vmatpush1.msra.mxu0 0.0
  %2234 = vmatprep.subr.mxu0 0.0
  %2235 = vmatpush1.msra.mxu0 0.0
  %2236 = vmatprep.subr.mxu0 0.0
  %2237 = vmatpush1.msra.mxu0 0.0
  %2238 = vmatprep.subr.mxu0 0.0
  %2239 = vmatpush1.msra.mxu0 0.0
  %2240 = vmatprep.subr.mxu0 0.0
  %2241 = vmatpush1.msra.mxu0 0.0
  %2242 = vmatprep.subr.mxu0 0.0
  %2243 = vmatpush1.msra.mxu0 0.0
  %2244 = vmatprep.subr.mxu0 0.0
  %2245 = vmatpush1.msra.mxu0 0.0
  %2246 = vmatprep.subr.mxu0 0.0
  %2247 = vmatpush1.msra.mxu0 0.0
  %2248 = vmatprep.subr.mxu0 0.0
  %2249 = vmatpush1.msra.mxu0 0.0
  %2250 = vmatprep.subr.mxu0 0.0
  %v2251 = vand.u32 %v578, 4294901760
  %v2252 = vsub.f32 %v578, %v2251
  %v2253 = vand.u32 %v2252, 4294901760
  %2254 = vmatpush1.msra.mxu0 %v2253
  %2255 = vmatprep.subr.mxu0 0.0
  %v2256 = vand.u32 %v577, 4294901760
  %v2257 = vsub.f32 %v577, %v2256
  %v2258 = vand.u32 %v2257, 4294901760
  %2259 = vmatpush1.msra.mxu0 %v2258
  %2260 = vmatprep.subr.mxu0 0.0
  %v2261 = vand.u32 %v576, 4294901760
  %v2262 = vsub.f32 %v576, %v2261
  %v2263 = vand.u32 %v2262, 4294901760
  %2264 = vmatpush1.msra.mxu0 %v2263
  %2265 = vmatprep.subr.mxu0 0.0
  %v2266 = vand.u32 %v575, 4294901760
  %v2267 = vsub.f32 %v575, %v2266
  %v2268 = vand.u32 %v2267, 4294901760
  %2269 = vmatpush1.msra.mxu0 %v2268
  %2270 = vmatprep.subr.mxu0 0.0
  %2271 = vmatpush2.msra.mxu0 0.0
  %2272 = vmatprep.subr.mxu0 0.0
  %2273 = vmatpush2.msra.mxu0 0.0
  %2274 = vmatprep.subr.mxu0 0.0
  %2275 = vmatpush2.msra.mxu0 0.0
  %2276 = vmatprep.subr.mxu0 0.0
  %2277 = vmatpush2.msra.mxu0 0.0
  %2278 = vmatprep.subr.mxu0 0.0
  %2279 = vmatpush2.msra.mxu0 0.0
  %2280 = vmatprep.subr.mxu0 0.0
  %2281 = vmatpush2.msra.mxu0 0.0
  %2282 = vmatprep.subr.mxu0 0.0
  %2283 = vmatpush2.msra.mxu0 0.0
  %2284 = vmatprep.subr.mxu0 0.0
  %2285 = vmatpush2.msra.mxu0 0.0
  %2286 = vmatprep.subr.mxu0 0.0
  %2287 = vmatpush2.msra.mxu0 0.0
  %2288 = vmatprep.subr.mxu0 0.0
  %2289 = vmatpush2.msra.mxu0 0.0
  %2290 = vmatprep.subr.mxu0 0.0
  %2291 = vmatpush2.msra.mxu0 0.0
  %2292 = vmatprep.subr.mxu0 0.0
  %2293 = vmatpush2.msra.mxu0 0.0
  %2294 = vmatprep.subr.mxu0 0.0
  %2295 = vmatpush2.msra.mxu0 0.0
  %2296 = vmatprep.subr.mxu0 0.0
  %2297 = vmatpush2.msra.mxu0 0.0
  %2298 = vmatprep.subr.mxu0 0.0
  %2299 = vmatpush2.msra.mxu0 0.0
  %2300 = vmatprep.subr.mxu0 0.0
  %2301 = vmatpush2.msra.mxu0 0.0
  %2302 = vmatprep.mubr.f32.mxu0 0.0
  %v2303 = vand.u32 %v1897, 4294901760
  %2304 = vmatmul.mubr.f32.gmra.mxu0 %v2303
  %v2305 = vpop.f32.mrf.mxu0
  %v2306 = vadd.f32 %v2223, %v2305
  %v2307 = vpop.f32.mrf.mxu0
  %2308 = vdwg.mxu0
  %2309 = vmatprep.subr.mxu0 0.0
  %2310 = vmatpush1.msra.mxu0 0.0
  %2311 = vmatprep.subr.mxu0 0.0
  %2312 = vmatpush1.msra.mxu0 0.0
  %2313 = vmatprep.subr.mxu0 0.0
  %2314 = vmatpush1.msra.mxu0 0.0
  %2315 = vmatprep.subr.mxu0 0.0
  %2316 = vmatpush1.msra.mxu0 0.0
  %2317 = vmatprep.subr.mxu0 0.0
  %2318 = vmatpush1.msra.mxu0 0.0
  %2319 = vmatprep.subr.mxu0 0.0
  %2320 = vmatpush1.msra.mxu0 0.0
  %2321 = vmatprep.subr.mxu0 0.0
  %2322 = vmatpush1.msra.mxu0 0.0
  %2323 = vmatprep.subr.mxu0 0.0
  %2324 = vmatpush1.msra.mxu0 0.0
  %2325 = vmatprep.subr.mxu0 0.0
  %2326 = vmatpush1.msra.mxu0 0.0
  %2327 = vmatprep.subr.mxu0 0.0
  %2328 = vmatpush1.msra.mxu0 0.0
  %2329 = vmatprep.subr.mxu0 0.0
  %2330 = vmatpush1.msra.mxu0 0.0
  %2331 = vmatprep.subr.mxu0 0.0
  %2332 = vmatpush1.msra.mxu0 0.0
  %2333 = vmatprep.subr.mxu0 0.0
  %v2334 = vand.u32 %v578, 4294901760
  %2335 = vmatpush1.msra.mxu0 %v2334
  %2336 = vmatprep.subr.mxu0 0.0
  %v2337 = vand.u32 %v577, 4294901760
  %2338 = vmatpush1.msra.mxu0 %v2337
  %2339 = vmatprep.subr.mxu0 0.0
  %v2340 = vand.u32 %v576, 4294901760
  %2341 = vmatpush1.msra.mxu0 %v2340
  %2342 = vmatprep.subr.mxu0 0.0
  %v2343 = vand.u32 %v575, 4294901760
  %2344 = vmatpush1.msra.mxu0 %v2343
  %2345 = vmatprep.subr.mxu0 0.0
  %2346 = vmatpush2.msra.mxu0 0.0
  %2347 = vmatprep.subr.mxu0 0.0
  %2348 = vmatpush2.msra.mxu0 0.0
  %2349 = vmatprep.subr.mxu0 0.0
  %2350 = vmatpush2.msra.mxu0 0.0
  %2351 = vmatprep.subr.mxu0 0.0
  %2352 = vmatpush2.msra.mxu0 0.0
  %2353 = vmatprep.subr.mxu0 0.0
  %2354 = vmatpush2.msra.mxu0 0.0
  %2355 = vmatprep.subr.mxu0 0.0
  %2356 = vmatpush2.msra.mxu0 0.0
  %2357 = vmatprep.subr.mxu0 0.0
  %2358 = vmatpush2.msra.mxu0 0.0
  %2359 = vmatprep.subr.mxu0 0.0
  %2360 = vmatpush2.msra.mxu0 0.0
  %2361 = vmatprep.subr.mxu0 0.0
  %2362 = vmatpush2.msra.mxu0 0.0
  %2363 = vmatprep.subr.mxu0 0.0
  %2364 = vmatpush2.msra.mxu0 0.0
  %2365 = vmatprep.subr.mxu0 0.0
  %2366 = vmatpush2.msra.mxu0 0.0
  %2367 = vmatprep.subr.mxu0 0.0
  %2368 = vmatpush2.msra.mxu0 0.0
  %2369 = vmatprep.subr.mxu0 0.0
  %2370 = vmatpush2.msra.mxu0 0.0
  %2371 = vmatprep.subr.mxu0 0.0
  %2372 = vmatpush2.msra.mxu0 0.0
  %2373 = vmatprep.subr.mxu0 0.0
  %2374 = vmatpush2.msra.mxu0 0.0
  %2375 = vmatprep.subr.mxu0 0.0
  %2376 = vmatpush2.msra.mxu0 0.0
  %2377 = vmatprep.mubr.f32.mxu0 0.0
  %v2378 = vand.u32 %v1897, 4294901760
  %2379 = vmatmul.mubr.f32.gmra.mxu0 %v2378
  %v2380 = vpop.f32.mrf.mxu0
  %v2381 = vadd.f32 %v2306, %v2380
  %v2382 = vpop.f32.mrf.mxu0
  %2383 = vdwg.mxu0
  %v2385 = vsel %vm367, %v2381, 0
  %2387 = vmatprep.subr.mxu0 0.0
  %2388 = vmatpush1.msra.mxu0 0.0
  %2389 = vmatprep.subr.mxu0 0.0
  %2390 = vmatpush1.msra.mxu0 0.0
  %2391 = vmatprep.subr.mxu0 0.0
  %2392 = vmatpush1.msra.mxu0 0.0
  %2393 = vmatprep.subr.mxu0 0.0
  %2394 = vmatpush1.msra.mxu0 0.0
  %2395 = vmatprep.subr.mxu0 0.0
  %2396 = vmatpush1.msra.mxu0 0.0
  %2397 = vmatprep.subr.mxu0 0.0
  %2398 = vmatpush1.msra.mxu0 0.0
  %2399 = vmatprep.subr.mxu0 0.0
  %2400 = vmatpush1.msra.mxu0 0.0
  %2401 = vmatprep.subr.mxu0 0.0
  %2402 = vmatpush1.msra.mxu0 0.0
  %2403 = vmatprep.subr.mxu0 0.0
  %2404 = vmatpush1.msra.mxu0 0.0
  %2405 = vmatprep.subr.mxu0 0.0
  %2406 = vmatpush1.msra.mxu0 0.0
  %2407 = vmatprep.subr.mxu0 0.0
  %2408 = vmatpush1.msra.mxu0 0.0
  %2409 = vmatprep.subr.mxu0 0.0
  %2410 = vmatpush1.msra.mxu0 0.0
  %2411 = vmatprep.subr.mxu0 0.0
  %v2412 = vand.u32 %v411, 4294901760
  %2413 = vmatpush1.msra.mxu0 %v2412
  %2414 = vmatprep.subr.mxu0 0.0
  %v2415 = vand.u32 %v410, 4294901760
  %2416 = vmatpush1.msra.mxu0 %v2415
  %2417 = vmatprep.subr.mxu0 0.0
  %v2418 = vand.u32 %v409, 4294901760
  %2419 = vmatpush1.msra.mxu0 %v2418
  %2420 = vmatprep.subr.mxu0 0.0
  %v2421 = vand.u32 %v408, 4294901760
  %2422 = vmatpush1.msra.mxu0 %v2421
  %2423 = vmatprep.subr.mxu0 0.0
  %2424 = vmatpush2.msra.mxu0 0.0
  %2425 = vmatprep.subr.mxu0 0.0
  %2426 = vmatpush2.msra.mxu0 0.0
  %2427 = vmatprep.subr.mxu0 0.0
  %2428 = vmatpush2.msra.mxu0 0.0
  %2429 = vmatprep.subr.mxu0 0.0
  %2430 = vmatpush2.msra.mxu0 0.0
  %2431 = vmatprep.subr.mxu0 0.0
  %2432 = vmatpush2.msra.mxu0 0.0
  %2433 = vmatprep.subr.mxu0 0.0
  %2434 = vmatpush2.msra.mxu0 0.0
  %2435 = vmatprep.subr.mxu0 0.0
  %2436 = vmatpush2.msra.mxu0 0.0
  %2437 = vmatprep.subr.mxu0 0.0
  %2438 = vmatpush2.msra.mxu0 0.0
  %2439 = vmatprep.subr.mxu0 0.0
  %2440 = vmatpush2.msra.mxu0 0.0
  %2441 = vmatprep.subr.mxu0 0.0
  %2442 = vmatpush2.msra.mxu0 0.0
  %2443 = vmatprep.subr.mxu0 0.0
  %2444 = vmatpush2.msra.mxu0 0.0
  %2445 = vmatprep.subr.mxu0 0.0
  %2446 = vmatpush2.msra.mxu0 0.0
  %2447 = vmatprep.subr.mxu0 0.0
  %2448 = vmatpush2.msra.mxu0 0.0
  %2449 = vmatprep.subr.mxu0 0.0
  %2450 = vmatpush2.msra.mxu0 0.0
  %2451 = vmatprep.subr.mxu0 0.0
  %2452 = vmatpush2.msra.mxu0 0.0
  %2453 = vmatprep.subr.mxu0 0.0
  %2454 = vmatpush2.msra.mxu0 0.0
  %2455 = vmatprep.mubr.f32.mxu0 0.0
  %v2456 = vand.u32 %v2385, 4294901760
  %v2457 = vsub.f32 %v2385, %v2456
  %v2458 = vand.u32 %v2457, 4294901760
  %v2459 = vsub.f32 %v2457, %v2458
  %v2460 = vand.u32 %v2459, 4294901760
  %2461 = vmatmul.mubr.f32.gmra.mxu0 %v2460
  %v2462 = vpop.f32.mrf.mxu0
  %v2463 = vadd.f32 %v918, %v2462
  %v2464 = vpop.f32.mrf.mxu0
  %2465 = vdwg.mxu0
  %2466 = vmatprep.subr.mxu0 0.0
  %2467 = vmatpush1.msra.mxu0 0.0
  %2468 = vmatprep.subr.mxu0 0.0
  %2469 = vmatpush1.msra.mxu0 0.0
  %2470 = vmatprep.subr.mxu0 0.0
  %2471 = vmatpush1.msra.mxu0 0.0
  %2472 = vmatprep.subr.mxu0 0.0
  %2473 = vmatpush1.msra.mxu0 0.0
  %2474 = vmatprep.subr.mxu0 0.0
  %2475 = vmatpush1.msra.mxu0 0.0
  %2476 = vmatprep.subr.mxu0 0.0
  %2477 = vmatpush1.msra.mxu0 0.0
  %2478 = vmatprep.subr.mxu0 0.0
  %2479 = vmatpush1.msra.mxu0 0.0
  %2480 = vmatprep.subr.mxu0 0.0
  %2481 = vmatpush1.msra.mxu0 0.0
  %2482 = vmatprep.subr.mxu0 0.0
  %2483 = vmatpush1.msra.mxu0 0.0
  %2484 = vmatprep.subr.mxu0 0.0
  %2485 = vmatpush1.msra.mxu0 0.0
  %2486 = vmatprep.subr.mxu0 0.0
  %2487 = vmatpush1.msra.mxu0 0.0
  %2488 = vmatprep.subr.mxu0 0.0
  %2489 = vmatpush1.msra.mxu0 0.0
  %2490 = vmatprep.subr.mxu0 0.0
  %v2491 = vand.u32 %v411, 4294901760
  %v2492 = vsub.f32 %v411, %v2491
  %v2493 = vand.u32 %v2492, 4294901760
  %v2494 = vsub.f32 %v2492, %v2493
  %v2495 = vand.u32 %v2494, 4294901760
  %2496 = vmatpush1.msra.mxu0 %v2495
  %2497 = vmatprep.subr.mxu0 0.0
  %v2498 = vand.u32 %v410, 4294901760
  %v2499 = vsub.f32 %v410, %v2498
  %v2500 = vand.u32 %v2499, 4294901760
  %v2501 = vsub.f32 %v2499, %v2500
  %v2502 = vand.u32 %v2501, 4294901760
  %2503 = vmatpush1.msra.mxu0 %v2502
  %2504 = vmatprep.subr.mxu0 0.0
  %v2505 = vand.u32 %v409, 4294901760
  %v2506 = vsub.f32 %v409, %v2505
  %v2507 = vand.u32 %v2506, 4294901760
  %v2508 = vsub.f32 %v2506, %v2507
  %v2509 = vand.u32 %v2508, 4294901760
  %2510 = vmatpush1.msra.mxu0 %v2509
  %2511 = vmatprep.subr.mxu0 0.0
  %v2512 = vand.u32 %v408, 4294901760
  %v2513 = vsub.f32 %v408, %v2512
  %v2514 = vand.u32 %v2513, 4294901760
  %v2515 = vsub.f32 %v2513, %v2514
  %v2516 = vand.u32 %v2515, 4294901760
  %2517 = vmatpush1.msra.mxu0 %v2516
  %2518 = vmatprep.subr.mxu0 0.0
  %2519 = vmatpush2.msra.mxu0 0.0
  %2520 = vmatprep.subr.mxu0 0.0
  %2521 = vmatpush2.msra.mxu0 0.0
  %2522 = vmatprep.subr.mxu0 0.0
  %2523 = vmatpush2.msra.mxu0 0.0
  %2524 = vmatprep.subr.mxu0 0.0
  %2525 = vmatpush2.msra.mxu0 0.0
  %2526 = vmatprep.subr.mxu0 0.0
  %2527 = vmatpush2.msra.mxu0 0.0
  %2528 = vmatprep.subr.mxu0 0.0
  %2529 = vmatpush2.msra.mxu0 0.0
  %2530 = vmatprep.subr.mxu0 0.0
  %2531 = vmatpush2.msra.mxu0 0.0
  %2532 = vmatprep.subr.mxu0 0.0
  %2533 = vmatpush2.msra.mxu0 0.0
  %2534 = vmatprep.subr.mxu0 0.0
  %2535 = vmatpush2.msra.mxu0 0.0
  %2536 = vmatprep.subr.mxu0 0.0
  %2537 = vmatpush2.msra.mxu0 0.0
  %2538 = vmatprep.subr.mxu0 0.0
  %2539 = vmatpush2.msra.mxu0 0.0
  %2540 = vmatprep.subr.mxu0 0.0
  %2541 = vmatpush2.msra.mxu0 0.0
  %2542 = vmatprep.subr.mxu0 0.0
  %2543 = vmatpush2.msra.mxu0 0.0
  %2544 = vmatprep.subr.mxu0 0.0
  %2545 = vmatpush2.msra.mxu0 0.0
  %2546 = vmatprep.subr.mxu0 0.0
  %2547 = vmatpush2.msra.mxu0 0.0
  %2548 = vmatprep.subr.mxu0 0.0
  %2549 = vmatpush2.msra.mxu0 0.0
  %2550 = vmatprep.mubr.f32.mxu0 0.0
  %v2551 = vand.u32 %v2385, 4294901760
  %2552 = vmatmul.mubr.f32.gmra.mxu0 %v2551
  %v2553 = vpop.f32.mrf.mxu0
  %v2554 = vadd.f32 %v2463, %v2553
  %v2555 = vpop.f32.mrf.mxu0
  %2556 = vdwg.mxu0
  %2557 = vmatprep.subr.mxu0 0.0
  %2558 = vmatpush1.msra.mxu0 0.0
  %2559 = vmatprep.subr.mxu0 0.0
  %2560 = vmatpush1.msra.mxu0 0.0
  %2561 = vmatprep.subr.mxu0 0.0
  %2562 = vmatpush1.msra.mxu0 0.0
  %2563 = vmatprep.subr.mxu0 0.0
  %2564 = vmatpush1.msra.mxu0 0.0
  %2565 = vmatprep.subr.mxu0 0.0
  %2566 = vmatpush1.msra.mxu0 0.0
  %2567 = vmatprep.subr.mxu0 0.0
  %2568 = vmatpush1.msra.mxu0 0.0
  %2569 = vmatprep.subr.mxu0 0.0
  %2570 = vmatpush1.msra.mxu0 0.0
  %2571 = vmatprep.subr.mxu0 0.0
  %2572 = vmatpush1.msra.mxu0 0.0
  %2573 = vmatprep.subr.mxu0 0.0
  %2574 = vmatpush1.msra.mxu0 0.0
  %2575 = vmatprep.subr.mxu0 0.0
  %2576 = vmatpush1.msra.mxu0 0.0
  %2577 = vmatprep.subr.mxu0 0.0
  %2578 = vmatpush1.msra.mxu0 0.0
  %2579 = vmatprep.subr.mxu0 0.0
  %2580 = vmatpush1.msra.mxu0 0.0
  %2581 = vmatprep.subr.mxu0 0.0
  %v2582 = vand.u32 %v411, 4294901760
  %v2583 = vsub.f32 %v411, %v2582
  %2584 = vmatpush1.msra.mxu0 %v2583
  %2585 = vmatprep.subr.mxu0 0.0
  %v2586 = vand.u32 %v410, 4294901760
  %v2587 = vsub.f32 %v410, %v2586
  %2588 = vmatpush1.msra.mxu0 %v2587
  %2589 = vmatprep.subr.mxu0 0.0
  %v2590 = vand.u32 %v409, 4294901760
  %v2591 = vsub.f32 %v409, %v2590
  %2592 = vmatpush1.msra.mxu0 %v2591
  %2593 = vmatprep.subr.mxu0 0.0
  %v2594 = vand.u32 %v408, 4294901760
  %v2595 = vsub.f32 %v408, %v2594
  %2596 = vmatpush1.msra.mxu0 %v2595
  %2597 = vmatprep.subr.mxu0 0.0
  %2598 = vmatpush2.msra.mxu0 0.0
  %2599 = vmatprep.subr.mxu0 0.0
  %2600 = vmatpush2.msra.mxu0 0.0
  %2601 = vmatprep.subr.mxu0 0.0
  %2602 = vmatpush2.msra.mxu0 0.0
  %2603 = vmatprep.subr.mxu0 0.0
  %2604 = vmatpush2.msra.mxu0 0.0
  %2605 = vmatprep.subr.mxu0 0.0
  %2606 = vmatpush2.msra.mxu0 0.0
  %2607 = vmatprep.subr.mxu0 0.0
  %2608 = vmatpush2.msra.mxu0 0.0
  %2609 = vmatprep.subr.mxu0 0.0
  %2610 = vmatpush2.msra.mxu0 0.0
  %2611 = vmatprep.subr.mxu0 0.0
  %2612 = vmatpush2.msra.mxu0 0.0
  %2613 = vmatprep.subr.mxu0 0.0
  %2614 = vmatpush2.msra.mxu0 0.0
  %2615 = vmatprep.subr.mxu0 0.0
  %2616 = vmatpush2.msra.mxu0 0.0
  %2617 = vmatprep.subr.mxu0 0.0
  %2618 = vmatpush2.msra.mxu0 0.0
  %2619 = vmatprep.subr.mxu0 0.0
  %2620 = vmatpush2.msra.mxu0 0.0
  %2621 = vmatprep.subr.mxu0 0.0
  %2622 = vmatpush2.msra.mxu0 0.0
  %2623 = vmatprep.subr.mxu0 0.0
  %2624 = vmatpush2.msra.mxu0 0.0
  %2625 = vmatprep.subr.mxu0 0.0
  %2626 = vmatpush2.msra.mxu0 0.0
  %2627 = vmatprep.subr.mxu0 0.0
  %2628 = vmatpush2.msra.mxu0 0.0
  %2629 = vmatprep.mubr.f32.mxu0 0.0
  %v2630 = vand.u32 %v2385, 4294901760
  %v2631 = vsub.f32 %v2385, %v2630
  %2632 = vmatmul.mubr.f32.gmra.mxu0 %v2631
  %v2633 = vpop.f32.mrf.mxu0
  %v2634 = vadd.f32 %v2554, %v2633
  %v2635 = vpop.f32.mrf.mxu0
  %2636 = vdwg.mxu0
  %2637 = vmatprep.subr.mxu0 0.0
  %2638 = vmatpush1.msra.mxu0 0.0
  %2639 = vmatprep.subr.mxu0 0.0
  %2640 = vmatpush1.msra.mxu0 0.0
  %2641 = vmatprep.subr.mxu0 0.0
  %2642 = vmatpush1.msra.mxu0 0.0
  %2643 = vmatprep.subr.mxu0 0.0
  %2644 = vmatpush1.msra.mxu0 0.0
  %2645 = vmatprep.subr.mxu0 0.0
  %2646 = vmatpush1.msra.mxu0 0.0
  %2647 = vmatprep.subr.mxu0 0.0
  %2648 = vmatpush1.msra.mxu0 0.0
  %2649 = vmatprep.subr.mxu0 0.0
  %2650 = vmatpush1.msra.mxu0 0.0
  %2651 = vmatprep.subr.mxu0 0.0
  %2652 = vmatpush1.msra.mxu0 0.0
  %2653 = vmatprep.subr.mxu0 0.0
  %2654 = vmatpush1.msra.mxu0 0.0
  %2655 = vmatprep.subr.mxu0 0.0
  %2656 = vmatpush1.msra.mxu0 0.0
  %2657 = vmatprep.subr.mxu0 0.0
  %2658 = vmatpush1.msra.mxu0 0.0
  %2659 = vmatprep.subr.mxu0 0.0
  %2660 = vmatpush1.msra.mxu0 0.0
  %2661 = vmatprep.subr.mxu0 0.0
  %v2662 = vand.u32 %v411, 4294901760
  %2663 = vmatpush1.msra.mxu0 %v2662
  %2664 = vmatprep.subr.mxu0 0.0
  %v2665 = vand.u32 %v410, 4294901760
  %2666 = vmatpush1.msra.mxu0 %v2665
  %2667 = vmatprep.subr.mxu0 0.0
  %v2668 = vand.u32 %v409, 4294901760
  %2669 = vmatpush1.msra.mxu0 %v2668
  %2670 = vmatprep.subr.mxu0 0.0
  %v2671 = vand.u32 %v408, 4294901760
  %2672 = vmatpush1.msra.mxu0 %v2671
  %2673 = vmatprep.subr.mxu0 0.0
  %2674 = vmatpush2.msra.mxu0 0.0
  %2675 = vmatprep.subr.mxu0 0.0
  %2676 = vmatpush2.msra.mxu0 0.0
  %2677 = vmatprep.subr.mxu0 0.0
  %2678 = vmatpush2.msra.mxu0 0.0
  %2679 = vmatprep.subr.mxu0 0.0
  %2680 = vmatpush2.msra.mxu0 0.0
  %2681 = vmatprep.subr.mxu0 0.0
  %2682 = vmatpush2.msra.mxu0 0.0
  %2683 = vmatprep.subr.mxu0 0.0
  %2684 = vmatpush2.msra.mxu0 0.0
  %2685 = vmatprep.subr.mxu0 0.0
  %2686 = vmatpush2.msra.mxu0 0.0
  %2687 = vmatprep.subr.mxu0 0.0
  %2688 = vmatpush2.msra.mxu0 0.0
  %2689 = vmatprep.subr.mxu0 0.0
  %2690 = vmatpush2.msra.mxu0 0.0
  %2691 = vmatprep.subr.mxu0 0.0
  %2692 = vmatpush2.msra.mxu0 0.0
  %2693 = vmatprep.subr.mxu0 0.0
  %2694 = vmatpush2.msra.mxu0 0.0
  %2695 = vmatprep.subr.mxu0 0.0
  %2696 = vmatpush2.msra.mxu0 0.0
  %2697 = vmatprep.subr.mxu0 0.0
  %2698 = vmatpush2.msra.mxu0 0.0
  %2699 = vmatprep.subr.mxu0 0.0
  %2700 = vmatpush2.msra.mxu0 0.0
  %2701 = vmatprep.subr.mxu0 0.0
  %2702 = vmatpush2.msra.mxu0 0.0
  %2703 = vmatprep.subr.mxu0 0.0
  %2704 = vmatpush2.msra.mxu0 0.0
  %2705 = vmatprep.mubr.f32.mxu0 0.0
  %v2706 = vand.u32 %v2385, 4294901760
  %v2707 = vsub.f32 %v2385, %v2706
  %v2708 = vand.u32 %v2707, 4294901760
  %2709 = vmatmul.mubr.f32.gmra.mxu0 %v2708
  %v2710 = vpop.f32.mrf.mxu0
  %v2711 = vadd.f32 %v2634, %v2710
  %v2712 = vpop.f32.mrf.mxu0
  %2713 = vdwg.mxu0
  %2714 = vmatprep.subr.mxu0 0.0
  %2715 = vmatpush1.msra.mxu0 0.0
  %2716 = vmatprep.subr.mxu0 0.0
  %2717 = vmatpush1.msra.mxu0 0.0
  %2718 = vmatprep.subr.mxu0 0.0
  %2719 = vmatpush1.msra.mxu0 0.0
  %2720 = vmatprep.subr.mxu0 0.0
  %2721 = vmatpush1.msra.mxu0 0.0
  %2722 = vmatprep.subr.mxu0 0.0
  %2723 = vmatpush1.msra.mxu0 0.0
  %2724 = vmatprep.subr.mxu0 0.0
  %2725 = vmatpush1.msra.mxu0 0.0
  %2726 = vmatprep.subr.mxu0 0.0
  %2727 = vmatpush1.msra.mxu0 0.0
  %2728 = vmatprep.subr.mxu0 0.0
  %2729 = vmatpush1.msra.mxu0 0.0
  %2730 = vmatprep.subr.mxu0 0.0
  %2731 = vmatpush1.msra.mxu0 0.0
  %2732 = vmatprep.subr.mxu0 0.0
  %2733 = vmatpush1.msra.mxu0 0.0
  %2734 = vmatprep.subr.mxu0 0.0
  %2735 = vmatpush1.msra.mxu0 0.0
  %2736 = vmatprep.subr.mxu0 0.0
  %2737 = vmatpush1.msra.mxu0 0.0
  %2738 = vmatprep.subr.mxu0 0.0
  %v2739 = vand.u32 %v411, 4294901760
  %v2740 = vsub.f32 %v411, %v2739
  %v2741 = vand.u32 %v2740, 4294901760
  %2742 = vmatpush1.msra.mxu0 %v2741
  %2743 = vmatprep.subr.mxu0 0.0
  %v2744 = vand.u32 %v410, 4294901760
  %v2745 = vsub.f32 %v410, %v2744
  %v2746 = vand.u32 %v2745, 4294901760
  %2747 = vmatpush1.msra.mxu0 %v2746
  %2748 = vmatprep.subr.mxu0 0.0
  %v2749 = vand.u32 %v409, 4294901760
  %v2750 = vsub.f32 %v409, %v2749
  %v2751 = vand.u32 %v2750, 4294901760
  %2752 = vmatpush1.msra.mxu0 %v2751
  %2753 = vmatprep.subr.mxu0 0.0
  %v2754 = vand.u32 %v408, 4294901760
  %v2755 = vsub.f32 %v408, %v2754
  %v2756 = vand.u32 %v2755, 4294901760
  %2757 = vmatpush1.msra.mxu0 %v2756
  %2758 = vmatprep.subr.mxu0 0.0
  %2759 = vmatpush2.msra.mxu0 0.0
  %2760 = vmatprep.subr.mxu0 0.0
  %2761 = vmatpush2.msra.mxu0 0.0
  %2762 = vmatprep.subr.mxu0 0.0
  %2763 = vmatpush2.msra.mxu0 0.0
  %2764 = vmatprep.subr.mxu0 0.0
  %2765 = vmatpush2.msra.mxu0 0.0
  %2766 = vmatprep.subr.mxu0 0.0
  %2767 = vmatpush2.msra.mxu0 0.0
  %2768 = vmatprep.subr.mxu0 0.0
  %2769 = vmatpush2.msra.mxu0 0.0
  %2770 = vmatprep.subr.mxu0 0.0
  %2771 = vmatpush2.msra.mxu0 0.0
  %2772 = vmatprep.subr.mxu0 0.0
  %2773 = vmatpush2.msra.mxu0 0.0
  %2774 = vmatprep.subr.mxu0 0.0
  %2775 = vmatpush2.msra.mxu0 0.0
  %2776 = vmatprep.subr.mxu0 0.0
  %2777 = vmatpush2.msra.mxu0 0.0
  %2778 = vmatprep.subr.mxu0 0.0
  %2779 = vmatpush2.msra.mxu0 0.0
  %2780 = vmatprep.subr.mxu0 0.0
  %2781 = vmatpush2.msra.mxu0 0.0
  %2782 = vmatprep.subr.mxu0 0.0
  %2783 = vmatpush2.msra.mxu0 0.0
  %2784 = vmatprep.subr.mxu0 0.0
  %2785 = vmatpush2.msra.mxu0 0.0
  %2786 = vmatprep.subr.mxu0 0.0
  %2787 = vmatpush2.msra.mxu0 0.0
  %2788 = vmatprep.subr.mxu0 0.0
  %2789 = vmatpush2.msra.mxu0 0.0
  %2790 = vmatprep.mubr.f32.mxu0 0.0
  %v2791 = vand.u32 %v2385, 4294901760
  %2792 = vmatmul.mubr.f32.gmra.mxu0 %v2791
  %v2793 = vpop.f32.mrf.mxu0
  %v2794 = vadd.f32 %v2711, %v2793
  %v2795 = vpop.f32.mrf.mxu0
  %2796 = vdwg.mxu0
  %2797 = vmatprep.subr.mxu0 0.0
  %2798 = vmatpush1.msra.mxu0 0.0
  %2799 = vmatprep.subr.mxu0 0.0
  %2800 = vmatpush1.msra.mxu0 0.0
  %2801 = vmatprep.subr.mxu0 0.0
  %2802 = vmatpush1.msra.mxu0 0.0
  %2803 = vmatprep.subr.mxu0 0.0
  %2804 = vmatpush1.msra.mxu0 0.0
  %2805 = vmatprep.subr.mxu0 0.0
  %2806 = vmatpush1.msra.mxu0 0.0
  %2807 = vmatprep.subr.mxu0 0.0
  %2808 = vmatpush1.msra.mxu0 0.0
  %2809 = vmatprep.subr.mxu0 0.0
  %2810 = vmatpush1.msra.mxu0 0.0
  %2811 = vmatprep.subr.mxu0 0.0
  %2812 = vmatpush1.msra.mxu0 0.0
  %2813 = vmatprep.subr.mxu0 0.0
  %2814 = vmatpush1.msra.mxu0 0.0
  %2815 = vmatprep.subr.mxu0 0.0
  %2816 = vmatpush1.msra.mxu0 0.0
  %2817 = vmatprep.subr.mxu0 0.0
  %2818 = vmatpush1.msra.mxu0 0.0
  %2819 = vmatprep.subr.mxu0 0.0
  %2820 = vmatpush1.msra.mxu0 0.0
  %2821 = vmatprep.subr.mxu0 0.0
  %v2822 = vand.u32 %v411, 4294901760
  %2823 = vmatpush1.msra.mxu0 %v2822
  %2824 = vmatprep.subr.mxu0 0.0
  %v2825 = vand.u32 %v410, 4294901760
  %2826 = vmatpush1.msra.mxu0 %v2825
  %2827 = vmatprep.subr.mxu0 0.0
  %v2828 = vand.u32 %v409, 4294901760
  %2829 = vmatpush1.msra.mxu0 %v2828
  %2830 = vmatprep.subr.mxu0 0.0
  %v2831 = vand.u32 %v408, 4294901760
  %2832 = vmatpush1.msra.mxu0 %v2831
  %2833 = vmatprep.subr.mxu0 0.0
  %2834 = vmatpush2.msra.mxu0 0.0
  %2835 = vmatprep.subr.mxu0 0.0
  %2836 = vmatpush2.msra.mxu0 0.0
  %2837 = vmatprep.subr.mxu0 0.0
  %2838 = vmatpush2.msra.mxu0 0.0
  %2839 = vmatprep.subr.mxu0 0.0
  %2840 = vmatpush2.msra.mxu0 0.0
  %2841 = vmatprep.subr.mxu0 0.0
  %2842 = vmatpush2.msra.mxu0 0.0
  %2843 = vmatprep.subr.mxu0 0.0
  %2844 = vmatpush2.msra.mxu0 0.0
  %2845 = vmatprep.subr.mxu0 0.0
  %2846 = vmatpush2.msra.mxu0 0.0
  %2847 = vmatprep.subr.mxu0 0.0
  %2848 = vmatpush2.msra.mxu0 0.0
  %2849 = vmatprep.subr.mxu0 0.0
  %2850 = vmatpush2.msra.mxu0 0.0
  %2851 = vmatprep.subr.mxu0 0.0
  %2852 = vmatpush2.msra.mxu0 0.0
  %2853 = vmatprep.subr.mxu0 0.0
  %2854 = vmatpush2.msra.mxu0 0.0
  %2855 = vmatprep.subr.mxu0 0.0
  %2856 = vmatpush2.msra.mxu0 0.0
  %2857 = vmatprep.subr.mxu0 0.0
  %2858 = vmatpush2.msra.mxu0 0.0
  %2859 = vmatprep.subr.mxu0 0.0
  %2860 = vmatpush2.msra.mxu0 0.0
  %2861 = vmatprep.subr.mxu0 0.0
  %2862 = vmatpush2.msra.mxu0 0.0
  %2863 = vmatprep.subr.mxu0 0.0
  %2864 = vmatpush2.msra.mxu0 0.0
  %2865 = vmatprep.mubr.f32.mxu0 0.0
  %v2866 = vand.u32 %v2385, 4294901760
  %2867 = vmatmul.mubr.f32.gmra.mxu0 %v2866
  %v2868 = vpop.f32.mrf.mxu0
  %v2869 = vadd.f32 %v2794, %v2868
  %v2870 = vpop.f32.mrf.mxu0
  %2871 = vdwg.mxu0
  %v2872 = vpack.c.bf16 %v2869, %v2869
  %v2873 = vld [vmem:[%s0] sm:$0xff]
  %v2874 = vld [vmem:[%s0 + $0x8] sm:$0xff]
  %v2875 = vld [vmem:[%s0 + $0x10] sm:$0xff]
  %v2876 = vld [vmem:[%s0 + $0x18] sm:$0xff]
  %2878 = vset.pattern.permute.xlu0 0
  %2879 = vperm.xlu0 %2878, %v919
  %v2880 = vpop.permute.xlu0 %2879
  %v2882 = vlaneseq
  %v2883 = vshrl.u32 %v2882, 7
  %v2884 = vsub.s32 0, %v2883
  %v2885 = vrot.slane %v2880, %v2884
  %v2890 = vunpack.c.l.b16 %v2873
  %v2891 = vunpack.c.h.b16 %v2873
  %v2892 = vunpack.c.l.b16 %v2874
  %v2893 = vunpack.c.h.b16 %v2874
  %v2894 = vunpack.c.l.b16 %v2875
  %v2895 = vunpack.c.h.b16 %v2875
  %v2896 = vunpack.c.l.b16 %v2876
  %v2897 = vunpack.c.h.b16 %v2876
  %v2898 = vpack.c.b16 %v2892, %v2890
  %v2899 = vpack.c.b16 %v2893, %v2891
  %v2900 = vpack.c.b16 %v2896, %v2894
  %v2901 = vpack.c.b16 %v2897, %v2895
  %v2907 = vsel %vm367, %v2872, 0
  %2909 = vmatprep.subr.bf16.mxu0 0
  %2910 = vmatpush1.bf16.msra.mxu0 0
  %2911 = vmatprep.subr.bf16.mxu0 0
  %2912 = vmatpush1.bf16.msra.mxu0 0
  %2913 = vmatprep.subr.bf16.mxu0 0
  %2914 = vmatpush1.bf16.msra.mxu0 0
  %2915 = vmatprep.subr.bf16.mxu0 0
  %2916 = vmatpush1.bf16.msra.mxu0 0
  %2917 = vmatprep.subr.bf16.mxu0 0
  %2918 = vmatpush1.bf16.msra.mxu0 0
  %2919 = vmatprep.subr.bf16.mxu0 0
  %2920 = vmatpush1.bf16.msra.mxu0 0
  %2921 = vmatprep.subr.bf16.mxu0 %v2901
  %2922 = vmatpush1.bf16.msra.mxu0 %v2900
  %2923 = vmatprep.subr.bf16.mxu0 %v2899
  %2924 = vmatpush1.bf16.msra.mxu0 %v2898
  %2925 = vmatprep.subr.bf16.mxu0 0
  %2926 = vmatpush2.bf16.msra.mxu0 0
  %2927 = vmatprep.subr.bf16.mxu0 0
  %2928 = vmatpush2.bf16.msra.mxu0 0
  %2929 = vmatprep.subr.bf16.mxu0 0
  %2930 = vmatpush2.bf16.msra.mxu0 0
  %2931 = vmatprep.subr.bf16.mxu0 0
  %2932 = vmatpush2.bf16.msra.mxu0 0
  %2933 = vmatprep.subr.bf16.mxu0 0
  %2934 = vmatpush2.bf16.msra.mxu0 0
  %2935 = vmatprep.subr.bf16.mxu0 0
  %2936 = vmatpush2.bf16.msra.mxu0 0
  %2937 = vmatprep.subr.bf16.mxu0 0
  %2938 = vmatpush2.bf16.msra.mxu0 0
  %2939 = vmatprep.subr.bf16.mxu0 0
  %2940 = vmatpush2.bf16.msra.mxu0 0
  %2941 = vmatprep.mubr.bf16.mxu0 0
  %2942 = vmatmul.mubr.bf16.gmra.mxu0 %v2907
  %v2943 = vpop.f32.mrf.mxu0
  %v2944 = vadd.f32 %v2885, %v2943
  %v2945 = vpop.f32.mrf.mxu0
  %v2946 = vadd.f32 %v2885, %v2945
  %v2947 = vpop.f32.mrf.mxu0
  %v2948 = vpop.f32.mrf.mxu0
  %2949 = vdwg.mxu0
  %v2952 = vcombine.low %v2944, %v2946
  %v2954 = vunpack.c.l.s4 1966171168
  %v2955 = vunpack.c.0.s8 %v2954
  %v2956 = vlaneseq
  %v2957 = vshrl.u32 %v2956, 7
  %v2958 = vsub.s32 %v2955, %v2957
  %v2959 = vrot.slane %v2952, %v2958
  %v2961 = vunpack.c.l.s4 1966171168
  %v2962 = vunpack.c.0.s8 %v2961
  %v2963 = vlaneseq
  %v2964 = vshrl.u32 %v2963, 7
  %v2965 = vsub.s32 %v2962, %v2964
  %v2966 = vrot.slane %v2959, %v2965
  %v2968 = vlaneseq
  %vm2969 = vcmp.ge.s32.totalorder %v2968, 0
  %vm2970 = vcmp.lt.s32.totalorder %v2968, 256
  %vm2971 = vmand %vm2969, %vm2970
  %2972 = vst.msk [vmem:[%s11] sm:$0x3] %vm2971, %v2966
  %2973 = vmatprep.subr.mxu0 0.0
  %2974 = vmatpush1.msra.mxu0 0.0
  %2975 = vmatprep.subr.mxu0 0.0
  %2976 = vmatpush1.msra.mxu0 0.0
  %2977 = vmatprep.subr.mxu0 0.0
  %2978 = vmatpush1.msra.mxu0 0.0
  %2979 = vmatprep.subr.mxu0 0.0
  %2980 = vmatpush1.msra.mxu0 0.0
  %2981 = vmatprep.subr.mxu0 0.0
  %2982 = vmatpush1.msra.mxu0 0.0
  %2983 = vmatprep.subr.mxu0 0.0
  %2984 = vmatpush1.msra.mxu0 0.0
  %2985 = vmatprep.subr.mxu0 0.0
  %2986 = vmatpush1.msra.mxu0 0.0
  %2987 = vmatprep.subr.mxu0 0.0
  %2988 = vmatpush1.msra.mxu0 0.0
  %2989 = vmatprep.subr.mxu0 0.0
  %2990 = vmatpush1.msra.mxu0 0.0
  %2991 = vmatprep.subr.mxu0 0.0
  %2992 = vmatpush1.msra.mxu0 0.0
  %2993 = vmatprep.subr.mxu0 0.0
  %2994 = vmatpush1.msra.mxu0 0.0
  %2995 = vmatprep.subr.mxu0 0.0
  %2996 = vmatpush1.msra.mxu0 0.0
  %2997 = vmatprep.subr.mxu0 0.0
  %v2998 = vand.u32 %v916, 4294901760
  %2999 = vmatpush1.msra.mxu0 %v2998
  %3000 = vmatprep.subr.mxu0 0.0
  %v3001 = vand.u32 %v915, 4294901760
  %3002 = vmatpush1.msra.mxu0 %v3001
  %3003 = vmatprep.subr.mxu0 0.0
  %v3004 = vand.u32 %v914, 4294901760
  %3005 = vmatpush1.msra.mxu0 %v3004
  %3006 = vmatprep.subr.mxu0 0.0
  %v3007 = vand.u32 %v913, 4294901760
  %3008 = vmatpush1.msra.mxu0 %v3007
  %3009 = vmatprep.subr.mxu0 0.0
  %3010 = vmatpush2.msra.mxu0 0.0
  %3011 = vmatprep.subr.mxu0 0.0
  %3012 = vmatpush2.msra.mxu0 0.0
  %3013 = vmatprep.subr.mxu0 0.0
  %3014 = vmatpush2.msra.mxu0 0.0
  %3015 = vmatprep.subr.mxu0 0.0
  %3016 = vmatpush2.msra.mxu0 0.0
  %3017 = vmatprep.subr.mxu0 0.0
  %3018 = vmatpush2.msra.mxu0 0.0
  %3019 = vmatprep.subr.mxu0 0.0
  %3020 = vmatpush2.msra.mxu0 0.0
  %3021 = vmatprep.subr.mxu0 0.0
  %3022 = vmatpush2.msra.mxu0 0.0
  %3023 = vmatprep.subr.mxu0 0.0
  %3024 = vmatpush2.msra.mxu0 0.0
  %3025 = vmatprep.subr.mxu0 0.0
  %3026 = vmatpush2.msra.mxu0 0.0
  %3027 = vmatprep.subr.mxu0 0.0
  %3028 = vmatpush2.msra.mxu0 0.0
  %3029 = vmatprep.subr.mxu0 0.0
  %3030 = vmatpush2.msra.mxu0 0.0
  %3031 = vmatprep.subr.mxu0 0.0
  %3032 = vmatpush2.msra.mxu0 0.0
  %3033 = vmatprep.subr.mxu0 0.0
  %3034 = vmatpush2.msra.mxu0 0.0
  %3035 = vmatprep.subr.mxu0 0.0
  %3036 = vmatpush2.msra.mxu0 0.0
  %3037 = vmatprep.subr.mxu0 0.0
  %3038 = vmatpush2.msra.mxu0 0.0
  %3039 = vmatprep.subr.mxu0 0.0
  %3040 = vmatpush2.msra.mxu0 0.0
  %3041 = vmatprep.mubr.f32.mxu0 0.0
  %v3042 = vand.u32 %v921, 4294901760
  %v3043 = vsub.f32 %v921, %v3042
  %v3044 = vand.u32 %v3043, 4294901760
  %v3045 = vsub.f32 %v3043, %v3044
  %v3046 = vand.u32 %v3045, 4294901760
  %3047 = vmatmul.mubr.f32.gmra.mxu0 %v3046
  %v3048 = vpop.f32.mrf.mxu0
  %v3049 = vadd.f32 0.0, %v3048
  %v3050 = vpop.f32.mrf.mxu0
  %3051 = vdwg.mxu0
  %3052 = vmatprep.subr.mxu0 0.0
  %3053 = vmatpush1.msra.mxu0 0.0
  %3054 = vmatprep.subr.mxu0 0.0
  %3055 = vmatpush1.msra.mxu0 0.0
  %3056 = vmatprep.subr.mxu0 0.0
  %3057 = vmatpush1.msra.mxu0 0.0
  %3058 = vmatprep.subr.mxu0 0.0
  %3059 = vmatpush1.msra.mxu0 0.0
  %3060 = vmatprep.subr.mxu0 0.0
  %3061 = vmatpush1.msra.mxu0 0.0
  %3062 = vmatprep.subr.mxu0 0.0
  %3063 = vmatpush1.msra.mxu0 0.0
  %3064 = vmatprep.subr.mxu0 0.0
  %3065 = vmatpush1.msra.mxu0 0.0
  %3066 = vmatprep.subr.mxu0 0.0
  %3067 = vmatpush1.msra.mxu0 0.0
  %3068 = vmatprep.subr.mxu0 0.0
  %3069 = vmatpush1.msra.mxu0 0.0
  %3070 = vmatprep.subr.mxu0 0.0
  %3071 = vmatpush1.msra.mxu0 0.0
  %3072 = vmatprep.subr.mxu0 0.0
  %3073 = vmatpush1.msra.mxu0 0.0
  %3074 = vmatprep.subr.mxu0 0.0
  %3075 = vmatpush1.msra.mxu0 0.0
  %3076 = vmatprep.subr.mxu0 0.0
  %v3077 = vand.u32 %v916, 4294901760
  %v3078 = vsub.f32 %v916, %v3077
  %v3079 = vand.u32 %v3078, 4294901760
  %v3080 = vsub.f32 %v3078, %v3079
  %v3081 = vand.u32 %v3080, 4294901760
  %3082 = vmatpush1.msra.mxu0 %v3081
  %3083 = vmatprep.subr.mxu0 0.0
  %v3084 = vand.u32 %v915, 4294901760
  %v3085 = vsub.f32 %v915, %v3084
  %v3086 = vand.u32 %v3085, 4294901760
  %v3087 = vsub.f32 %v3085, %v3086
  %v3088 = vand.u32 %v3087, 4294901760
  %3089 = vmatpush1.msra.mxu0 %v3088
  %3090 = vmatprep.subr.mxu0 0.0
  %v3091 = vand.u32 %v914, 4294901760
  %v3092 = vsub.f32 %v914, %v3091
  %v3093 = vand.u32 %v3092, 4294901760
  %v3094 = vsub.f32 %v3092, %v3093
  %v3095 = vand.u32 %v3094, 4294901760
  %3096 = vmatpush1.msra.mxu0 %v3095
  %3097 = vmatprep.subr.mxu0 0.0
  %v3098 = vand.u32 %v913, 4294901760
  %v3099 = vsub.f32 %v913, %v3098
  %v3100 = vand.u32 %v3099, 4294901760
  %v3101 = vsub.f32 %v3099, %v3100
  %v3102 = vand.u32 %v3101, 4294901760
  %3103 = vmatpush1.msra.mxu0 %v3102
  %3104 = vmatprep.subr.mxu0 0.0
  %3105 = vmatpush2.msra.mxu0 0.0
  %3106 = vmatprep.subr.mxu0 0.0
  %3107 = vmatpush2.msra.mxu0 0.0
  %3108 = vmatprep.subr.mxu0 0.0
  %3109 = vmatpush2.msra.mxu0 0.0
  %3110 = vmatprep.subr.mxu0 0.0
  %3111 = vmatpush2.msra.mxu0 0.0
  %3112 = vmatprep.subr.mxu0 0.0
  %3113 = vmatpush2.msra.mxu0 0.0
  %3114 = vmatprep.subr.mxu0 0.0
  %3115 = vmatpush2.msra.mxu0 0.0
  %3116 = vmatprep.subr.mxu0 0.0
  %3117 = vmatpush2.msra.mxu0 0.0
  %3118 = vmatprep.subr.mxu0 0.0
  %3119 = vmatpush2.msra.mxu0 0.0
  %3120 = vmatprep.subr.mxu0 0.0
  %3121 = vmatpush2.msra.mxu0 0.0
  %3122 = vmatprep.subr.mxu0 0.0
  %3123 = vmatpush2.msra.mxu0 0.0
  %3124 = vmatprep.subr.mxu0 0.0
  %3125 = vmatpush2.msra.mxu0 0.0
  %3126 = vmatprep.subr.mxu0 0.0
  %3127 = vmatpush2.msra.mxu0 0.0
  %3128 = vmatprep.subr.mxu0 0.0
  %3129 = vmatpush2.msra.mxu0 0.0
  %3130 = vmatprep.subr.mxu0 0.0
  %3131 = vmatpush2.msra.mxu0 0.0
  %3132 = vmatprep.subr.mxu0 0.0
  %3133 = vmatpush2.msra.mxu0 0.0
  %3134 = vmatprep.subr.mxu0 0.0
  %3135 = vmatpush2.msra.mxu0 0.0
  %3136 = vmatprep.mubr.f32.mxu0 0.0
  %v3137 = vand.u32 %v921, 4294901760
  %3138 = vmatmul.mubr.f32.gmra.mxu0 %v3137
  %v3139 = vpop.f32.mrf.mxu0
  %v3140 = vadd.f32 %v3049, %v3139
  %v3141 = vpop.f32.mrf.mxu0
  %3142 = vdwg.mxu0
  %3143 = vmatprep.subr.mxu0 0.0
  %3144 = vmatpush1.msra.mxu0 0.0
  %3145 = vmatprep.subr.mxu0 0.0
  %3146 = vmatpush1.msra.mxu0 0.0
  %3147 = vmatprep.subr.mxu0 0.0
  %3148 = vmatpush1.msra.mxu0 0.0
  %3149 = vmatprep.subr.mxu0 0.0
  %3150 = vmatpush1.msra.mxu0 0.0
  %3151 = vmatprep.subr.mxu0 0.0
  %3152 = vmatpush1.msra.mxu0 0.0
  %3153 = vmatprep.subr.mxu0 0.0
  %3154 = vmatpush1.msra.mxu0 0.0
  %3155 = vmatprep.subr.mxu0 0.0
  %3156 = vmatpush1.msra.mxu0 0.0
  %3157 = vmatprep.subr.mxu0 0.0
  %3158 = vmatpush1.msra.mxu0 0.0
  %3159 = vmatprep.subr.mxu0 0.0
  %3160 = vmatpush1.msra.mxu0 0.0
  %3161 = vmatprep.subr.mxu0 0.0
  %3162 = vmatpush1.msra.mxu0 0.0
  %3163 = vmatprep.subr.mxu0 0.0
  %3164 = vmatpush1.msra.mxu0 0.0
  %3165 = vmatprep.subr.mxu0 0.0
  %3166 = vmatpush1.msra.mxu0 0.0
  %3167 = vmatprep.subr.mxu0 0.0
  %v3168 = vand.u32 %v916, 4294901760
  %v3169 = vsub.f32 %v916, %v3168
  %3170 = vmatpush1.msra.mxu0 %v3169
  %3171 = vmatprep.subr.mxu0 0.0
  %v3172 = vand.u32 %v915, 4294901760
  %v3173 = vsub.f32 %v915, %v3172
  %3174 = vmatpush1.msra.mxu0 %v3173
  %3175 = vmatprep.subr.mxu0 0.0
  %v3176 = vand.u32 %v914, 4294901760
  %v3177 = vsub.f32 %v914, %v3176
  %3178 = vmatpush1.msra.mxu0 %v3177
  %3179 = vmatprep.subr.mxu0 0.0
  %v3180 = vand.u32 %v913, 4294901760
  %v3181 = vsub.f32 %v913, %v3180
  %3182 = vmatpush1.msra.mxu0 %v3181
  %3183 = vmatprep.subr.mxu0 0.0
  %3184 = vmatpush2.msra.mxu0 0.0
  %3185 = vmatprep.subr.mxu0 0.0
  %3186 = vmatpush2.msra.mxu0 0.0
  %3187 = vmatprep.subr.mxu0 0.0
  %3188 = vmatpush2.msra.mxu0 0.0
  %3189 = vmatprep.subr.mxu0 0.0
  %3190 = vmatpush2.msra.mxu0 0.0
  %3191 = vmatprep.subr.mxu0 0.0
  %3192 = vmatpush2.msra.mxu0 0.0
  %3193 = vmatprep.subr.mxu0 0.0
  %3194 = vmatpush2.msra.mxu0 0.0
  %3195 = vmatprep.subr.mxu0 0.0
  %3196 = vmatpush2.msra.mxu0 0.0
  %3197 = vmatprep.subr.mxu0 0.0
  %3198 = vmatpush2.msra.mxu0 0.0
  %3199 = vmatprep.subr.mxu0 0.0
  %3200 = vmatpush2.msra.mxu0 0.0
  %3201 = vmatprep.subr.mxu0 0.0
  %3202 = vmatpush2.msra.mxu0 0.0
  %3203 = vmatprep.subr.mxu0 0.0
  %3204 = vmatpush2.msra.mxu0 0.0
  %3205 = vmatprep.subr.mxu0 0.0
  %3206 = vmatpush2.msra.mxu0 0.0
  %3207 = vmatprep.subr.mxu0 0.0
  %3208 = vmatpush2.msra.mxu0 0.0
  %3209 = vmatprep.subr.mxu0 0.0
  %3210 = vmatpush2.msra.mxu0 0.0
  %3211 = vmatprep.subr.mxu0 0.0
  %3212 = vmatpush2.msra.mxu0 0.0
  %3213 = vmatprep.subr.mxu0 0.0
  %3214 = vmatpush2.msra.mxu0 0.0
  %3215 = vmatprep.mubr.f32.mxu0 0.0
  %v3216 = vand.u32 %v921, 4294901760
  %v3217 = vsub.f32 %v921, %v3216
  %3218 = vmatmul.mubr.f32.gmra.mxu0 %v3217
  %v3219 = vpop.f32.mrf.mxu0
  %v3220 = vadd.f32 %v3140, %v3219
  %v3221 = vpop.f32.mrf.mxu0
  %3222 = vdwg.mxu0
  %3223 = vmatprep.subr.mxu0 0.0
  %3224 = vmatpush1.msra.mxu0 0.0
  %3225 = vmatprep.subr.mxu0 0.0
  %3226 = vmatpush1.msra.mxu0 0.0
  %3227 = vmatprep.subr.mxu0 0.0
  %3228 = vmatpush1.msra.mxu0 0.0
  %3229 = vmatprep.subr.mxu0 0.0
  %3230 = vmatpush1.msra.mxu0 0.0
  %3231 = vmatprep.subr.mxu0 0.0
  %3232 = vmatpush1.msra.mxu0 0.0
  %3233 = vmatprep.subr.mxu0 0.0
  %3234 = vmatpush1.msra.mxu0 0.0
  %3235 = vmatprep.subr.mxu0 0.0
  %3236 = vmatpush1.msra.mxu0 0.0
  %3237 = vmatprep.subr.mxu0 0.0
  %3238 = vmatpush1.msra.mxu0 0.0
  %3239 = vmatprep.subr.mxu0 0.0
  %3240 = vmatpush1.msra.mxu0 0.0
  %3241 = vmatprep.subr.mxu0 0.0
  %3242 = vmatpush1.msra.mxu0 0.0
  %3243 = vmatprep.subr.mxu0 0.0
  %3244 = vmatpush1.msra.mxu0 0.0
  %3245 = vmatprep.subr.mxu0 0.0
  %3246 = vmatpush1.msra.mxu0 0.0
  %3247 = vmatprep.subr.mxu0 0.0
  %v3248 = vand.u32 %v916, 4294901760
  %3249 = vmatpush1.msra.mxu0 %v3248
  %3250 = vmatprep.subr.mxu0 0.0
  %v3251 = vand.u32 %v915, 4294901760
  %3252 = vmatpush1.msra.mxu0 %v3251
  %3253 = vmatprep.subr.mxu0 0.0
  %v3254 = vand.u32 %v914, 4294901760
  %3255 = vmatpush1.msra.mxu0 %v3254
  %3256 = vmatprep.subr.mxu0 0.0
  %v3257 = vand.u32 %v913, 4294901760
  %3258 = vmatpush1.msra.mxu0 %v3257
  %3259 = vmatprep.subr.mxu0 0.0
  %3260 = vmatpush2.msra.mxu0 0.0
  %3261 = vmatprep.subr.mxu0 0.0
  %3262 = vmatpush2.msra.mxu0 0.0
  %3263 = vmatprep.subr.mxu0 0.0
  %3264 = vmatpush2.msra.mxu0 0.0
  %3265 = vmatprep.subr.mxu0 0.0
  %3266 = vmatpush2.msra.mxu0 0.0
  %3267 = vmatprep.subr.mxu0 0.0
  %3268 = vmatpush2.msra.mxu0 0.0
  %3269 = vmatprep.subr.mxu0 0.0
  %3270 = vmatpush2.msra.mxu0 0.0
  %3271 = vmatprep.subr.mxu0 0.0
  %3272 = vmatpush2.msra.mxu0 0.0
  %3273 = vmatprep.subr.mxu0 0.0
  %3274 = vmatpush2.msra.mxu0 0.0
  %3275 = vmatprep.subr.mxu0 0.0
  %3276 = vmatpush2.msra.mxu0 0.0
  %3277 = vmatprep.subr.mxu0 0.0
  %3278 = vmatpush2.msra.mxu0 0.0
  %3279 = vmatprep.subr.mxu0 0.0
  %3280 = vmatpush2.msra.mxu0 0.0
  %3281 = vmatprep.subr.mxu0 0.0
  %3282 = vmatpush2.msra.mxu0 0.0
  %3283 = vmatprep.subr.mxu0 0.0
  %3284 = vmatpush2.msra.mxu0 0.0
  %3285 = vmatprep.subr.mxu0 0.0
  %3286 = vmatpush2.msra.mxu0 0.0
  %3287 = vmatprep.subr.mxu0 0.0
  %3288 = vmatpush2.msra.mxu0 0.0
  %3289 = vmatprep.subr.mxu0 0.0
  %3290 = vmatpush2.msra.mxu0 0.0
  %3291 = vmatprep.mubr.f32.mxu0 0.0
  %v3292 = vand.u32 %v921, 4294901760
  %v3293 = vsub.f32 %v921, %v3292
  %v3294 = vand.u32 %v3293, 4294901760
  %3295 = vmatmul.mubr.f32.gmra.mxu0 %v3294
  %v3296 = vpop.f32.mrf.mxu0
  %v3297 = vadd.f32 %v3220, %v3296
  %v3298 = vpop.f32.mrf.mxu0
  %3299 = vdwg.mxu0
  %3300 = vmatprep.subr.mxu0 0.0
  %3301 = vmatpush1.msra.mxu0 0.0
  %3302 = vmatprep.subr.mxu0 0.0
  %3303 = vmatpush1.msra.mxu0 0.0
  %3304 = vmatprep.subr.mxu0 0.0
  %3305 = vmatpush1.msra.mxu0 0.0
  %3306 = vmatprep.subr.mxu0 0.0
  %3307 = vmatpush1.msra.mxu0 0.0
  %3308 = vmatprep.subr.mxu0 0.0
  %3309 = vmatpush1.msra.mxu0 0.0
  %3310 = vmatprep.subr.mxu0 0.0
  %3311 = vmatpush1.msra.mxu0 0.0
  %3312 = vmatprep.subr.mxu0 0.0
  %3313 = vmatpush1.msra.mxu0 0.0
  %3314 = vmatprep.subr.mxu0 0.0
  %3315 = vmatpush1.msra.mxu0 0.0
  %3316 = vmatprep.subr.mxu0 0.0
  %3317 = vmatpush1.msra.mxu0 0.0
  %3318 = vmatprep.subr.mxu0 0.0
  %3319 = vmatpush1.msra.mxu0 0.0
  %3320 = vmatprep.subr.mxu0 0.0
  %3321 = vmatpush1.msra.mxu0 0.0
  %3322 = vmatprep.subr.mxu0 0.0
  %3323 = vmatpush1.msra.mxu0 0.0
  %3324 = vmatprep.subr.mxu0 0.0
  %v3325 = vand.u32 %v916, 4294901760
  %v3326 = vsub.f32 %v916, %v3325
  %v3327 = vand.u32 %v3326, 4294901760
  %3328 = vmatpush1.msra.mxu0 %v3327
  %3329 = vmatprep.subr.mxu0 0.0
  %v3330 = vand.u32 %v915, 4294901760
  %v3331 = vsub.f32 %v915, %v3330
  %v3332 = vand.u32 %v3331, 4294901760
  %3333 = vmatpush1.msra.mxu0 %v3332
  %3334 = vmatprep.subr.mxu0 0.0
  %v3335 = vand.u32 %v914, 4294901760
  %v3336 = vsub.f32 %v914, %v3335
  %v3337 = vand.u32 %v3336, 4294901760
  %3338 = vmatpush1.msra.mxu0 %v3337
  %3339 = vmatprep.subr.mxu0 0.0
  %v3340 = vand.u32 %v913, 4294901760
  %v3341 = vsub.f32 %v913, %v3340
  %v3342 = vand.u32 %v3341, 4294901760
  %3343 = vmatpush1.msra.mxu0 %v3342
  %3344 = vmatprep.subr.mxu0 0.0
  %3345 = vmatpush2.msra.mxu0 0.0
  %3346 = vmatprep.subr.mxu0 0.0
  %3347 = vmatpush2.msra.mxu0 0.0
  %3348 = vmatprep.subr.mxu0 0.0
  %3349 = vmatpush2.msra.mxu0 0.0
  %3350 = vmatprep.subr.mxu0 0.0
  %3351 = vmatpush2.msra.mxu0 0.0
  %3352 = vmatprep.subr.mxu0 0.0
  %3353 = vmatpush2.msra.mxu0 0.0
  %3354 = vmatprep.subr.mxu0 0.0
  %3355 = vmatpush2.msra.mxu0 0.0
  %3356 = vmatprep.subr.mxu0 0.0
  %3357 = vmatpush2.msra.mxu0 0.0
  %3358 = vmatprep.subr.mxu0 0.0
  %3359 = vmatpush2.msra.mxu0 0.0
  %3360 = vmatprep.subr.mxu0 0.0
  %3361 = vmatpush2.msra.mxu0 0.0
  %3362 = vmatprep.subr.mxu0 0.0
  %3363 = vmatpush2.msra.mxu0 0.0
  %3364 = vmatprep.subr.mxu0 0.0
  %3365 = vmatpush2.msra.mxu0 0.0
  %3366 = vmatprep.subr.mxu0 0.0
  %3367 = vmatpush2.msra.mxu0 0.0
  %3368 = vmatprep.subr.mxu0 0.0
  %3369 = vmatpush2.msra.mxu0 0.0
  %3370 = vmatprep.subr.mxu0 0.0
  %3371 = vmatpush2.msra.mxu0 0.0
  %3372 = vmatprep.subr.mxu0 0.0
  %3373 = vmatpush2.msra.mxu0 0.0
  %3374 = vmatprep.subr.mxu0 0.0
  %3375 = vmatpush2.msra.mxu0 0.0
  %3376 = vmatprep.mubr.f32.mxu0 0.0
  %v3377 = vand.u32 %v921, 4294901760
  %3378 = vmatmul.mubr.f32.gmra.mxu0 %v3377
  %v3379 = vpop.f32.mrf.mxu0
  %v3380 = vadd.f32 %v3297, %v3379
  %v3381 = vpop.f32.mrf.mxu0
  %3382 = vdwg.mxu0
  %3383 = vmatprep.subr.mxu0 0.0
  %3384 = vmatpush1.msra.mxu0 0.0
  %3385 = vmatprep.subr.mxu0 0.0
  %3386 = vmatpush1.msra.mxu0 0.0
  %3387 = vmatprep.subr.mxu0 0.0
  %3388 = vmatpush1.msra.mxu0 0.0
  %3389 = vmatprep.subr.mxu0 0.0
  %3390 = vmatpush1.msra.mxu0 0.0
  %3391 = vmatprep.subr.mxu0 0.0
  %3392 = vmatpush1.msra.mxu0 0.0
  %3393 = vmatprep.subr.mxu0 0.0
  %3394 = vmatpush1.msra.mxu0 0.0
  %3395 = vmatprep.subr.mxu0 0.0
  %3396 = vmatpush1.msra.mxu0 0.0
  %3397 = vmatprep.subr.mxu0 0.0
  %3398 = vmatpush1.msra.mxu0 0.0
  %3399 = vmatprep.subr.mxu0 0.0
  %3400 = vmatpush1.msra.mxu0 0.0
  %3401 = vmatprep.subr.mxu0 0.0
  %3402 = vmatpush1.msra.mxu0 0.0
  %3403 = vmatprep.subr.mxu0 0.0
  %3404 = vmatpush1.msra.mxu0 0.0
  %3405 = vmatprep.subr.mxu0 0.0
  %3406 = vmatpush1.msra.mxu0 0.0
  %3407 = vmatprep.subr.mxu0 0.0
  %v3408 = vand.u32 %v916, 4294901760
  %3409 = vmatpush1.msra.mxu0 %v3408
  %3410 = vmatprep.subr.mxu0 0.0
  %v3411 = vand.u32 %v915, 4294901760
  %3412 = vmatpush1.msra.mxu0 %v3411
  %3413 = vmatprep.subr.mxu0 0.0
  %v3414 = vand.u32 %v914, 4294901760
  %3415 = vmatpush1.msra.mxu0 %v3414
  %3416 = vmatprep.subr.mxu0 0.0
  %v3417 = vand.u32 %v913, 4294901760
  %3418 = vmatpush1.msra.mxu0 %v3417
  %3419 = vmatprep.subr.mxu0 0.0
  %3420 = vmatpush2.msra.mxu0 0.0
  %3421 = vmatprep.subr.mxu0 0.0
  %3422 = vmatpush2.msra.mxu0 0.0
  %3423 = vmatprep.subr.mxu0 0.0
  %3424 = vmatpush2.msra.mxu0 0.0
  %3425 = vmatprep.subr.mxu0 0.0
  %3426 = vmatpush2.msra.mxu0 0.0
  %3427 = vmatprep.subr.mxu0 0.0
  %3428 = vmatpush2.msra.mxu0 0.0
  %3429 = vmatprep.subr.mxu0 0.0
  %3430 = vmatpush2.msra.mxu0 0.0
  %3431 = vmatprep.subr.mxu0 0.0
  %3432 = vmatpush2.msra.mxu0 0.0
  %3433 = vmatprep.subr.mxu0 0.0
  %3434 = vmatpush2.msra.mxu0 0.0
  %3435 = vmatprep.subr.mxu0 0.0
  %3436 = vmatpush2.msra.mxu0 0.0
  %3437 = vmatprep.subr.mxu0 0.0
  %3438 = vmatpush2.msra.mxu0 0.0
  %3439 = vmatprep.subr.mxu0 0.0
  %3440 = vmatpush2.msra.mxu0 0.0
  %3441 = vmatprep.subr.mxu0 0.0
  %3442 = vmatpush2.msra.mxu0 0.0
  %3443 = vmatprep.subr.mxu0 0.0
  %3444 = vmatpush2.msra.mxu0 0.0
  %3445 = vmatprep.subr.mxu0 0.0
  %3446 = vmatpush2.msra.mxu0 0.0
  %3447 = vmatprep.subr.mxu0 0.0
  %3448 = vmatpush2.msra.mxu0 0.0
  %3449 = vmatprep.subr.mxu0 0.0
  %3450 = vmatpush2.msra.mxu0 0.0
  %3451 = vmatprep.mubr.f32.mxu0 0.0
  %v3452 = vand.u32 %v921, 4294901760
  %3453 = vmatmul.mubr.f32.gmra.mxu0 %v3452
  %v3454 = vpop.f32.mrf.mxu0
  %v3455 = vadd.f32 %v3380, %v3454
  %v3456 = vpop.f32.mrf.mxu0
  %3457 = vdwg.mxu0
  %v3459 = vsel %vm367, %v3455, 0
  %3461 = vmatprep.subr.mxu0 0.0
  %3462 = vmatpush1.msra.mxu0 0.0
  %3463 = vmatprep.subr.mxu0 0.0
  %3464 = vmatpush1.msra.mxu0 0.0
  %3465 = vmatprep.subr.mxu0 0.0
  %3466 = vmatpush1.msra.mxu0 0.0
  %3467 = vmatprep.subr.mxu0 0.0
  %3468 = vmatpush1.msra.mxu0 0.0
  %3469 = vmatprep.subr.mxu0 0.0
  %3470 = vmatpush1.msra.mxu0 0.0
  %3471 = vmatprep.subr.mxu0 0.0
  %3472 = vmatpush1.msra.mxu0 0.0
  %3473 = vmatprep.subr.mxu0 0.0
  %3474 = vmatpush1.msra.mxu0 0.0
  %3475 = vmatprep.subr.mxu0 0.0
  %3476 = vmatpush1.msra.mxu0 0.0
  %3477 = vmatprep.subr.mxu0 0.0
  %3478 = vmatpush1.msra.mxu0 0.0
  %3479 = vmatprep.subr.mxu0 0.0
  %3480 = vmatpush1.msra.mxu0 0.0
  %3481 = vmatprep.subr.mxu0 0.0
  %3482 = vmatpush1.msra.mxu0 0.0
  %3483 = vmatprep.subr.mxu0 0.0
  %3484 = vmatpush1.msra.mxu0 0.0
  %3485 = vmatprep.subr.mxu0 0.0
  %v3486 = vand.u32 %v749, 4294901760
  %3487 = vmatpush1.msra.mxu0 %v3486
  %3488 = vmatprep.subr.mxu0 0.0
  %v3489 = vand.u32 %v748, 4294901760
  %3490 = vmatpush1.msra.mxu0 %v3489
  %3491 = vmatprep.subr.mxu0 0.0
  %v3492 = vand.u32 %v747, 4294901760
  %3493 = vmatpush1.msra.mxu0 %v3492
  %3494 = vmatprep.subr.mxu0 0.0
  %v3495 = vand.u32 %v746, 4294901760
  %3496 = vmatpush1.msra.mxu0 %v3495
  %3497 = vmatprep.subr.mxu0 0.0
  %3498 = vmatpush2.msra.mxu0 0.0
  %3499 = vmatprep.subr.mxu0 0.0
  %3500 = vmatpush2.msra.mxu0 0.0
  %3501 = vmatprep.subr.mxu0 0.0
  %3502 = vmatpush2.msra.mxu0 0.0
  %3503 = vmatprep.subr.mxu0 0.0
  %3504 = vmatpush2.msra.mxu0 0.0
  %3505 = vmatprep.subr.mxu0 0.0
  %3506 = vmatpush2.msra.mxu0 0.0
  %3507 = vmatprep.subr.mxu0 0.0
  %3508 = vmatpush2.msra.mxu0 0.0
  %3509 = vmatprep.subr.mxu0 0.0
  %3510 = vmatpush2.msra.mxu0 0.0
  %3511 = vmatprep.subr.mxu0 0.0
  %3512 = vmatpush2.msra.mxu0 0.0
  %3513 = vmatprep.subr.mxu0 0.0
  %3514 = vmatpush2.msra.mxu0 0.0
  %3515 = vmatprep.subr.mxu0 0.0
  %3516 = vmatpush2.msra.mxu0 0.0
  %3517 = vmatprep.subr.mxu0 0.0
  %3518 = vmatpush2.msra.mxu0 0.0
  %3519 = vmatprep.subr.mxu0 0.0
  %3520 = vmatpush2.msra.mxu0 0.0
  %3521 = vmatprep.subr.mxu0 0.0
  %3522 = vmatpush2.msra.mxu0 0.0
  %3523 = vmatprep.subr.mxu0 0.0
  %3524 = vmatpush2.msra.mxu0 0.0
  %3525 = vmatprep.subr.mxu0 0.0
  %3526 = vmatpush2.msra.mxu0 0.0
  %3527 = vmatprep.subr.mxu0 0.0
  %3528 = vmatpush2.msra.mxu0 0.0
  %3529 = vmatprep.mubr.f32.mxu0 0.0
  %v3530 = vand.u32 %v3459, 4294901760
  %v3531 = vsub.f32 %v3459, %v3530
  %v3532 = vand.u32 %v3531, 4294901760
  %v3533 = vsub.f32 %v3531, %v3532
  %v3534 = vand.u32 %v3533, 4294901760
  %3535 = vmatmul.mubr.f32.gmra.mxu0 %v3534
  %v3536 = vpop.f32.mrf.mxu0
  %v3537 = vadd.f32 0.0, %v3536
  %v3538 = vpop.f32.mrf.mxu0
  %3539 = vdwg.mxu0
  %3540 = vmatprep.subr.mxu0 0.0
  %3541 = vmatpush1.msra.mxu0 0.0
  %3542 = vmatprep.subr.mxu0 0.0
  %3543 = vmatpush1.msra.mxu0 0.0
  %3544 = vmatprep.subr.mxu0 0.0
  %3545 = vmatpush1.msra.mxu0 0.0
  %3546 = vmatprep.subr.mxu0 0.0
  %3547 = vmatpush1.msra.mxu0 0.0
  %3548 = vmatprep.subr.mxu0 0.0
  %3549 = vmatpush1.msra.mxu0 0.0
  %3550 = vmatprep.subr.mxu0 0.0
  %3551 = vmatpush1.msra.mxu0 0.0
  %3552 = vmatprep.subr.mxu0 0.0
  %3553 = vmatpush1.msra.mxu0 0.0
  %3554 = vmatprep.subr.mxu0 0.0
  %3555 = vmatpush1.msra.mxu0 0.0
  %3556 = vmatprep.subr.mxu0 0.0
  %3557 = vmatpush1.msra.mxu0 0.0
  %3558 = vmatprep.subr.mxu0 0.0
  %3559 = vmatpush1.msra.mxu0 0.0
  %3560 = vmatprep.subr.mxu0 0.0
  %3561 = vmatpush1.msra.mxu0 0.0
  %3562 = vmatprep.subr.mxu0 0.0
  %3563 = vmatpush1.msra.mxu0 0.0
  %3564 = vmatprep.subr.mxu0 0.0
  %v3565 = vand.u32 %v749, 4294901760
  %v3566 = vsub.f32 %v749, %v3565
  %v3567 = vand.u32 %v3566, 4294901760
  %v3568 = vsub.f32 %v3566, %v3567
  %v3569 = vand.u32 %v3568, 4294901760
  %3570 = vmatpush1.msra.mxu0 %v3569
  %3571 = vmatprep.subr.mxu0 0.0
  %v3572 = vand.u32 %v748, 4294901760
  %v3573 = vsub.f32 %v748, %v3572
  %v3574 = vand.u32 %v3573, 4294901760
  %v3575 = vsub.f32 %v3573, %v3574
  %v3576 = vand.u32 %v3575, 4294901760
  %3577 = vmatpush1.msra.mxu0 %v3576
  %3578 = vmatprep.subr.mxu0 0.0
  %v3579 = vand.u32 %v747, 4294901760
  %v3580 = vsub.f32 %v747, %v3579
  %v3581 = vand.u32 %v3580, 4294901760
  %v3582 = vsub.f32 %v3580, %v3581
  %v3583 = vand.u32 %v3582, 4294901760
  %3584 = vmatpush1.msra.mxu0 %v3583
  %3585 = vmatprep.subr.mxu0 0.0
  %v3586 = vand.u32 %v746, 4294901760
  %v3587 = vsub.f32 %v746, %v3586
  %v3588 = vand.u32 %v3587, 4294901760
  %v3589 = vsub.f32 %v3587, %v3588
  %v3590 = vand.u32 %v3589, 4294901760
  %3591 = vmatpush1.msra.mxu0 %v3590
  %3592 = vmatprep.subr.mxu0 0.0
  %3593 = vmatpush2.msra.mxu0 0.0
  %3594 = vmatprep.subr.mxu0 0.0
  %3595 = vmatpush2.msra.mxu0 0.0
  %3596 = vmatprep.subr.mxu0 0.0
  %3597 = vmatpush2.msra.mxu0 0.0
  %3598 = vmatprep.subr.mxu0 0.0
  %3599 = vmatpush2.msra.mxu0 0.0
  %3600 = vmatprep.subr.mxu0 0.0
  %3601 = vmatpush2.msra.mxu0 0.0
  %3602 = vmatprep.subr.mxu0 0.0
  %3603 = vmatpush2.msra.mxu0 0.0
  %3604 = vmatprep.subr.mxu0 0.0
  %3605 = vmatpush2.msra.mxu0 0.0
  %3606 = vmatprep.subr.mxu0 0.0
  %3607 = vmatpush2.msra.mxu0 0.0
  %3608 = vmatprep.subr.mxu0 0.0
  %3609 = vmatpush2.msra.mxu0 0.0
  %3610 = vmatprep.subr.mxu0 0.0
  %3611 = vmatpush2.msra.mxu0 0.0
  %3612 = vmatprep.subr.mxu0 0.0
  %3613 = vmatpush2.msra.mxu0 0.0
  %3614 = vmatprep.subr.mxu0 0.0
  %3615 = vmatpush2.msra.mxu0 0.0
  %3616 = vmatprep.subr.mxu0 0.0
  %3617 = vmatpush2.msra.mxu0 0.0
  %3618 = vmatprep.subr.mxu0 0.0
  %3619 = vmatpush2.msra.mxu0 0.0
  %3620 = vmatprep.subr.mxu0 0.0
  %3621 = vmatpush2.msra.mxu0 0.0
  %3622 = vmatprep.subr.mxu0 0.0
  %3623 = vmatpush2.msra.mxu0 0.0
  %3624 = vmatprep.mubr.f32.mxu0 0.0
  %v3625 = vand.u32 %v3459, 4294901760
  %3626 = vmatmul.mubr.f32.gmra.mxu0 %v3625
  %v3627 = vpop.f32.mrf.mxu0
  %v3628 = vadd.f32 %v3537, %v3627
  %v3629 = vpop.f32.mrf.mxu0
  %3630 = vdwg.mxu0
  %3631 = vmatprep.subr.mxu0 0.0
  %3632 = vmatpush1.msra.mxu0 0.0
  %3633 = vmatprep.subr.mxu0 0.0
  %3634 = vmatpush1.msra.mxu0 0.0
  %3635 = vmatprep.subr.mxu0 0.0
  %3636 = vmatpush1.msra.mxu0 0.0
  %3637 = vmatprep.subr.mxu0 0.0
  %3638 = vmatpush1.msra.mxu0 0.0
  %3639 = vmatprep.subr.mxu0 0.0
  %3640 = vmatpush1.msra.mxu0 0.0
  %3641 = vmatprep.subr.mxu0 0.0
  %3642 = vmatpush1.msra.mxu0 0.0
  %3643 = vmatprep.subr.mxu0 0.0
  %3644 = vmatpush1.msra.mxu0 0.0
  %3645 = vmatprep.subr.mxu0 0.0
  %3646 = vmatpush1.msra.mxu0 0.0
  %3647 = vmatprep.subr.mxu0 0.0
  %3648 = vmatpush1.msra.mxu0 0.0
  %3649 = vmatprep.subr.mxu0 0.0
  %3650 = vmatpush1.msra.mxu0 0.0
  %3651 = vmatprep.subr.mxu0 0.0
  %3652 = vmatpush1.msra.mxu0 0.0
  %3653 = vmatprep.subr.mxu0 0.0
  %3654 = vmatpush1.msra.mxu0 0.0
  %3655 = vmatprep.subr.mxu0 0.0
  %v3656 = vand.u32 %v749, 4294901760
  %v3657 = vsub.f32 %v749, %v3656
  %3658 = vmatpush1.msra.mxu0 %v3657
  %3659 = vmatprep.subr.mxu0 0.0
  %v3660 = vand.u32 %v748, 4294901760
  %v3661 = vsub.f32 %v748, %v3660
  %3662 = vmatpush1.msra.mxu0 %v3661
  %3663 = vmatprep.subr.mxu0 0.0
  %v3664 = vand.u32 %v747, 4294901760
  %v3665 = vsub.f32 %v747, %v3664
  %3666 = vmatpush1.msra.mxu0 %v3665
  %3667 = vmatprep.subr.mxu0 0.0
  %v3668 = vand.u32 %v746, 4294901760
  %v3669 = vsub.f32 %v746, %v3668
  %3670 = vmatpush1.msra.mxu0 %v3669
  %3671 = vmatprep.subr.mxu0 0.0
  %3672 = vmatpush2.msra.mxu0 0.0
  %3673 = vmatprep.subr.mxu0 0.0
  %3674 = vmatpush2.msra.mxu0 0.0
  %3675 = vmatprep.subr.mxu0 0.0
  %3676 = vmatpush2.msra.mxu0 0.0
  %3677 = vmatprep.subr.mxu0 0.0
  %3678 = vmatpush2.msra.mxu0 0.0
  %3679 = vmatprep.subr.mxu0 0.0
  %3680 = vmatpush2.msra.mxu0 0.0
  %3681 = vmatprep.subr.mxu0 0.0
  %3682 = vmatpush2.msra.mxu0 0.0
  %3683 = vmatprep.subr.mxu0 0.0
  %3684 = vmatpush2.msra.mxu0 0.0
  %3685 = vmatprep.subr.mxu0 0.0
  %3686 = vmatpush2.msra.mxu0 0.0
  %3687 = vmatprep.subr.mxu0 0.0
  %3688 = vmatpush2.msra.mxu0 0.0
  %3689 = vmatprep.subr.mxu0 0.0
  %3690 = vmatpush2.msra.mxu0 0.0
  %3691 = vmatprep.subr.mxu0 0.0
  %3692 = vmatpush2.msra.mxu0 0.0
  %3693 = vmatprep.subr.mxu0 0.0
  %3694 = vmatpush2.msra.mxu0 0.0
  %3695 = vmatprep.subr.mxu0 0.0
  %3696 = vmatpush2.msra.mxu0 0.0
  %3697 = vmatprep.subr.mxu0 0.0
  %3698 = vmatpush2.msra.mxu0 0.0
  %3699 = vmatprep.subr.mxu0 0.0
  %3700 = vmatpush2.msra.mxu0 0.0
  %3701 = vmatprep.subr.mxu0 0.0
  %3702 = vmatpush2.msra.mxu0 0.0
  %3703 = vmatprep.mubr.f32.mxu0 0.0
  %v3704 = vand.u32 %v3459, 4294901760
  %v3705 = vsub.f32 %v3459, %v3704
  %3706 = vmatmul.mubr.f32.gmra.mxu0 %v3705
  %v3707 = vpop.f32.mrf.mxu0
  %v3708 = vadd.f32 %v3628, %v3707
  %v3709 = vpop.f32.mrf.mxu0
  %3710 = vdwg.mxu0
  %3711 = vmatprep.subr.mxu0 0.0
  %3712 = vmatpush1.msra.mxu0 0.0
  %3713 = vmatprep.subr.mxu0 0.0
  %3714 = vmatpush1.msra.mxu0 0.0
  %3715 = vmatprep.subr.mxu0 0.0
  %3716 = vmatpush1.msra.mxu0 0.0
  %3717 = vmatprep.subr.mxu0 0.0
  %3718 = vmatpush1.msra.mxu0 0.0
  %3719 = vmatprep.subr.mxu0 0.0
  %3720 = vmatpush1.msra.mxu0 0.0
  %3721 = vmatprep.subr.mxu0 0.0
  %3722 = vmatpush1.msra.mxu0 0.0
  %3723 = vmatprep.subr.mxu0 0.0
  %3724 = vmatpush1.msra.mxu0 0.0
  %3725 = vmatprep.subr.mxu0 0.0
  %3726 = vmatpush1.msra.mxu0 0.0
  %3727 = vmatprep.subr.mxu0 0.0
  %3728 = vmatpush1.msra.mxu0 0.0
  %3729 = vmatprep.subr.mxu0 0.0
  %3730 = vmatpush1.msra.mxu0 0.0
  %3731 = vmatprep.subr.mxu0 0.0
  %3732 = vmatpush1.msra.mxu0 0.0
  %3733 = vmatprep.subr.mxu0 0.0
  %3734 = vmatpush1.msra.mxu0 0.0
  %3735 = vmatprep.subr.mxu0 0.0
  %v3736 = vand.u32 %v749, 4294901760
  %3737 = vmatpush1.msra.mxu0 %v3736
  %3738 = vmatprep.subr.mxu0 0.0
  %v3739 = vand.u32 %v748, 4294901760
  %3740 = vmatpush1.msra.mxu0 %v3739
  %3741 = vmatprep.subr.mxu0 0.0
  %v3742 = vand.u32 %v747, 4294901760
  %3743 = vmatpush1.msra.mxu0 %v3742
  %3744 = vmatprep.subr.mxu0 0.0
  %v3745 = vand.u32 %v746, 4294901760
  %3746 = vmatpush1.msra.mxu0 %v3745
  %3747 = vmatprep.subr.mxu0 0.0
  %3748 = vmatpush2.msra.mxu0 0.0
  %3749 = vmatprep.subr.mxu0 0.0
  %3750 = vmatpush2.msra.mxu0 0.0
  %3751 = vmatprep.subr.mxu0 0.0
  %3752 = vmatpush2.msra.mxu0 0.0
  %3753 = vmatprep.subr.mxu0 0.0
  %3754 = vmatpush2.msra.mxu0 0.0
  %3755 = vmatprep.subr.mxu0 0.0
  %3756 = vmatpush2.msra.mxu0 0.0
  %3757 = vmatprep.subr.mxu0 0.0
  %3758 = vmatpush2.msra.mxu0 0.0
  %3759 = vmatprep.subr.mxu0 0.0
  %3760 = vmatpush2.msra.mxu0 0.0
  %3761 = vmatprep.subr.mxu0 0.0
  %3762 = vmatpush2.msra.mxu0 0.0
  %3763 = vmatprep.subr.mxu0 0.0
  %3764 = vmatpush2.msra.mxu0 0.0
  %3765 = vmatprep.subr.mxu0 0.0
  %3766 = vmatpush2.msra.mxu0 0.0
  %3767 = vmatprep.subr.mxu0 0.0
  %3768 = vmatpush2.msra.mxu0 0.0
  %3769 = vmatprep.subr.mxu0 0.0
  %3770 = vmatpush2.msra.mxu0 0.0
  %3771 = vmatprep.subr.mxu0 0.0
  %3772 = vmatpush2.msra.mxu0 0.0
  %3773 = vmatprep.subr.mxu0 0.0
  %3774 = vmatpush2.msra.mxu0 0.0
  %3775 = vmatprep.subr.mxu0 0.0
  %3776 = vmatpush2.msra.mxu0 0.0
  %3777 = vmatprep.subr.mxu0 0.0
  %3778 = vmatpush2.msra.mxu0 0.0
  %3779 = vmatprep.mubr.f32.mxu0 0.0
  %v3780 = vand.u32 %v3459, 4294901760
  %v3781 = vsub.f32 %v3459, %v3780
  %v3782 = vand.u32 %v3781, 4294901760
  %3783 = vmatmul.mubr.f32.gmra.mxu0 %v3782
  %v3784 = vpop.f32.mrf.mxu0
  %v3785 = vadd.f32 %v3708, %v3784
  %v3786 = vpop.f32.mrf.mxu0
  %3787 = vdwg.mxu0
  %3788 = vmatprep.subr.mxu0 0.0
  %3789 = vmatpush1.msra.mxu0 0.0
  %3790 = vmatprep.subr.mxu0 0.0
  %3791 = vmatpush1.msra.mxu0 0.0
  %3792 = vmatprep.subr.mxu0 0.0
  %3793 = vmatpush1.msra.mxu0 0.0
  %3794 = vmatprep.subr.mxu0 0.0
  %3795 = vmatpush1.msra.mxu0 0.0
  %3796 = vmatprep.subr.mxu0 0.0
  %3797 = vmatpush1.msra.mxu0 0.0
  %3798 = vmatprep.subr.mxu0 0.0
  %3799 = vmatpush1.msra.mxu0 0.0
  %3800 = vmatprep.subr.mxu0 0.0
  %3801 = vmatpush1.msra.mxu0 0.0
  %3802 = vmatprep.subr.mxu0 0.0
  %3803 = vmatpush1.msra.mxu0 0.0
  %3804 = vmatprep.subr.mxu0 0.0
  %3805 = vmatpush1.msra.mxu0 0.0
  %3806 = vmatprep.subr.mxu0 0.0
  %3807 = vmatpush1.msra.mxu0 0.0
  %3808 = vmatprep.subr.mxu0 0.0
  %3809 = vmatpush1.msra.mxu0 0.0
  %3810 = vmatprep.subr.mxu0 0.0
  %3811 = vmatpush1.msra.mxu0 0.0
  %3812 = vmatprep.subr.mxu0 0.0
  %v3813 = vand.u32 %v749, 4294901760
  %v3814 = vsub.f32 %v749, %v3813
  %v3815 = vand.u32 %v3814, 4294901760
  %3816 = vmatpush1.msra.mxu0 %v3815
  %3817 = vmatprep.subr.mxu0 0.0
  %v3818 = vand.u32 %v748, 4294901760
  %v3819 = vsub.f32 %v748, %v3818
  %v3820 = vand.u32 %v3819, 4294901760
  %3821 = vmatpush1.msra.mxu0 %v3820
  %3822 = vmatprep.subr.mxu0 0.0
  %v3823 = vand.u32 %v747, 4294901760
  %v3824 = vsub.f32 %v747, %v3823
  %v3825 = vand.u32 %v3824, 4294901760
  %3826 = vmatpush1.msra.mxu0 %v3825
  %3827 = vmatprep.subr.mxu0 0.0
  %v3828 = vand.u32 %v746, 4294901760
  %v3829 = vsub.f32 %v746, %v3828
  %v3830 = vand.u32 %v3829, 4294901760
  %3831 = vmatpush1.msra.mxu0 %v3830
  %3832 = vmatprep.subr.mxu0 0.0
  %3833 = vmatpush2.msra.mxu0 0.0
  %3834 = vmatprep.subr.mxu0 0.0
  %3835 = vmatpush2.msra.mxu0 0.0
  %3836 = vmatprep.subr.mxu0 0.0
  %3837 = vmatpush2.msra.mxu0 0.0
  %3838 = vmatprep.subr.mxu0 0.0
  %3839 = vmatpush2.msra.mxu0 0.0
  %3840 = vmatprep.subr.mxu0 0.0
  %3841 = vmatpush2.msra.mxu0 0.0
  %3842 = vmatprep.subr.mxu0 0.0
  %3843 = vmatpush2.msra.mxu0 0.0
  %3844 = vmatprep.subr.mxu0 0.0
  %3845 = vmatpush2.msra.mxu0 0.0
  %3846 = vmatprep.subr.mxu0 0.0
  %3847 = vmatpush2.msra.mxu0 0.0
  %3848 = vmatprep.subr.mxu0 0.0
  %3849 = vmatpush2.msra.mxu0 0.0
  %3850 = vmatprep.subr.mxu0 0.0
  %3851 = vmatpush2.msra.mxu0 0.0
  %3852 = vmatprep.subr.mxu0 0.0
  %3853 = vmatpush2.msra.mxu0 0.0
  %3854 = vmatprep.subr.mxu0 0.0
  %3855 = vmatpush2.msra.mxu0 0.0
  %3856 = vmatprep.subr.mxu0 0.0
  %3857 = vmatpush2.msra.mxu0 0.0
  %3858 = vmatprep.subr.mxu0 0.0
  %3859 = vmatpush2.msra.mxu0 0.0
  %3860 = vmatprep.subr.mxu0 0.0
  %3861 = vmatpush2.msra.mxu0 0.0
  %3862 = vmatprep.subr.mxu0 0.0
  %3863 = vmatpush2.msra.mxu0 0.0
  %3864 = vmatprep.mubr.f32.mxu0 0.0
  %v3865 = vand.u32 %v3459, 4294901760
  %3866 = vmatmul.mubr.f32.gmra.mxu0 %v3865
  %v3867 = vpop.f32.mrf.mxu0
  %v3868 = vadd.f32 %v3785, %v3867
  %v3869 = vpop.f32.mrf.mxu0
  %3870 = vdwg.mxu0
  %3871 = vmatprep.subr.mxu0 0.0
  %3872 = vmatpush1.msra.mxu0 0.0
  %3873 = vmatprep.subr.mxu0 0.0
  %3874 = vmatpush1.msra.mxu0 0.0
  %3875 = vmatprep.subr.mxu0 0.0
  %3876 = vmatpush1.msra.mxu0 0.0
  %3877 = vmatprep.subr.mxu0 0.0
  %3878 = vmatpush1.msra.mxu0 0.0
  %3879 = vmatprep.subr.mxu0 0.0
  %3880 = vmatpush1.msra.mxu0 0.0
  %3881 = vmatprep.subr.mxu0 0.0
  %3882 = vmatpush1.msra.mxu0 0.0
  %3883 = vmatprep.subr.mxu0 0.0
  %3884 = vmatpush1.msra.mxu0 0.0
  %3885 = vmatprep.subr.mxu0 0.0
  %3886 = vmatpush1.msra.mxu0 0.0
  %3887 = vmatprep.subr.mxu0 0.0
  %3888 = vmatpush1.msra.mxu0 0.0
  %3889 = vmatprep.subr.mxu0 0.0
  %3890 = vmatpush1.msra.mxu0 0.0
  %3891 = vmatprep.subr.mxu0 0.0
  %3892 = vmatpush1.msra.mxu0 0.0
  %3893 = vmatprep.subr.mxu0 0.0
  %3894 = vmatpush1.msra.mxu0 0.0
  %3895 = vmatprep.subr.mxu0 0.0
  %v3896 = vand.u32 %v749, 4294901760
  %3897 = vmatpush1.msra.mxu0 %v3896
  %3898 = vmatprep.subr.mxu0 0.0
  %v3899 = vand.u32 %v748, 4294901760
  %3900 = vmatpush1.msra.mxu0 %v3899
  %3901 = vmatprep.subr.mxu0 0.0
  %v3902 = vand.u32 %v747, 4294901760
  %3903 = vmatpush1.msra.mxu0 %v3902
  %3904 = vmatprep.subr.mxu0 0.0
  %v3905 = vand.u32 %v746, 4294901760
  %3906 = vmatpush1.msra.mxu0 %v3905
  %3907 = vmatprep.subr.mxu0 0.0
  %3908 = vmatpush2.msra.mxu0 0.0
  %3909 = vmatprep.subr.mxu0 0.0
  %3910 = vmatpush2.msra.mxu0 0.0
  %3911 = vmatprep.subr.mxu0 0.0
  %3912 = vmatpush2.msra.mxu0 0.0
  %3913 = vmatprep.subr.mxu0 0.0
  %3914 = vmatpush2.msra.mxu0 0.0
  %3915 = vmatprep.subr.mxu0 0.0
  %3916 = vmatpush2.msra.mxu0 0.0
  %3917 = vmatprep.subr.mxu0 0.0
  %3918 = vmatpush2.msra.mxu0 0.0
  %3919 = vmatprep.subr.mxu0 0.0
  %3920 = vmatpush2.msra.mxu0 0.0
  %3921 = vmatprep.subr.mxu0 0.0
  %3922 = vmatpush2.msra.mxu0 0.0
  %3923 = vmatprep.subr.mxu0 0.0
  %3924 = vmatpush2.msra.mxu0 0.0
  %3925 = vmatprep.subr.mxu0 0.0
  %3926 = vmatpush2.msra.mxu0 0.0
  %3927 = vmatprep.subr.mxu0 0.0
  %3928 = vmatpush2.msra.mxu0 0.0
  %3929 = vmatprep.subr.mxu0 0.0
  %3930 = vmatpush2.msra.mxu0 0.0
  %3931 = vmatprep.subr.mxu0 0.0
  %3932 = vmatpush2.msra.mxu0 0.0
  %3933 = vmatprep.subr.mxu0 0.0
  %3934 = vmatpush2.msra.mxu0 0.0
  %3935 = vmatprep.subr.mxu0 0.0
  %3936 = vmatpush2.msra.mxu0 0.0
  %3937 = vmatprep.subr.mxu0 0.0
  %3938 = vmatpush2.msra.mxu0 0.0
  %3939 = vmatprep.mubr.f32.mxu0 0.0
  %v3940 = vand.u32 %v3459, 4294901760
  %3941 = vmatmul.mubr.f32.gmra.mxu0 %v3940
  %v3942 = vpop.f32.mrf.mxu0
  %v3943 = vadd.f32 %v3868, %v3942
  %v3944 = vpop.f32.mrf.mxu0
  %3945 = vdwg.mxu0
  %v3947 = vsel %vm367, %v3943, 0
  %3949 = vmatprep.subr.mxu0 0.0
  %3950 = vmatpush1.msra.mxu0 0.0
  %3951 = vmatprep.subr.mxu0 0.0
  %3952 = vmatpush1.msra.mxu0 0.0
  %3953 = vmatprep.subr.mxu0 0.0
  %3954 = vmatpush1.msra.mxu0 0.0
  %3955 = vmatprep.subr.mxu0 0.0
  %3956 = vmatpush1.msra.mxu0 0.0
  %3957 = vmatprep.subr.mxu0 0.0
  %3958 = vmatpush1.msra.mxu0 0.0
  %3959 = vmatprep.subr.mxu0 0.0
  %3960 = vmatpush1.msra.mxu0 0.0
  %3961 = vmatprep.subr.mxu0 0.0
  %3962 = vmatpush1.msra.mxu0 0.0
  %3963 = vmatprep.subr.mxu0 0.0
  %3964 = vmatpush1.msra.mxu0 0.0
  %3965 = vmatprep.subr.mxu0 0.0
  %3966 = vmatpush1.msra.mxu0 0.0
  %3967 = vmatprep.subr.mxu0 0.0
  %3968 = vmatpush1.msra.mxu0 0.0
  %3969 = vmatprep.subr.mxu0 0.0
  %3970 = vmatpush1.msra.mxu0 0.0
  %3971 = vmatprep.subr.mxu0 0.0
  %3972 = vmatpush1.msra.mxu0 0.0
  %3973 = vmatprep.subr.mxu0 0.0
  %v3974 = vand.u32 %v582, 4294901760
  %3975 = vmatpush1.msra.mxu0 %v3974
  %3976 = vmatprep.subr.mxu0 0.0
  %v3977 = vand.u32 %v581, 4294901760
  %3978 = vmatpush1.msra.mxu0 %v3977
  %3979 = vmatprep.subr.mxu0 0.0
  %v3980 = vand.u32 %v580, 4294901760
  %3981 = vmatpush1.msra.mxu0 %v3980
  %3982 = vmatprep.subr.mxu0 0.0
  %v3983 = vand.u32 %v579, 4294901760
  %3984 = vmatpush1.msra.mxu0 %v3983
  %3985 = vmatprep.subr.mxu0 0.0
  %3986 = vmatpush2.msra.mxu0 0.0
  %3987 = vmatprep.subr.mxu0 0.0
  %3988 = vmatpush2.msra.mxu0 0.0
  %3989 = vmatprep.subr.mxu0 0.0
  %3990 = vmatpush2.msra.mxu0 0.0
  %3991 = vmatprep.subr.mxu0 0.0
  %3992 = vmatpush2.msra.mxu0 0.0
  %3993 = vmatprep.subr.mxu0 0.0
  %3994 = vmatpush2.msra.mxu0 0.0
  %3995 = vmatprep.subr.mxu0 0.0
  %3996 = vmatpush2.msra.mxu0 0.0
  %3997 = vmatprep.subr.mxu0 0.0
  %3998 = vmatpush2.msra.mxu0 0.0
  %3999 = vmatprep.subr.mxu0 0.0
  %4000 = vmatpush2.msra.mxu0 0.0
  %4001 = vmatprep.subr.mxu0 0.0
  %4002 = vmatpush2.msra.mxu0 0.0
  %4003 = vmatprep.subr.mxu0 0.0
  %4004 = vmatpush2.msra.mxu0 0.0
  %4005 = vmatprep.subr.mxu0 0.0
  %4006 = vmatpush2.msra.mxu0 0.0
  %4007 = vmatprep.subr.mxu0 0.0
  %4008 = vmatpush2.msra.mxu0 0.0
  %4009 = vmatprep.subr.mxu0 0.0
  %4010 = vmatpush2.msra.mxu0 0.0
  %4011 = vmatprep.subr.mxu0 0.0
  %4012 = vmatpush2.msra.mxu0 0.0
  %4013 = vmatprep.subr.mxu0 0.0
  %4014 = vmatpush2.msra.mxu0 0.0
  %4015 = vmatprep.subr.mxu0 0.0
  %4016 = vmatpush2.msra.mxu0 0.0
  %4017 = vmatprep.mubr.f32.mxu0 0.0
  %v4018 = vand.u32 %v3947, 4294901760
  %v4019 = vsub.f32 %v3947, %v4018
  %v4020 = vand.u32 %v4019, 4294901760
  %v4021 = vsub.f32 %v4019, %v4020
  %v4022 = vand.u32 %v4021, 4294901760
  %4023 = vmatmul.mubr.f32.gmra.mxu0 %v4022
  %v4024 = vpop.f32.mrf.mxu0
  %v4025 = vadd.f32 0.0, %v4024
  %v4026 = vpop.f32.mrf.mxu0
  %4027 = vdwg.mxu0
  %4028 = vmatprep.subr.mxu0 0.0
  %4029 = vmatpush1.msra.mxu0 0.0
  %4030 = vmatprep.subr.mxu0 0.0
  %4031 = vmatpush1.msra.mxu0 0.0
  %4032 = vmatprep.subr.mxu0 0.0
  %4033 = vmatpush1.msra.mxu0 0.0
  %4034 = vmatprep.subr.mxu0 0.0
  %4035 = vmatpush1.msra.mxu0 0.0
  %4036 = vmatprep.subr.mxu0 0.0
  %4037 = vmatpush1.msra.mxu0 0.0
  %4038 = vmatprep.subr.mxu0 0.0
  %4039 = vmatpush1.msra.mxu0 0.0
  %4040 = vmatprep.subr.mxu0 0.0
  %4041 = vmatpush1.msra.mxu0 0.0
  %4042 = vmatprep.subr.mxu0 0.0
  %4043 = vmatpush1.msra.mxu0 0.0
  %4044 = vmatprep.subr.mxu0 0.0
  %4045 = vmatpush1.msra.mxu0 0.0
  %4046 = vmatprep.subr.mxu0 0.0
  %4047 = vmatpush1.msra.mxu0 0.0
  %4048 = vmatprep.subr.mxu0 0.0
  %4049 = vmatpush1.msra.mxu0 0.0
  %4050 = vmatprep.subr.mxu0 0.0
  %4051 = vmatpush1.msra.mxu0 0.0
  %4052 = vmatprep.subr.mxu0 0.0
  %v4053 = vand.u32 %v582, 4294901760
  %v4054 = vsub.f32 %v582, %v4053
  %v4055 = vand.u32 %v4054, 4294901760
  %v4056 = vsub.f32 %v4054, %v4055
  %v4057 = vand.u32 %v4056, 4294901760
  %4058 = vmatpush1.msra.mxu0 %v4057
  %4059 = vmatprep.subr.mxu0 0.0
  %v4060 = vand.u32 %v581, 4294901760
  %v4061 = vsub.f32 %v581, %v4060
  %v4062 = vand.u32 %v4061, 4294901760
  %v4063 = vsub.f32 %v4061, %v4062
  %v4064 = vand.u32 %v4063, 4294901760
  %4065 = vmatpush1.msra.mxu0 %v4064
  %4066 = vmatprep.subr.mxu0 0.0
  %v4067 = vand.u32 %v580, 4294901760
  %v4068 = vsub.f32 %v580, %v4067
  %v4069 = vand.u32 %v4068, 4294901760
  %v4070 = vsub.f32 %v4068, %v4069
  %v4071 = vand.u32 %v4070, 4294901760
  %4072 = vmatpush1.msra.mxu0 %v4071
  %4073 = vmatprep.subr.mxu0 0.0
  %v4074 = vand.u32 %v579, 4294901760
  %v4075 = vsub.f32 %v579, %v4074
  %v4076 = vand.u32 %v4075, 4294901760
  %v4077 = vsub.f32 %v4075, %v4076
  %v4078 = vand.u32 %v4077, 4294901760
  %4079 = vmatpush1.msra.mxu0 %v4078
  %4080 = vmatprep.subr.mxu0 0.0
  %4081 = vmatpush2.msra.mxu0 0.0
  %4082 = vmatprep.subr.mxu0 0.0
  %4083 = vmatpush2.msra.mxu0 0.0
  %4084 = vmatprep.subr.mxu0 0.0
  %4085 = vmatpush2.msra.mxu0 0.0
  %4086 = vmatprep.subr.mxu0 0.0
  %4087 = vmatpush2.msra.mxu0 0.0
  %4088 = vmatprep.subr.mxu0 0.0
  %4089 = vmatpush2.msra.mxu0 0.0
  %4090 = vmatprep.subr.mxu0 0.0
  %4091 = vmatpush2.msra.mxu0 0.0
  %4092 = vmatprep.subr.mxu0 0.0
  %4093 = vmatpush2.msra.mxu0 0.0
  %4094 = vmatprep.subr.mxu0 0.0
  %4095 = vmatpush2.msra.mxu0 0.0
  %4096 = vmatprep.subr.mxu0 0.0
  %4097 = vmatpush2.msra.mxu0 0.0
  %4098 = vmatprep.subr.mxu0 0.0
  %4099 = vmatpush2.msra.mxu0 0.0
  %4100 = vmatprep.subr.mxu0 0.0
  %4101 = vmatpush2.msra.mxu0 0.0
  %4102 = vmatprep.subr.mxu0 0.0
  %4103 = vmatpush2.msra.mxu0 0.0
  %4104 = vmatprep.subr.mxu0 0.0
  %4105 = vmatpush2.msra.mxu0 0.0
  %4106 = vmatprep.subr.mxu0 0.0
  %4107 = vmatpush2.msra.mxu0 0.0
  %4108 = vmatprep.subr.mxu0 0.0
  %4109 = vmatpush2.msra.mxu0 0.0
  %4110 = vmatprep.subr.mxu0 0.0
  %4111 = vmatpush2.msra.mxu0 0.0
  %4112 = vmatprep.mubr.f32.mxu0 0.0
  %v4113 = vand.u32 %v3947, 4294901760
  %4114 = vmatmul.mubr.f32.gmra.mxu0 %v4113
  %v4115 = vpop.f32.mrf.mxu0
  %v4116 = vadd.f32 %v4025, %v4115
  %v4117 = vpop.f32.mrf.mxu0
  %4118 = vdwg.mxu0
  %4119 = vmatprep.subr.mxu0 0.0
  %4120 = vmatpush1.msra.mxu0 0.0
  %4121 = vmatprep.subr.mxu0 0.0
  %4122 = vmatpush1.msra.mxu0 0.0
  %4123 = vmatprep.subr.mxu0 0.0
  %4124 = vmatpush1.msra.mxu0 0.0
  %4125 = vmatprep.subr.mxu0 0.0
  %4126 = vmatpush1.msra.mxu0 0.0
  %4127 = vmatprep.subr.mxu0 0.0
  %4128 = vmatpush1.msra.mxu0 0.0
  %4129 = vmatprep.subr.mxu0 0.0
  %4130 = vmatpush1.msra.mxu0 0.0
  %4131 = vmatprep.subr.mxu0 0.0
  %4132 = vmatpush1.msra.mxu0 0.0
  %4133 = vmatprep.subr.mxu0 0.0
  %4134 = vmatpush1.msra.mxu0 0.0
  %4135 = vmatprep.subr.mxu0 0.0
  %4136 = vmatpush1.msra.mxu0 0.0
  %4137 = vmatprep.subr.mxu0 0.0
  %4138 = vmatpush1.msra.mxu0 0.0
  %4139 = vmatprep.subr.mxu0 0.0
  %4140 = vmatpush1.msra.mxu0 0.0
  %4141 = vmatprep.subr.mxu0 0.0
  %4142 = vmatpush1.msra.mxu0 0.0
  %4143 = vmatprep.subr.mxu0 0.0
  %v4144 = vand.u32 %v582, 4294901760
  %v4145 = vsub.f32 %v582, %v4144
  %4146 = vmatpush1.msra.mxu0 %v4145
  %4147 = vmatprep.subr.mxu0 0.0
  %v4148 = vand.u32 %v581, 4294901760
  %v4149 = vsub.f32 %v581, %v4148
  %4150 = vmatpush1.msra.mxu0 %v4149
  %4151 = vmatprep.subr.mxu0 0.0
  %v4152 = vand.u32 %v580, 4294901760
  %v4153 = vsub.f32 %v580, %v4152
  %4154 = vmatpush1.msra.mxu0 %v4153
  %4155 = vmatprep.subr.mxu0 0.0
  %v4156 = vand.u32 %v579, 4294901760
  %v4157 = vsub.f32 %v579, %v4156
  %4158 = vmatpush1.msra.mxu0 %v4157
  %4159 = vmatprep.subr.mxu0 0.0
  %4160 = vmatpush2.msra.mxu0 0.0
  %4161 = vmatprep.subr.mxu0 0.0
  %4162 = vmatpush2.msra.mxu0 0.0
  %4163 = vmatprep.subr.mxu0 0.0
  %4164 = vmatpush2.msra.mxu0 0.0
  %4165 = vmatprep.subr.mxu0 0.0
  %4166 = vmatpush2.msra.mxu0 0.0
  %4167 = vmatprep.subr.mxu0 0.0
  %4168 = vmatpush2.msra.mxu0 0.0
  %4169 = vmatprep.subr.mxu0 0.0
  %4170 = vmatpush2.msra.mxu0 0.0
  %4171 = vmatprep.subr.mxu0 0.0
  %4172 = vmatpush2.msra.mxu0 0.0
  %4173 = vmatprep.subr.mxu0 0.0
  %4174 = vmatpush2.msra.mxu0 0.0
  %4175 = vmatprep.subr.mxu0 0.0
  %4176 = vmatpush2.msra.mxu0 0.0
  %4177 = vmatprep.subr.mxu0 0.0
  %4178 = vmatpush2.msra.mxu0 0.0
  %4179 = vmatprep.subr.mxu0 0.0
  %4180 = vmatpush2.msra.mxu0 0.0
  %4181 = vmatprep.subr.mxu0 0.0
  %4182 = vmatpush2.msra.mxu0 0.0
  %4183 = vmatprep.subr.mxu0 0.0
  %4184 = vmatpush2.msra.mxu0 0.0
  %4185 = vmatprep.subr.mxu0 0.0
  %4186 = vmatpush2.msra.mxu0 0.0
  %4187 = vmatprep.subr.mxu0 0.0
  %4188 = vmatpush2.msra.mxu0 0.0
  %4189 = vmatprep.subr.mxu0 0.0
  %4190 = vmatpush2.msra.mxu0 0.0
  %4191 = vmatprep.mubr.f32.mxu0 0.0
  %v4192 = vand.u32 %v3947, 4294901760
  %v4193 = vsub.f32 %v3947, %v4192
  %4194 = vmatmul.mubr.f32.gmra.mxu0 %v4193
  %v4195 = vpop.f32.mrf.mxu0
  %v4196 = vadd.f32 %v4116, %v4195
  %v4197 = vpop.f32.mrf.mxu0
  %4198 = vdwg.mxu0
  %4199 = vmatprep.subr.mxu0 0.0
  %4200 = vmatpush1.msra.mxu0 0.0
  %4201 = vmatprep.subr.mxu0 0.0
  %4202 = vmatpush1.msra.mxu0 0.0
  %4203 = vmatprep.subr.mxu0 0.0
  %4204 = vmatpush1.msra.mxu0 0.0
  %4205 = vmatprep.subr.mxu0 0.0
  %4206 = vmatpush1.msra.mxu0 0.0
  %4207 = vmatprep.subr.mxu0 0.0
  %4208 = vmatpush1.msra.mxu0 0.0
  %4209 = vmatprep.subr.mxu0 0.0
  %4210 = vmatpush1.msra.mxu0 0.0
  %4211 = vmatprep.subr.mxu0 0.0
  %4212 = vmatpush1.msra.mxu0 0.0
  %4213 = vmatprep.subr.mxu0 0.0
  %4214 = vmatpush1.msra.mxu0 0.0
  %4215 = vmatprep.subr.mxu0 0.0
  %4216 = vmatpush1.msra.mxu0 0.0
  %4217 = vmatprep.subr.mxu0 0.0
  %4218 = vmatpush1.msra.mxu0 0.0
  %4219 = vmatprep.subr.mxu0 0.0
  %4220 = vmatpush1.msra.mxu0 0.0
  %4221 = vmatprep.subr.mxu0 0.0
  %4222 = vmatpush1.msra.mxu0 0.0
  %4223 = vmatprep.subr.mxu0 0.0
  %v4224 = vand.u32 %v582, 4294901760
  %4225 = vmatpush1.msra.mxu0 %v4224
  %4226 = vmatprep.subr.mxu0 0.0
  %v4227 = vand.u32 %v581, 4294901760
  %4228 = vmatpush1.msra.mxu0 %v4227
  %4229 = vmatprep.subr.mxu0 0.0
  %v4230 = vand.u32 %v580, 4294901760
  %4231 = vmatpush1.msra.mxu0 %v4230
  %4232 = vmatprep.subr.mxu0 0.0
  %v4233 = vand.u32 %v579, 4294901760
  %4234 = vmatpush1.msra.mxu0 %v4233
  %4235 = vmatprep.subr.mxu0 0.0
  %4236 = vmatpush2.msra.mxu0 0.0
  %4237 = vmatprep.subr.mxu0 0.0
  %4238 = vmatpush2.msra.mxu0 0.0
  %4239 = vmatprep.subr.mxu0 0.0
  %4240 = vmatpush2.msra.mxu0 0.0
  %4241 = vmatprep.subr.mxu0 0.0
  %4242 = vmatpush2.msra.mxu0 0.0
  %4243 = vmatprep.subr.mxu0 0.0
  %4244 = vmatpush2.msra.mxu0 0.0
  %4245 = vmatprep.subr.mxu0 0.0
  %4246 = vmatpush2.msra.mxu0 0.0
  %4247 = vmatprep.subr.mxu0 0.0
  %4248 = vmatpush2.msra.mxu0 0.0
  %4249 = vmatprep.subr.mxu0 0.0
  %4250 = vmatpush2.msra.mxu0 0.0
  %4251 = vmatprep.subr.mxu0 0.0
  %4252 = vmatpush2.msra.mxu0 0.0
  %4253 = vmatprep.subr.mxu0 0.0
  %4254 = vmatpush2.msra.mxu0 0.0
  %4255 = vmatprep.subr.mxu0 0.0
  %4256 = vmatpush2.msra.mxu0 0.0
  %4257 = vmatprep.subr.mxu0 0.0
  %4258 = vmatpush2.msra.mxu0 0.0
  %4259 = vmatprep.subr.mxu0 0.0
  %4260 = vmatpush2.msra.mxu0 0.0
  %4261 = vmatprep.subr.mxu0 0.0
  %4262 = vmatpush2.msra.mxu0 0.0
  %4263 = vmatprep.subr.mxu0 0.0
  %4264 = vmatpush2.msra.mxu0 0.0
  %4265 = vmatprep.subr.mxu0 0.0
  %4266 = vmatpush2.msra.mxu0 0.0
  %4267 = vmatprep.mubr.f32.mxu0 0.0
  %v4268 = vand.u32 %v3947, 4294901760
  %v4269 = vsub.f32 %v3947, %v4268
  %v4270 = vand.u32 %v4269, 4294901760
  %4271 = vmatmul.mubr.f32.gmra.mxu0 %v4270
  %v4272 = vpop.f32.mrf.mxu0
  %v4273 = vadd.f32 %v4196, %v4272
  %v4274 = vpop.f32.mrf.mxu0
  %4275 = vdwg.mxu0
  %4276 = vmatprep.subr.mxu0 0.0
  %4277 = vmatpush1.msra.mxu0 0.0
  %4278 = vmatprep.subr.mxu0 0.0
  %4279 = vmatpush1.msra.mxu0 0.0
  %4280 = vmatprep.subr.mxu0 0.0
  %4281 = vmatpush1.msra.mxu0 0.0
  %4282 = vmatprep.subr.mxu0 0.0
  %4283 = vmatpush1.msra.mxu0 0.0
  %4284 = vmatprep.subr.mxu0 0.0
  %4285 = vmatpush1.msra.mxu0 0.0
  %4286 = vmatprep.subr.mxu0 0.0
  %4287 = vmatpush1.msra.mxu0 0.0
  %4288 = vmatprep.subr.mxu0 0.0
  %4289 = vmatpush1.msra.mxu0 0.0
  %4290 = vmatprep.subr.mxu0 0.0
  %4291 = vmatpush1.msra.mxu0 0.0
  %4292 = vmatprep.subr.mxu0 0.0
  %4293 = vmatpush1.msra.mxu0 0.0
  %4294 = vmatprep.subr.mxu0 0.0
  %4295 = vmatpush1.msra.mxu0 0.0
  %4296 = vmatprep.subr.mxu0 0.0
  %4297 = vmatpush1.msra.mxu0 0.0
  %4298 = vmatprep.subr.mxu0 0.0
  %4299 = vmatpush1.msra.mxu0 0.0
  %4300 = vmatprep.subr.mxu0 0.0
  %v4301 = vand.u32 %v582, 4294901760
  %v4302 = vsub.f32 %v582, %v4301
  %v4303 = vand.u32 %v4302, 4294901760
  %4304 = vmatpush1.msra.mxu0 %v4303
  %4305 = vmatprep.subr.mxu0 0.0
  %v4306 = vand.u32 %v581, 4294901760
  %v4307 = vsub.f32 %v581, %v4306
  %v4308 = vand.u32 %v4307, 4294901760
  %4309 = vmatpush1.msra.mxu0 %v4308
  %4310 = vmatprep.subr.mxu0 0.0
  %v4311 = vand.u32 %v580, 4294901760
  %v4312 = vsub.f32 %v580, %v4311
  %v4313 = vand.u32 %v4312, 4294901760
  %4314 = vmatpush1.msra.mxu0 %v4313
  %4315 = vmatprep.subr.mxu0 0.0
  %v4316 = vand.u32 %v579, 4294901760
  %v4317 = vsub.f32 %v579, %v4316
  %v4318 = vand.u32 %v4317, 4294901760
  %4319 = vmatpush1.msra.mxu0 %v4318
  %4320 = vmatprep.subr.mxu0 0.0
  %4321 = vmatpush2.msra.mxu0 0.0
  %4322 = vmatprep.subr.mxu0 0.0
  %4323 = vmatpush2.msra.mxu0 0.0
  %4324 = vmatprep.subr.mxu0 0.0
  %4325 = vmatpush2.msra.mxu0 0.0
  %4326 = vmatprep.subr.mxu0 0.0
  %4327 = vmatpush2.msra.mxu0 0.0
  %4328 = vmatprep.subr.mxu0 0.0
  %4329 = vmatpush2.msra.mxu0 0.0
  %4330 = vmatprep.subr.mxu0 0.0
  %4331 = vmatpush2.msra.mxu0 0.0
  %4332 = vmatprep.subr.mxu0 0.0
  %4333 = vmatpush2.msra.mxu0 0.0
  %4334 = vmatprep.subr.mxu0 0.0
  %4335 = vmatpush2.msra.mxu0 0.0
  %4336 = vmatprep.subr.mxu0 0.0
  %4337 = vmatpush2.msra.mxu0 0.0
  %4338 = vmatprep.subr.mxu0 0.0
  %4339 = vmatpush2.msra.mxu0 0.0
  %4340 = vmatprep.subr.mxu0 0.0
  %4341 = vmatpush2.msra.mxu0 0.0
  %4342 = vmatprep.subr.mxu0 0.0
  %4343 = vmatpush2.msra.mxu0 0.0
  %4344 = vmatprep.subr.mxu0 0.0
  %4345 = vmatpush2.msra.mxu0 0.0
  %4346 = vmatprep.subr.mxu0 0.0
  %4347 = vmatpush2.msra.mxu0 0.0
  %4348 = vmatprep.subr.mxu0 0.0
  %4349 = vmatpush2.msra.mxu0 0.0
  %4350 = vmatprep.subr.mxu0 0.0
  %4351 = vmatpush2.msra.mxu0 0.0
  %4352 = vmatprep.mubr.f32.mxu0 0.0
  %v4353 = vand.u32 %v3947, 4294901760
  %4354 = vmatmul.mubr.f32.gmra.mxu0 %v4353
  %v4355 = vpop.f32.mrf.mxu0
  %v4356 = vadd.f32 %v4273, %v4355
  %v4357 = vpop.f32.mrf.mxu0
  %4358 = vdwg.mxu0
  %4359 = vmatprep.subr.mxu0 0.0
  %4360 = vmatpush1.msra.mxu0 0.0
  %4361 = vmatprep.subr.mxu0 0.0
  %4362 = vmatpush1.msra.mxu0 0.0
  %4363 = vmatprep.subr.mxu0 0.0
  %4364 = vmatpush1.msra.mxu0 0.0
  %4365 = vmatprep.subr.mxu0 0.0
  %4366 = vmatpush1.msra.mxu0 0.0
  %4367 = vmatprep.subr.mxu0 0.0
  %4368 = vmatpush1.msra.mxu0 0.0
  %4369 = vmatprep.subr.mxu0 0.0
  %4370 = vmatpush1.msra.mxu0 0.0
  %4371 = vmatprep.subr.mxu0 0.0
  %4372 = vmatpush1.msra.mxu0 0.0
  %4373 = vmatprep.subr.mxu0 0.0
  %4374 = vmatpush1.msra.mxu0 0.0
  %4375 = vmatprep.subr.mxu0 0.0
  %4376 = vmatpush1.msra.mxu0 0.0
  %4377 = vmatprep.subr.mxu0 0.0
  %4378 = vmatpush1.msra.mxu0 0.0
  %4379 = vmatprep.subr.mxu0 0.0
  %4380 = vmatpush1.msra.mxu0 0.0
  %4381 = vmatprep.subr.mxu0 0.0
  %4382 = vmatpush1.msra.mxu0 0.0
  %4383 = vmatprep.subr.mxu0 0.0
  %v4384 = vand.u32 %v582, 4294901760
  %4385 = vmatpush1.msra.mxu0 %v4384
  %4386 = vmatprep.subr.mxu0 0.0
  %v4387 = vand.u32 %v581, 4294901760
  %4388 = vmatpush1.msra.mxu0 %v4387
  %4389 = vmatprep.subr.mxu0 0.0
  %v4390 = vand.u32 %v580, 4294901760
  %4391 = vmatpush1.msra.mxu0 %v4390
  %4392 = vmatprep.subr.mxu0 0.0
  %v4393 = vand.u32 %v579, 4294901760
  %4394 = vmatpush1.msra.mxu0 %v4393
  %4395 = vmatprep.subr.mxu0 0.0
  %4396 = vmatpush2.msra.mxu0 0.0
  %4397 = vmatprep.subr.mxu0 0.0
  %4398 = vmatpush2.msra.mxu0 0.0
  %4399 = vmatprep.subr.mxu0 0.0
  %4400 = vmatpush2.msra.mxu0 0.0
  %4401 = vmatprep.subr.mxu0 0.0
  %4402 = vmatpush2.msra.mxu0 0.0
  %4403 = vmatprep.subr.mxu0 0.0
  %4404 = vmatpush2.msra.mxu0 0.0
  %4405 = vmatprep.subr.mxu0 0.0
  %4406 = vmatpush2.msra.mxu0 0.0
  %4407 = vmatprep.subr.mxu0 0.0
  %4408 = vmatpush2.msra.mxu0 0.0
  %4409 = vmatprep.subr.mxu0 0.0
  %4410 = vmatpush2.msra.mxu0 0.0
  %4411 = vmatprep.subr.mxu0 0.0
  %4412 = vmatpush2.msra.mxu0 0.0
  %4413 = vmatprep.subr.mxu0 0.0
  %4414 = vmatpush2.msra.mxu0 0.0
  %4415 = vmatprep.subr.mxu0 0.0
  %4416 = vmatpush2.msra.mxu0 0.0
  %4417 = vmatprep.subr.mxu0 0.0
  %4418 = vmatpush2.msra.mxu0 0.0
  %4419 = vmatprep.subr.mxu0 0.0
  %4420 = vmatpush2.msra.mxu0 0.0
  %4421 = vmatprep.subr.mxu0 0.0
  %4422 = vmatpush2.msra.mxu0 0.0
  %4423 = vmatprep.subr.mxu0 0.0
  %4424 = vmatpush2.msra.mxu0 0.0
  %4425 = vmatprep.subr.mxu0 0.0
  %4426 = vmatpush2.msra.mxu0 0.0
  %4427 = vmatprep.mubr.f32.mxu0 0.0
  %v4428 = vand.u32 %v3947, 4294901760
  %4429 = vmatmul.mubr.f32.gmra.mxu0 %v4428
  %v4430 = vpop.f32.mrf.mxu0
  %v4431 = vadd.f32 %v4356, %v4430
  %v4432 = vpop.f32.mrf.mxu0
  %4433 = vdwg.mxu0
  %v4435 = vsel %vm367, %v4431, 0
  %4437 = vmatprep.subr.mxu0 0.0
  %4438 = vmatpush1.msra.mxu0 0.0
  %4439 = vmatprep.subr.mxu0 0.0
  %4440 = vmatpush1.msra.mxu0 0.0
  %4441 = vmatprep.subr.mxu0 0.0
  %4442 = vmatpush1.msra.mxu0 0.0
  %4443 = vmatprep.subr.mxu0 0.0
  %4444 = vmatpush1.msra.mxu0 0.0
  %4445 = vmatprep.subr.mxu0 0.0
  %4446 = vmatpush1.msra.mxu0 0.0
  %4447 = vmatprep.subr.mxu0 0.0
  %4448 = vmatpush1.msra.mxu0 0.0
  %4449 = vmatprep.subr.mxu0 0.0
  %4450 = vmatpush1.msra.mxu0 0.0
  %4451 = vmatprep.subr.mxu0 0.0
  %4452 = vmatpush1.msra.mxu0 0.0
  %4453 = vmatprep.subr.mxu0 0.0
  %4454 = vmatpush1.msra.mxu0 0.0
  %4455 = vmatprep.subr.mxu0 0.0
  %4456 = vmatpush1.msra.mxu0 0.0
  %4457 = vmatprep.subr.mxu0 0.0
  %4458 = vmatpush1.msra.mxu0 0.0
  %4459 = vmatprep.subr.mxu0 0.0
  %4460 = vmatpush1.msra.mxu0 0.0
  %4461 = vmatprep.subr.mxu0 0.0
  %v4462 = vand.u32 %v415, 4294901760
  %4463 = vmatpush1.msra.mxu0 %v4462
  %4464 = vmatprep.subr.mxu0 0.0
  %v4465 = vand.u32 %v414, 4294901760
  %4466 = vmatpush1.msra.mxu0 %v4465
  %4467 = vmatprep.subr.mxu0 0.0
  %v4468 = vand.u32 %v413, 4294901760
  %4469 = vmatpush1.msra.mxu0 %v4468
  %4470 = vmatprep.subr.mxu0 0.0
  %v4471 = vand.u32 %v412, 4294901760
  %4472 = vmatpush1.msra.mxu0 %v4471
  %4473 = vmatprep.subr.mxu0 0.0
  %4474 = vmatpush2.msra.mxu0 0.0
  %4475 = vmatprep.subr.mxu0 0.0
  %4476 = vmatpush2.msra.mxu0 0.0
  %4477 = vmatprep.subr.mxu0 0.0
  %4478 = vmatpush2.msra.mxu0 0.0
  %4479 = vmatprep.subr.mxu0 0.0
  %4480 = vmatpush2.msra.mxu0 0.0
  %4481 = vmatprep.subr.mxu0 0.0
  %4482 = vmatpush2.msra.mxu0 0.0
  %4483 = vmatprep.subr.mxu0 0.0
  %4484 = vmatpush2.msra.mxu0 0.0
  %4485 = vmatprep.subr.mxu0 0.0
  %4486 = vmatpush2.msra.mxu0 0.0
  %4487 = vmatprep.subr.mxu0 0.0
  %4488 = vmatpush2.msra.mxu0 0.0
  %4489 = vmatprep.subr.mxu0 0.0
  %4490 = vmatpush2.msra.mxu0 0.0
  %4491 = vmatprep.subr.mxu0 0.0
  %4492 = vmatpush2.msra.mxu0 0.0
  %4493 = vmatprep.subr.mxu0 0.0
  %4494 = vmatpush2.msra.mxu0 0.0
  %4495 = vmatprep.subr.mxu0 0.0
  %4496 = vmatpush2.msra.mxu0 0.0
  %4497 = vmatprep.subr.mxu0 0.0
  %4498 = vmatpush2.msra.mxu0 0.0
  %4499 = vmatprep.subr.mxu0 0.0
  %4500 = vmatpush2.msra.mxu0 0.0
  %4501 = vmatprep.subr.mxu0 0.0
  %4502 = vmatpush2.msra.mxu0 0.0
  %4503 = vmatprep.subr.mxu0 0.0
  %4504 = vmatpush2.msra.mxu0 0.0
  %4505 = vmatprep.mubr.f32.mxu0 0.0
  %v4506 = vand.u32 %v4435, 4294901760
  %v4507 = vsub.f32 %v4435, %v4506
  %v4508 = vand.u32 %v4507, 4294901760
  %v4509 = vsub.f32 %v4507, %v4508
  %v4510 = vand.u32 %v4509, 4294901760
  %4511 = vmatmul.mubr.f32.gmra.mxu0 %v4510
  %v4512 = vpop.f32.mrf.mxu0
  %v4513 = vadd.f32 %v918, %v4512
  %v4514 = vpop.f32.mrf.mxu0
  %4515 = vdwg.mxu0
  %4516 = vmatprep.subr.mxu0 0.0
  %4517 = vmatpush1.msra.mxu0 0.0
  %4518 = vmatprep.subr.mxu0 0.0
  %4519 = vmatpush1.msra.mxu0 0.0
  %4520 = vmatprep.subr.mxu0 0.0
  %4521 = vmatpush1.msra.mxu0 0.0
  %4522 = vmatprep.subr.mxu0 0.0
  %4523 = vmatpush1.msra.mxu0 0.0
  %4524 = vmatprep.subr.mxu0 0.0
  %4525 = vmatpush1.msra.mxu0 0.0
  %4526 = vmatprep.subr.mxu0 0.0
  %4527 = vmatpush1.msra.mxu0 0.0
  %4528 = vmatprep.subr.mxu0 0.0
  %4529 = vmatpush1.msra.mxu0 0.0
  %4530 = vmatprep.subr.mxu0 0.0
  %4531 = vmatpush1.msra.mxu0 0.0
  %4532 = vmatprep.subr.mxu0 0.0
  %4533 = vmatpush1.msra.mxu0 0.0
  %4534 = vmatprep.subr.mxu0 0.0
  %4535 = vmatpush1.msra.mxu0 0.0
  %4536 = vmatprep.subr.mxu0 0.0
  %4537 = vmatpush1.msra.mxu0 0.0
  %4538 = vmatprep.subr.mxu0 0.0
  %4539 = vmatpush1.msra.mxu0 0.0
  %4540 = vmatprep.subr.mxu0 0.0
  %v4541 = vand.u32 %v415, 4294901760
  %v4542 = vsub.f32 %v415, %v4541
  %v4543 = vand.u32 %v4542, 4294901760
  %v4544 = vsub.f32 %v4542, %v4543
  %v4545 = vand.u32 %v4544, 4294901760
  %4546 = vmatpush1.msra.mxu0 %v4545
  %4547 = vmatprep.subr.mxu0 0.0
  %v4548 = vand.u32 %v414, 4294901760
  %v4549 = vsub.f32 %v414, %v4548
  %v4550 = vand.u32 %v4549, 4294901760
  %v4551 = vsub.f32 %v4549, %v4550
  %v4552 = vand.u32 %v4551, 4294901760
  %4553 = vmatpush1.msra.mxu0 %v4552
  %4554 = vmatprep.subr.mxu0 0.0
  %v4555 = vand.u32 %v413, 4294901760
  %v4556 = vsub.f32 %v413, %v4555
  %v4557 = vand.u32 %v4556, 4294901760
  %v4558 = vsub.f32 %v4556, %v4557
  %v4559 = vand.u32 %v4558, 4294901760
  %4560 = vmatpush1.msra.mxu0 %v4559
  %4561 = vmatprep.subr.mxu0 0.0
  %v4562 = vand.u32 %v412, 4294901760
  %v4563 = vsub.f32 %v412, %v4562
  %v4564 = vand.u32 %v4563, 4294901760
  %v4565 = vsub.f32 %v4563, %v4564
  %v4566 = vand.u32 %v4565, 4294901760
  %4567 = vmatpush1.msra.mxu0 %v4566
  %4568 = vmatprep.subr.mxu0 0.0
  %4569 = vmatpush2.msra.mxu0 0.0
  %4570 = vmatprep.subr.mxu0 0.0
  %4571 = vmatpush2.msra.mxu0 0.0
  %4572 = vmatprep.subr.mxu0 0.0
  %4573 = vmatpush2.msra.mxu0 0.0
  %4574 = vmatprep.subr.mxu0 0.0
  %4575 = vmatpush2.msra.mxu0 0.0
  %4576 = vmatprep.subr.mxu0 0.0
  %4577 = vmatpush2.msra.mxu0 0.0
  %4578 = vmatprep.subr.mxu0 0.0
  %4579 = vmatpush2.msra.mxu0 0.0
  %4580 = vmatprep.subr.mxu0 0.0
  %4581 = vmatpush2.msra.mxu0 0.0
  %4582 = vmatprep.subr.mxu0 0.0
  %4583 = vmatpush2.msra.mxu0 0.0
  %4584 = vmatprep.subr.mxu0 0.0
  %4585 = vmatpush2.msra.mxu0 0.0
  %4586 = vmatprep.subr.mxu0 0.0
  %4587 = vmatpush2.msra.mxu0 0.0
  %4588 = vmatprep.subr.mxu0 0.0
  %4589 = vmatpush2.msra.mxu0 0.0
  %4590 = vmatprep.subr.mxu0 0.0
  %4591 = vmatpush2.msra.mxu0 0.0
  %4592 = vmatprep.subr.mxu0 0.0
  %4593 = vmatpush2.msra.mxu0 0.0
  %4594 = vmatprep.subr.mxu0 0.0
  %4595 = vmatpush2.msra.mxu0 0.0
  %4596 = vmatprep.subr.mxu0 0.0
  %4597 = vmatpush2.msra.mxu0 0.0
  %4598 = vmatprep.subr.mxu0 0.0
  %4599 = vmatpush2.msra.mxu0 0.0
  %4600 = vmatprep.mubr.f32.mxu0 0.0
  %v4601 = vand.u32 %v4435, 4294901760
  %4602 = vmatmul.mubr.f32.gmra.mxu0 %v4601
  %v4603 = vpop.f32.mrf.mxu0
  %v4604 = vadd.f32 %v4513, %v4603
  %v4605 = vpop.f32.mrf.mxu0
  %4606 = vdwg.mxu0
  %4607 = vmatprep.subr.mxu0 0.0
  %4608 = vmatpush1.msra.mxu0 0.0
  %4609 = vmatprep.subr.mxu0 0.0
  %4610 = vmatpush1.msra.mxu0 0.0
  %4611 = vmatprep.subr.mxu0 0.0
  %4612 = vmatpush1.msra.mxu0 0.0
  %4613 = vmatprep.subr.mxu0 0.0
  %4614 = vmatpush1.msra.mxu0 0.0
  %4615 = vmatprep.subr.mxu0 0.0
  %4616 = vmatpush1.msra.mxu0 0.0
  %4617 = vmatprep.subr.mxu0 0.0
  %4618 = vmatpush1.msra.mxu0 0.0
  %4619 = vmatprep.subr.mxu0 0.0
  %4620 = vmatpush1.msra.mxu0 0.0
  %4621 = vmatprep.subr.mxu0 0.0
  %4622 = vmatpush1.msra.mxu0 0.0
  %4623 = vmatprep.subr.mxu0 0.0
  %4624 = vmatpush1.msra.mxu0 0.0
  %4625 = vmatprep.subr.mxu0 0.0
  %4626 = vmatpush1.msra.mxu0 0.0
  %4627 = vmatprep.subr.mxu0 0.0
  %4628 = vmatpush1.msra.mxu0 0.0
  %4629 = vmatprep.subr.mxu0 0.0
  %4630 = vmatpush1.msra.mxu0 0.0
  %4631 = vmatprep.subr.mxu0 0.0
  %v4632 = vand.u32 %v415, 4294901760
  %v4633 = vsub.f32 %v415, %v4632
  %4634 = vmatpush1.msra.mxu0 %v4633
  %4635 = vmatprep.subr.mxu0 0.0
  %v4636 = vand.u32 %v414, 4294901760
  %v4637 = vsub.f32 %v414, %v4636
  %4638 = vmatpush1.msra.mxu0 %v4637
  %4639 = vmatprep.subr.mxu0 0.0
  %v4640 = vand.u32 %v413, 4294901760
  %v4641 = vsub.f32 %v413, %v4640
  %4642 = vmatpush1.msra.mxu0 %v4641
  %4643 = vmatprep.subr.mxu0 0.0
  %v4644 = vand.u32 %v412, 4294901760
  %v4645 = vsub.f32 %v412, %v4644
  %4646 = vmatpush1.msra.mxu0 %v4645
  %4647 = vmatprep.subr.mxu0 0.0
  %4648 = vmatpush2.msra.mxu0 0.0
  %4649 = vmatprep.subr.mxu0 0.0
  %4650 = vmatpush2.msra.mxu0 0.0
  %4651 = vmatprep.subr.mxu0 0.0
  %4652 = vmatpush2.msra.mxu0 0.0
  %4653 = vmatprep.subr.mxu0 0.0
  %4654 = vmatpush2.msra.mxu0 0.0
  %4655 = vmatprep.subr.mxu0 0.0
  %4656 = vmatpush2.msra.mxu0 0.0
  %4657 = vmatprep.subr.mxu0 0.0
  %4658 = vmatpush2.msra.mxu0 0.0
  %4659 = vmatprep.subr.mxu0 0.0
  %4660 = vmatpush2.msra.mxu0 0.0
  %4661 = vmatprep.subr.mxu0 0.0
  %4662 = vmatpush2.msra.mxu0 0.0
  %4663 = vmatprep.subr.mxu0 0.0
  %4664 = vmatpush2.msra.mxu0 0.0
  %4665 = vmatprep.subr.mxu0 0.0
  %4666 = vmatpush2.msra.mxu0 0.0
  %4667 = vmatprep.subr.mxu0 0.0
  %4668 = vmatpush2.msra.mxu0 0.0
  %4669 = vmatprep.subr.mxu0 0.0
  %4670 = vmatpush2.msra.mxu0 0.0
  %4671 = vmatprep.subr.mxu0 0.0
  %4672 = vmatpush2.msra.mxu0 0.0
  %4673 = vmatprep.subr.mxu0 0.0
  %4674 = vmatpush2.msra.mxu0 0.0
  %4675 = vmatprep.subr.mxu0 0.0
  %4676 = vmatpush2.msra.mxu0 0.0
  %4677 = vmatprep.subr.mxu0 0.0
  %4678 = vmatpush2.msra.mxu0 0.0
  %4679 = vmatprep.mubr.f32.mxu0 0.0
  %v4680 = vand.u32 %v4435, 4294901760
  %v4681 = vsub.f32 %v4435, %v4680
  %4682 = vmatmul.mubr.f32.gmra.mxu0 %v4681
  %v4683 = vpop.f32.mrf.mxu0
  %v4684 = vadd.f32 %v4604, %v4683
  %v4685 = vpop.f32.mrf.mxu0
  %4686 = vdwg.mxu0
  %4687 = vmatprep.subr.mxu0 0.0
  %4688 = vmatpush1.msra.mxu0 0.0
  %4689 = vmatprep.subr.mxu0 0.0
  %4690 = vmatpush1.msra.mxu0 0.0
  %4691 = vmatprep.subr.mxu0 0.0
  %4692 = vmatpush1.msra.mxu0 0.0
  %4693 = vmatprep.subr.mxu0 0.0
  %4694 = vmatpush1.msra.mxu0 0.0
  %4695 = vmatprep.subr.mxu0 0.0
  %4696 = vmatpush1.msra.mxu0 0.0
  %4697 = vmatprep.subr.mxu0 0.0
  %4698 = vmatpush1.msra.mxu0 0.0
  %4699 = vmatprep.subr.mxu0 0.0
  %4700 = vmatpush1.msra.mxu0 0.0
  %4701 = vmatprep.subr.mxu0 0.0
  %4702 = vmatpush1.msra.mxu0 0.0
  %4703 = vmatprep.subr.mxu0 0.0
  %4704 = vmatpush1.msra.mxu0 0.0
  %4705 = vmatprep.subr.mxu0 0.0
  %4706 = vmatpush1.msra.mxu0 0.0
  %4707 = vmatprep.subr.mxu0 0.0
  %4708 = vmatpush1.msra.mxu0 0.0
  %4709 = vmatprep.subr.mxu0 0.0
  %4710 = vmatpush1.msra.mxu0 0.0
  %4711 = vmatprep.subr.mxu0 0.0
  %v4712 = vand.u32 %v415, 4294901760
  %4713 = vmatpush1.msra.mxu0 %v4712
  %4714 = vmatprep.subr.mxu0 0.0
  %v4715 = vand.u32 %v414, 4294901760
  %4716 = vmatpush1.msra.mxu0 %v4715
  %4717 = vmatprep.subr.mxu0 0.0
  %v4718 = vand.u32 %v413, 4294901760
  %4719 = vmatpush1.msra.mxu0 %v4718
  %4720 = vmatprep.subr.mxu0 0.0
  %v4721 = vand.u32 %v412, 4294901760
  %4722 = vmatpush1.msra.mxu0 %v4721
  %4723 = vmatprep.subr.mxu0 0.0
  %4724 = vmatpush2.msra.mxu0 0.0
  %4725 = vmatprep.subr.mxu0 0.0
  %4726 = vmatpush2.msra.mxu0 0.0
  %4727 = vmatprep.subr.mxu0 0.0
  %4728 = vmatpush2.msra.mxu0 0.0
  %4729 = vmatprep.subr.mxu0 0.0
  %4730 = vmatpush2.msra.mxu0 0.0
  %4731 = vmatprep.subr.mxu0 0.0
  %4732 = vmatpush2.msra.mxu0 0.0
  %4733 = vmatprep.subr.mxu0 0.0
  %4734 = vmatpush2.msra.mxu0 0.0
  %4735 = vmatprep.subr.mxu0 0.0
  %4736 = vmatpush2.msra.mxu0 0.0
  %4737 = vmatprep.subr.mxu0 0.0
  %4738 = vmatpush2.msra.mxu0 0.0
  %4739 = vmatprep.subr.mxu0 0.0
  %4740 = vmatpush2.msra.mxu0 0.0
  %4741 = vmatprep.subr.mxu0 0.0
  %4742 = vmatpush2.msra.mxu0 0.0
  %4743 = vmatprep.subr.mxu0 0.0
  %4744 = vmatpush2.msra.mxu0 0.0
  %4745 = vmatprep.subr.mxu0 0.0
  %4746 = vmatpush2.msra.mxu0 0.0
  %4747 = vmatprep.subr.mxu0 0.0
  %4748 = vmatpush2.msra.mxu0 0.0
  %4749 = vmatprep.subr.mxu0 0.0
  %4750 = vmatpush2.msra.mxu0 0.0
  %4751 = vmatprep.subr.mxu0 0.0
  %4752 = vmatpush2.msra.mxu0 0.0
  %4753 = vmatprep.subr.mxu0 0.0
  %4754 = vmatpush2.msra.mxu0 0.0
  %4755 = vmatprep.mubr.f32.mxu0 0.0
  %v4756 = vand.u32 %v4435, 4294901760
  %v4757 = vsub.f32 %v4435, %v4756
  %v4758 = vand.u32 %v4757, 4294901760
  %4759 = vmatmul.mubr.f32.gmra.mxu0 %v4758
  %v4760 = vpop.f32.mrf.mxu0
  %v4761 = vadd.f32 %v4684, %v4760
  %v4762 = vpop.f32.mrf.mxu0
  %4763 = vdwg.mxu0
  %4764 = vmatprep.subr.mxu0 0.0
  %4765 = vmatpush1.msra.mxu0 0.0
  %4766 = vmatprep.subr.mxu0 0.0
  %4767 = vmatpush1.msra.mxu0 0.0
  %4768 = vmatprep.subr.mxu0 0.0
  %4769 = vmatpush1.msra.mxu0 0.0
  %4770 = vmatprep.subr.mxu0 0.0
  %4771 = vmatpush1.msra.mxu0 0.0
  %4772 = vmatprep.subr.mxu0 0.0
  %4773 = vmatpush1.msra.mxu0 0.0
  %4774 = vmatprep.subr.mxu0 0.0
  %4775 = vmatpush1.msra.mxu0 0.0
  %4776 = vmatprep.subr.mxu0 0.0
  %4777 = vmatpush1.msra.mxu0 0.0
  %4778 = vmatprep.subr.mxu0 0.0
  %4779 = vmatpush1.msra.mxu0 0.0
  %4780 = vmatprep.subr.mxu0 0.0
  %4781 = vmatpush1.msra.mxu0 0.0
  %4782 = vmatprep.subr.mxu0 0.0
  %4783 = vmatpush1.msra.mxu0 0.0
  %4784 = vmatprep.subr.mxu0 0.0
  %4785 = vmatpush1.msra.mxu0 0.0
  %4786 = vmatprep.subr.mxu0 0.0
  %4787 = vmatpush1.msra.mxu0 0.0
  %4788 = vmatprep.subr.mxu0 0.0
  %v4789 = vand.u32 %v415, 4294901760
  %v4790 = vsub.f32 %v415, %v4789
  %v4791 = vand.u32 %v4790, 4294901760
  %4792 = vmatpush1.msra.mxu0 %v4791
  %4793 = vmatprep.subr.mxu0 0.0
  %v4794 = vand.u32 %v414, 4294901760
  %v4795 = vsub.f32 %v414, %v4794
  %v4796 = vand.u32 %v4795, 4294901760
  %4797 = vmatpush1.msra.mxu0 %v4796
  %4798 = vmatprep.subr.mxu0 0.0
  %v4799 = vand.u32 %v413, 4294901760
  %v4800 = vsub.f32 %v413, %v4799
  %v4801 = vand.u32 %v4800, 4294901760
  %4802 = vmatpush1.msra.mxu0 %v4801
  %4803 = vmatprep.subr.mxu0 0.0
  %v4804 = vand.u32 %v412, 4294901760
  %v4805 = vsub.f32 %v412, %v4804
  %v4806 = vand.u32 %v4805, 4294901760
  %4807 = vmatpush1.msra.mxu0 %v4806
  %4808 = vmatprep.subr.mxu0 0.0
  %4809 = vmatpush2.msra.mxu0 0.0
  %4810 = vmatprep.subr.mxu0 0.0
  %4811 = vmatpush2.msra.mxu0 0.0
  %4812 = vmatprep.subr.mxu0 0.0
  %4813 = vmatpush2.msra.mxu0 0.0
  %4814 = vmatprep.subr.mxu0 0.0
  %4815 = vmatpush2.msra.mxu0 0.0
  %4816 = vmatprep.subr.mxu0 0.0
  %4817 = vmatpush2.msra.mxu0 0.0
  %4818 = vmatprep.subr.mxu0 0.0
  %4819 = vmatpush2.msra.mxu0 0.0
  %4820 = vmatprep.subr.mxu0 0.0
  %4821 = vmatpush2.msra.mxu0 0.0
  %4822 = vmatprep.subr.mxu0 0.0
  %4823 = vmatpush2.msra.mxu0 0.0
  %4824 = vmatprep.subr.mxu0 0.0
  %4825 = vmatpush2.msra.mxu0 0.0
  %4826 = vmatprep.subr.mxu0 0.0
  %4827 = vmatpush2.msra.mxu0 0.0
  %4828 = vmatprep.subr.mxu0 0.0
  %4829 = vmatpush2.msra.mxu0 0.0
  %4830 = vmatprep.subr.mxu0 0.0
  %4831 = vmatpush2.msra.mxu0 0.0
  %4832 = vmatprep.subr.mxu0 0.0
  %4833 = vmatpush2.msra.mxu0 0.0
  %4834 = vmatprep.subr.mxu0 0.0
  %4835 = vmatpush2.msra.mxu0 0.0
  %4836 = vmatprep.subr.mxu0 0.0
  %4837 = vmatpush2.msra.mxu0 0.0
  %4838 = vmatprep.subr.mxu0 0.0
  %4839 = vmatpush2.msra.mxu0 0.0
  %4840 = vmatprep.mubr.f32.mxu0 0.0
  %v4841 = vand.u32 %v4435, 4294901760
  %4842 = vmatmul.mubr.f32.gmra.mxu0 %v4841
  %v4843 = vpop.f32.mrf.mxu0
  %v4844 = vadd.f32 %v4761, %v4843
  %v4845 = vpop.f32.mrf.mxu0
  %4846 = vdwg.mxu0
  %4847 = vmatprep.subr.mxu0 0.0
  %4848 = vmatpush1.msra.mxu0 0.0
  %4849 = vmatprep.subr.mxu0 0.0
  %4850 = vmatpush1.msra.mxu0 0.0
  %4851 = vmatprep.subr.mxu0 0.0
  %4852 = vmatpush1.msra.mxu0 0.0
  %4853 = vmatprep.subr.mxu0 0.0
  %4854 = vmatpush1.msra.mxu0 0.0
  %4855 = vmatprep.subr.mxu0 0.0
  %4856 = vmatpush1.msra.mxu0 0.0
  %4857 = vmatprep.subr.mxu0 0.0
  %4858 = vmatpush1.msra.mxu0 0.0
  %4859 = vmatprep.subr.mxu0 0.0
  %4860 = vmatpush1.msra.mxu0 0.0
  %4861 = vmatprep.subr.mxu0 0.0
  %4862 = vmatpush1.msra.mxu0 0.0
  %4863 = vmatprep.subr.mxu0 0.0
  %4864 = vmatpush1.msra.mxu0 0.0
  %4865 = vmatprep.subr.mxu0 0.0
  %4866 = vmatpush1.msra.mxu0 0.0
  %4867 = vmatprep.subr.mxu0 0.0
  %4868 = vmatpush1.msra.mxu0 0.0
  %4869 = vmatprep.subr.mxu0 0.0
  %4870 = vmatpush1.msra.mxu0 0.0
  %4871 = vmatprep.subr.mxu0 0.0
  %v4872 = vand.u32 %v415, 4294901760
  %4873 = vmatpush1.msra.mxu0 %v4872
  %4874 = vmatprep.subr.mxu0 0.0
  %v4875 = vand.u32 %v414, 4294901760
  %4876 = vmatpush1.msra.mxu0 %v4875
  %4877 = vmatprep.subr.mxu0 0.0
  %v4878 = vand.u32 %v413, 4294901760
  %4879 = vmatpush1.msra.mxu0 %v4878
  %4880 = vmatprep.subr.mxu0 0.0
  %v4881 = vand.u32 %v412, 4294901760
  %4882 = vmatpush1.msra.mxu0 %v4881
  %4883 = vmatprep.subr.mxu0 0.0
  %4884 = vmatpush2.msra.mxu0 0.0
  %4885 = vmatprep.subr.mxu0 0.0
  %4886 = vmatpush2.msra.mxu0 0.0
  %4887 = vmatprep.subr.mxu0 0.0
  %4888 = vmatpush2.msra.mxu0 0.0
  %4889 = vmatprep.subr.mxu0 0.0
  %4890 = vmatpush2.msra.mxu0 0.0
  %4891 = vmatprep.subr.mxu0 0.0
  %4892 = vmatpush2.msra.mxu0 0.0
  %4893 = vmatprep.subr.mxu0 0.0
  %4894 = vmatpush2.msra.mxu0 0.0
  %4895 = vmatprep.subr.mxu0 0.0
  %4896 = vmatpush2.msra.mxu0 0.0
  %4897 = vmatprep.subr.mxu0 0.0
  %4898 = vmatpush2.msra.mxu0 0.0
  %4899 = vmatprep.subr.mxu0 0.0
  %4900 = vmatpush2.msra.mxu0 0.0
  %4901 = vmatprep.subr.mxu0 0.0
  %4902 = vmatpush2.msra.mxu0 0.0
  %4903 = vmatprep.subr.mxu0 0.0
  %4904 = vmatpush2.msra.mxu0 0.0
  %4905 = vmatprep.subr.mxu0 0.0
  %4906 = vmatpush2.msra.mxu0 0.0
  %4907 = vmatprep.subr.mxu0 0.0
  %4908 = vmatpush2.msra.mxu0 0.0
  %4909 = vmatprep.subr.mxu0 0.0
  %4910 = vmatpush2.msra.mxu0 0.0
  %4911 = vmatprep.subr.mxu0 0.0
  %4912 = vmatpush2.msra.mxu0 0.0
  %4913 = vmatprep.subr.mxu0 0.0
  %4914 = vmatpush2.msra.mxu0 0.0
  %4915 = vmatprep.mubr.f32.mxu0 0.0
  %v4916 = vand.u32 %v4435, 4294901760
  %4917 = vmatmul.mubr.f32.gmra.mxu0 %v4916
  %v4918 = vpop.f32.mrf.mxu0
  %v4919 = vadd.f32 %v4844, %v4918
  %v4920 = vpop.f32.mrf.mxu0
  %4921 = vdwg.mxu0
  %v4922 = vpack.c.bf16 %v4919, %v4919
  %s4923 = scalar_lea.vmem %s0, 32
  %v4924 = vld [vmem:[%s4923] sm:$0xff]
  %v4925 = vld [vmem:[%s4923 + $0x8] sm:$0xff]
  %v4926 = vld [vmem:[%s4923 + $0x10] sm:$0xff]
  %v4927 = vld [vmem:[%s4923 + $0x18] sm:$0xff]
  %v4932 = vunpack.c.l.b16 %v4924
  %v4933 = vunpack.c.h.b16 %v4924
  %v4934 = vunpack.c.l.b16 %v4925
  %v4935 = vunpack.c.h.b16 %v4925
  %v4936 = vunpack.c.l.b16 %v4926
  %v4937 = vunpack.c.h.b16 %v4926
  %v4938 = vunpack.c.l.b16 %v4927
  %v4939 = vunpack.c.h.b16 %v4927
  %v4940 = vpack.c.b16 %v4934, %v4932
  %v4941 = vpack.c.b16 %v4935, %v4933
  %v4942 = vpack.c.b16 %v4938, %v4936
  %v4943 = vpack.c.b16 %v4939, %v4937
  %v4949 = vsel %vm367, %v4922, 0
  %4951 = vmatprep.subr.bf16.mxu0 0
  %4952 = vmatpush1.bf16.msra.mxu0 0
  %4953 = vmatprep.subr.bf16.mxu0 0
  %4954 = vmatpush1.bf16.msra.mxu0 0
  %4955 = vmatprep.subr.bf16.mxu0 0
  %4956 = vmatpush1.bf16.msra.mxu0 0
  %4957 = vmatprep.subr.bf16.mxu0 0
  %4958 = vmatpush1.bf16.msra.mxu0 0
  %4959 = vmatprep.subr.bf16.mxu0 0
  %4960 = vmatpush1.bf16.msra.mxu0 0
  %4961 = vmatprep.subr.bf16.mxu0 0
  %4962 = vmatpush1.bf16.msra.mxu0 0
  %4963 = vmatprep.subr.bf16.mxu0 %v4943
  %4964 = vmatpush1.bf16.msra.mxu0 %v4942
  %4965 = vmatprep.subr.bf16.mxu0 %v4941
  %4966 = vmatpush1.bf16.msra.mxu0 %v4940
  %4967 = vmatprep.subr.bf16.mxu0 0
  %4968 = vmatpush2.bf16.msra.mxu0 0
  %4969 = vmatprep.subr.bf16.mxu0 0
  %4970 = vmatpush2.bf16.msra.mxu0 0
  %4971 = vmatprep.subr.bf16.mxu0 0
  %4972 = vmatpush2.bf16.msra.mxu0 0
  %4973 = vmatprep.subr.bf16.mxu0 0
  %4974 = vmatpush2.bf16.msra.mxu0 0
  %4975 = vmatprep.subr.bf16.mxu0 0
  %4976 = vmatpush2.bf16.msra.mxu0 0
  %4977 = vmatprep.subr.bf16.mxu0 0
  %4978 = vmatpush2.bf16.msra.mxu0 0
  %4979 = vmatprep.subr.bf16.mxu0 0
  %4980 = vmatpush2.bf16.msra.mxu0 0
  %4981 = vmatprep.subr.bf16.mxu0 0
  %4982 = vmatpush2.bf16.msra.mxu0 0
  %4983 = vmatprep.mubr.bf16.mxu0 0
  %4984 = vmatmul.mubr.bf16.gmra.mxu0 %v4949
  %v4985 = vpop.f32.mrf.mxu0
  %v4986 = vadd.f32 %v2885, %v4985
  %v4987 = vpop.f32.mrf.mxu0
  %v4988 = vadd.f32 %v2885, %v4987
  %v4989 = vpop.f32.mrf.mxu0
  %v4990 = vpop.f32.mrf.mxu0
  %4991 = vdwg.mxu0
  %v4994 = vcombine.low %v4986, %v4988
  %v4996 = vunpack.c.l.s4 1966171168
  %v4997 = vunpack.c.0.s8 %v4996
  %v4998 = vlaneseq
  %v4999 = vshrl.u32 %v4998, 7
  %v5000 = vsub.s32 %v4997, %v4999
  %v5001 = vrot.slane %v4994, %v5000
  %v5003 = vunpack.c.l.s4 1966171168
  %v5004 = vunpack.c.0.s8 %v5003
  %v5005 = vlaneseq
  %v5006 = vshrl.u32 %v5005, 7
  %v5007 = vsub.s32 %v5004, %v5006
  %v5008 = vrot.slane %v5001, %v5007
  %s5010 = scalar_lea.vmem %s11, 2
  %5011 = vst.msk [vmem:[%s5010] sm:$0x3] %vm2971, %v5008
  // Predicated region
  $region46: #{predictor_pallas.1} parent=0 // pred_check
    _
  $region47: #{predictor_pallas.1} parent=0 // pred_check_branch
    %5013 = sbr.rel (0) target = $region49
  $region48: #{predictor_pallas.1} parent=0 // pred_region
    _
  $region49: #{predictor_pallas.1} parent=0 // pred_fallthru
    _
  // Predicated region
  $region50: #{predictor_pallas.1} parent=0 // pred_check
    _
  $region51: #{predictor_pallas.1} parent=0 // pred_check_branch
    %5015 = sbr.rel (0) target = $region53
  $region52: #{predictor_pallas.1} parent=0 // pred_region
    _
  $region53: #{predictor_pallas.1} parent=0 // pred_fallthru
    _

</llo_original>
